<compile_context>
chip_gen: v6e
topology: v6e:2x2x1
jax: 0.10.0
libtpu: 0.0.40
codegen_flags: <defaults>
</compile_context>

<pallas_src>
import jax
import jax.numpy as jnp
from jax.experimental import pallas as pl
from jax.experimental.pallas import tpu as pltpu

C1, C2 = 128, 256        # conv channel widths from the module
K1, K2 = 5, 3            # conv kernel sizes
OUT_PAD = 128            # fc output padded to a full lane width (lane-dense stores)


def _cnn_kernel(x_ref,
                w1d_ref, b1d_ref, s1d_ref, t1d_ref,
                w2p_ref, b2_ref, s2_ref, t2_ref,
                wfc_ref, bfc_ref,
                o_ref):
    bb, L = x_ref.shape
    L2, L3 = L // 2, L // 4

    # ---- stage 1: conv1 (1->C1, k=5, same pad) as ONE bf16 MXU matmul with the
    #      pre-packed Toeplitz operator; relu -> bn1 (folded) epilogue in f32 ----
    x_bf = x_ref[...].astype(jnp.bfloat16)
    h1 = jnp.dot(x_bf, w1d_ref[...], preferred_element_type=jnp.float32)
    h1 = jnp.maximum(h1 + b1d_ref[...], 0.0) * s1d_ref[...] + t1d_ref[...]

    # ---- MaxPool1d(2): pairwise max of lane-aligned 128-wide time chunks,
    #      emitted directly into a single zero-padded contiguous
    #      (bb, (L2+2)*C1) bf16 slab for the fused conv2 window matmuls ----
    zc = jnp.zeros((bb, C1), jnp.bfloat16)
    chunks = [zc]
    for t in range(L2):
        a = h1[:, (2 * t) * C1:(2 * t + 1) * C1]
        b = h1[:, (2 * t + 1) * C1:(2 * t + 2) * C1]
        chunks.append(jnp.maximum(a, b).astype(jnp.bfloat16))
    chunks.append(zc)
    p1p = jnp.concatenate(chunks, axis=1)                 # (bb, (L2+2)*C1) bf16

    # ---- stage 2: conv2 (C1->C2, k=3, same pad): ONE K=3*C1 matmul per output
    #      time step (fused taps), relu -> bn2 (f32), then MaxPool1d(2) ----
    w2p = w2p_ref[...]                                    # (3*C1, C2) bf16
    b2, s2, t2 = b2_ref[...], s2_ref[...], t2_ref[...]    # f32 epilogue params

    def stage2(t):
        win = p1p[:, t * C1:(t + K2) * C1]                # (bb, 3*C1), lane aligned
        h = jnp.dot(win, w2p, preferred_element_type=jnp.float32) + b2
        return jnp.maximum(h, 0.0) * s2 + t2

    p2 = jnp.concatenate(
        [jnp.maximum(stage2(2 * t), stage2(2 * t + 1)).astype(jnp.bfloat16)
         for t in range(L3)], axis=1)                     # (bb, L3*C2) bf16 slab

    # ---- fc as ONE big-K matmul over the contiguous p2 slab,
    #      then a numerically stable sigmoid (single EUP exp) ----
    z = jnp.dot(p2, wfc_ref[...], preferred_element_type=jnp.float32) + bfc_ref[...]
    pos = 1.0 / (1.0 + jnp.exp(-jnp.abs(z)))
    o_ref[...] = jnp.where(z >= 0.0, pos, 1.0 - pos).astype(o_ref.dtype)


def _round_up(n, m):
    return (n + m - 1) // m * m


def _const_index_map(ndim):
    return lambda i: (0,) * ndim


def _pack_conv1_toeplitz(w1, L):
    """Dense (L, L*C1) operator M with (x @ M)[:, t*C1+c] == conv1d_samepad(x)[:, c, t]."""
    M = jnp.zeros((L, L * C1), w1.dtype)
    for t in range(L):
        for k in range(K1):
            j = t + k - K1 // 2
            if 0 <= j < L:
                M = M.at[j, t * C1:(t + 1) * C1].set(w1[k])
    return M


def cnn_forward(x, params, output_dim, *, block_b=512):
    """Inference forward of CNNModel.  x: (B, input_dim) float32."""
    B, L = x.shape
    assert L % 4 == 0 and L >= 4, "kernel implements the two-conv-block path"
    out_pad = params["fc_b"].shape[1]

    # Batch tile: at most block_b rows, but small enough that the grid has >= 2
    # "parallel" steps (keeps both v7x TensorCores busy); block_b=512 exploits
    # the larger v5e/v6e VMEM at big batches.  Pad batch to a tile multiple.
    bb = max(8, min(block_b, _round_up(-(-B // 2), 8)))
    b_pad = _round_up(B, bb)
    if b_pad != B:
        x = jnp.concatenate([x, jnp.zeros((b_pad - B, L), x.dtype)], axis=0)
    grid = (b_pad // bb,)

    kernel_param_names = ("w1d", "b1d", "s1d", "t1d",
                          "conv2_wp", "conv2_b", "bn2_scale", "bn2_shift",
                          "fc_w2d", "fc_b")
    kernel_args = [params[n] for n in kernel_param_names]

    L2, L3 = L // 2, L // 4
    flops = 2 * b_pad * (L * (L * C1)             # conv1 as dense Toeplitz matmul
                         + L2 * (K2 * C1) * C2    # conv2, fused 3-tap windows
                         + (L3 * C2) * out_pad)   # fc, single big-K matmul
    bytes_accessed = (4 * b_pad * (L + out_pad)
                      + sum(int(p.size) * p.dtype.itemsize for p in kernel_args))

    # TODO(synk): for large input_dim, single-buffer the grid-invariant weight
    # BlockSpecs (pipeline_mode=pl.Buffered(1)) and/or swap the dense Toeplitz
    # conv1 operator for K1 tap matmuls to respect v7x's 64 MiB VMEM.
    out = pl.pallas_call(
        _cnn_kernel,
        out_shape=jax.ShapeDtypeStruct((b_pad, out_pad), jnp.float32),
        grid_spec=pltpu.PrefetchScalarGridSpec(
            num_scalar_prefetch=0,
            grid=grid,
            in_specs=[pl.BlockSpec((bb, L), lambda i: (i, 0))] + [
                pl.BlockSpec(a.shape, _const_index_map(a.ndim)) for a in kernel_args],
            out_specs=pl.BlockSpec((bb, out_pad), lambda i: (i, 0)),
        ),
        compiler_params=pltpu.CompilerParams(
            dimension_semantics=("parallel",),
            vmem_limit_bytes=64 * 1024 * 1024),
        cost_estimate=pl.CostEstimate(
            flops=int(flops),
            transcendentals=int(b_pad * out_pad),
            bytes_accessed=int(bytes_accessed)),
    )(x, *kernel_args)

    return out[:B, :output_dim]


def init_params(key, input_dim, output_dim, *, out_pad=OUT_PAD):
    """Deterministic params mirroring the module's layer shapes (inference-folded BN)."""
    assert input_dim % 4 == 0 and input_dim >= 4
    assert output_dim <= out_pad
    L, L3, eps = input_dim, input_dim // 4, 1e-5
    ks = iter(jax.random.split(key, 14))

    def unif(k, shape, bound):
        return jax.random.uniform(k, shape, jnp.float32, -bound, bound)

    p = {}
    # conv1: nn.Conv1d(1, 128, 5, padding=2) -- weight stored tap-major (K1, C1)
    bd = 1.0 / (1 * K1) ** 0.5
    p["conv1_w"] = unif(next(ks), (K1, C1), bd)
    p["conv1_b"] = unif(next(ks), (1, C1), bd)
    g = 1.0 + 0.1 * jax.random.normal(next(ks), (1, C1))
    beta = 0.1 * jax.random.normal(next(ks), (1, C1))
    mu = 0.1 * jax.random.normal(next(ks), (1, C1))
    var = jax.random.uniform(next(ks), (1, C1), jnp.float32, 0.5, 1.5)
    p["bn1_scale"] = g / jnp.sqrt(var + eps)
    p["bn1_shift"] = beta - mu * p["bn1_scale"]
    # conv2: nn.Conv1d(128, 256, 3, padding=1) -- stored tap-major (K2, C1, C2)
    bd = 1.0 / (C1 * K2) ** 0.5
    p["conv2_w"] = unif(next(ks), (K2, C1, C2), bd)
    p["conv2_b"] = unif(next(ks), (1, C2), bd)
    g = 1.0 + 0.1 * jax.random.normal(next(ks), (1, C2))
    beta = 0.1 * jax.random.normal(next(ks), (1, C2))
    mu = 0.1 * jax.random.normal(next(ks), (1, C2))
    var = jax.random.uniform(next(ks), (1, C2), jnp.float32, 0.5, 1.5)
    p["bn2_scale"] = g / jnp.sqrt(var + eps)
    p["bn2_shift"] = beta - mu * p["bn2_scale"]
    # fc: nn.Linear(C2 * L3, output_dim) stored time-sliced as (L3, C2, out_pad),
    # zero-padded lanes; fc_w[t][c, o] corresponds to torch fc.weight[o, c*L3 + t].
    bd = 1.0 / (C2 * L3) ** 0.5
    wfc = unif(next(ks), (L3, C2, output_dim), bd)
    p["fc_w"] = jnp.concatenate(
        [wfc, jnp.zeros((L3, C2, out_pad - output_dim), jnp.float32)], axis=-1)
    bfc = unif(next(ks), (1, output_dim), bd)
    p["fc_b"] = jnp.concatenate(
        [bfc, jnp.zeros((1, out_pad - output_dim), jnp.float32)], axis=-1)

    # ---- kernel-side packing (MXU operands stored bf16; f32 epilogue params) ----
    # conv1 as a dense Toeplitz operator -> a single MXU matmul per batch tile.
    # TODO(synk): O(L^2*C1) memory; for large input_dim switch to K1 tap matmuls.
    p["w1d"] = _pack_conv1_toeplitz(p["conv1_w"], L).astype(jnp.bfloat16)
    p["b1d"] = jnp.tile(p["conv1_b"], (1, L))
    p["s1d"] = jnp.tile(p["bn1_scale"], (1, L))
    p["t1d"] = jnp.tile(p["bn1_shift"], (1, L))
    # conv2 taps fused into one (3*C1, C2) operator; k-major rows match the
    # contiguous 384-lane windows sliced from the padded p1 slab in the kernel.
    p["conv2_wp"] = p["conv2_w"].reshape(K2 * C1, C2).astype(jnp.bfloat16)
    # fc as one (L3*C2, out_pad) operator; t-major rows match the p2 slab layout.
    p["fc_w2d"] = p["fc_w"].reshape(L3 * C2, out_pad).astype(jnp.bfloat16)
    return p


def cnn_reference(x, params, output_dim):
    """Pure-JAX reference of the module's (eval-mode) forward, from the raw f32 weights."""
    B, L = x.shape
    xp = jnp.pad(x, ((0, 0), (K1 // 2, K1 // 2)))
    patches = jnp.stack([xp[:, k:k + L] for k in range(K1)], axis=-1)     # (B, L, K1)
    h1 = jnp.einsum("blk,kc->blc", patches, params["conv1_w"]) + params["conv1_b"][None]
    h1 = jnp.maximum(h1, 0.0) * params["bn1_scale"][None] + params["bn1_shift"][None]
    p1 = jnp.maximum(h1[:, 0::2, :], h1[:, 1::2, :])                      # (B, L/2, C1)
    p1p = jnp.pad(p1, ((0, 0), (1, 1), (0, 0)))
    h2 = sum(jnp.einsum("blc,cd->bld", p1p[:, k:k + L // 2, :], params["conv2_w"][k])
             for k in range(K2)) + params["conv2_b"][None]
    h2 = jnp.maximum(h2, 0.0) * params["bn2_scale"][None] + params["bn2_shift"][None]
    p2 = jnp.maximum(h2[:, 0::2, :], h2[:, 1::2, :])                      # (B, L/4, C2)
    z = sum(p2[:, t, :] @ params["fc_w"][t] for t in range(L // 4)) + params["fc_b"]
    return jax.nn.sigmoid(z)[:, :output_dim]


if __name__ == "__main__":
    key = jax.random.PRNGKey(0)
    k_x, k_p = jax.random.split(key)

    batch, input_dim, output_dim = 64, 16, 8
    x = jax.random.normal(k_x, (batch, input_dim), jnp.float32)
    params = init_params(k_p, input_dim, output_dim)

    out = cnn_forward(x, params, output_dim)
    out = jax.block_until_ready(out)

    ref = cnn_reference(x, params, output_dim)
    assert out.shape == (batch, output_dim)
    # bf16 matmul operands (f32 accumulation) => looser tolerance than pure f32.
    assert jnp.allclose(out, ref, atol=3e-2, rtol=3e-2), "mismatch vs reference"

    print("KERNEL_OK")
</pallas_src>

<mosaic_0001>
module attributes {stable_mosaic.version = 11 : i64} {
  func.func @_cnn_kernel(%arg0: i32, %arg1: memref<32x16xf32, #tpu.memory_space<vmem>>, %arg2: memref<16x2048xbf16, #tpu.memory_space<vmem>>, %arg3: memref<1x2048xf32, #tpu.memory_space<vmem>>, %arg4: memref<1x2048xf32, #tpu.memory_space<vmem>>, %arg5: memref<1x2048xf32, #tpu.memory_space<vmem>>, %arg6: memref<384x256xbf16, #tpu.memory_space<vmem>>, %arg7: memref<1x256xf32, #tpu.memory_space<vmem>>, %arg8: memref<1x256xf32, #tpu.memory_space<vmem>>, %arg9: memref<1x256xf32, #tpu.memory_space<vmem>>, %arg10: memref<1024x128xbf16, #tpu.memory_space<vmem>>, %arg11: memref<1x128xf32, #tpu.memory_space<vmem>>, %arg12: memref<32x128xf32, #tpu.memory_space<vmem>>) attributes {dimension_semantics = [#tpu.dimension_semantics<parallel>], iteration_bounds = array<i64: 2>, scalar_prefetch = 0 : i64, scratch_operands = 0 : i64, tpu.core_type = #tpu.core_type<tc>, window_params = [{transform_indices = @transform_0, window_bounds = array<i64: 32, 16>}, {pipeline_mode = #tpu.pipeline_mode<synchronous>, transform_indices = @transform_1, window_bounds = array<i64: 16, 2048>}, {pipeline_mode = #tpu.pipeline_mode<synchronous>, transform_indices = @transform_2, window_bounds = array<i64: 1, 2048>}, {pipeline_mode = #tpu.pipeline_mode<synchronous>, transform_indices = @transform_3, window_bounds = array<i64: 1, 2048>}, {pipeline_mode = #tpu.pipeline_mode<synchronous>, transform_indices = @transform_4, window_bounds = array<i64: 1, 2048>}, {pipeline_mode = #tpu.pipeline_mode<synchronous>, transform_indices = @transform_5, window_bounds = array<i64: 384, 256>}, {pipeline_mode = #tpu.pipeline_mode<synchronous>, transform_indices = @transform_6, window_bounds = array<i64: 1, 256>}, {pipeline_mode = #tpu.pipeline_mode<synchronous>, transform_indices = @transform_7, window_bounds = array<i64: 1, 256>}, {pipeline_mode = #tpu.pipeline_mode<synchronous>, transform_indices = @transform_8, window_bounds = array<i64: 1, 256>}, {pipeline_mode = #tpu.pipeline_mode<synchronous>, transform_indices = @transform_9, window_bounds = array<i64: 1024, 128>}, {pipeline_mode = #tpu.pipeline_mode<synchronous>, transform_indices = @transform_10, window_bounds = array<i64: 1, 128>}, {transform_indices = @transform_11, window_bounds = array<i64: 32, 128>}]} {
    %c0 = arith.constant 0 : index
    %c0_0 = arith.constant 0 : index
    %0 = vector.load %arg1[%c0, %c0_0] : memref<32x16xf32, #tpu.memory_space<vmem>>, vector<32x16xf32>
    %1 = arith.truncf %0 : vector<32x16xf32> to vector<32x16xbf16>
    %c0_1 = arith.constant 0 : index
    %c0_2 = arith.constant 0 : index
    %2 = vector.load %arg2[%c0_1, %c0_2] : memref<16x2048xbf16, #tpu.memory_space<vmem>>, vector<16x2048xbf16>
    %cst = arith.constant dense<0.000000e+00> : vector<32x2048xf32>
    %3 = tpu.matmul %1, %2, %cst {dimension_numbers = #tpu.dot_dimension_numbers<[1], [0], [0], [1], [0, 0, 1, 1], [], []>} : vector<32x16xbf16>, vector<16x2048xbf16>, vector<32x2048xf32> -> vector<32x2048xf32>
    %c0_3 = arith.constant 0 : index
    %c0_4 = arith.constant 0 : index
    %4 = vector.load %arg3[%c0_3, %c0_4] : memref<1x2048xf32, #tpu.memory_space<vmem>>, vector<1x2048xf32>
    %5 = vector.broadcast %4 : vector<1x2048xf32> to vector<32x2048xf32>
    %6 = arith.addf %3, %5 : vector<32x2048xf32>
    %cst_5 = arith.constant 0.000000e+00 : f32
    %7 = vector.broadcast %cst_5 : f32 to vector<32x2048xf32>
    %8 = arith.maximumf %6, %7 : vector<32x2048xf32>
    %c0_6 = arith.constant 0 : index
    %c0_7 = arith.constant 0 : index
    %9 = vector.load %arg4[%c0_6, %c0_7] : memref<1x2048xf32, #tpu.memory_space<vmem>>, vector<1x2048xf32>
    %10 = vector.broadcast %9 : vector<1x2048xf32> to vector<32x2048xf32>
    %11 = arith.mulf %8, %10 : vector<32x2048xf32>
    %c0_8 = arith.constant 0 : index
    %c0_9 = arith.constant 0 : index
    %12 = vector.load %arg5[%c0_8, %c0_9] : memref<1x2048xf32, #tpu.memory_space<vmem>>, vector<1x2048xf32>
    %13 = vector.broadcast %12 : vector<1x2048xf32> to vector<32x2048xf32>
    %14 = arith.addf %11, %13 : vector<32x2048xf32>
    %cst_10 = arith.constant 0.000000e+00 : bf16
    %15 = vector.broadcast %cst_10 : bf16 to vector<32x128xbf16>
    %16 = vector.extract_strided_slice %14 {offsets = [0, 0], sizes = [32, 128], strides = [1, 1]} : vector<32x2048xf32> to vector<32x128xf32>
    %17 = vector.extract_strided_slice %14 {offsets = [0, 128], sizes = [32, 128], strides = [1, 1]} : vector<32x2048xf32> to vector<32x128xf32>
    %18 = arith.maximumf %16, %17 : vector<32x128xf32>
    %19 = arith.truncf %18 : vector<32x128xf32> to vector<32x128xbf16>
    %20 = vector.extract_strided_slice %14 {offsets = [0, 256], sizes = [32, 128], strides = [1, 1]} : vector<32x2048xf32> to vector<32x128xf32>
    %21 = vector.extract_strided_slice %14 {offsets = [0, 384], sizes = [32, 128], strides = [1, 1]} : vector<32x2048xf32> to vector<32x128xf32>
    %22 = arith.maximumf %20, %21 : vector<32x128xf32>
    %23 = arith.truncf %22 : vector<32x128xf32> to vector<32x128xbf16>
    %24 = vector.extract_strided_slice %14 {offsets = [0, 512], sizes = [32, 128], strides = [1, 1]} : vector<32x2048xf32> to vector<32x128xf32>
    %25 = vector.extract_strided_slice %14 {offsets = [0, 640], sizes = [32, 128], strides = [1, 1]} : vector<32x2048xf32> to vector<32x128xf32>
    %26 = arith.maximumf %24, %25 : vector<32x128xf32>
    %27 = arith.truncf %26 : vector<32x128xf32> to vector<32x128xbf16>
    %28 = vector.extract_strided_slice %14 {offsets = [0, 768], sizes = [32, 128], strides = [1, 1]} : vector<32x2048xf32> to vector<32x128xf32>
    %29 = vector.extract_strided_slice %14 {offsets = [0, 896], sizes = [32, 128], strides = [1, 1]} : vector<32x2048xf32> to vector<32x128xf32>
    %30 = arith.maximumf %28, %29 : vector<32x128xf32>
    %31 = arith.truncf %30 : vector<32x128xf32> to vector<32x128xbf16>
    %32 = vector.extract_strided_slice %14 {offsets = [0, 1024], sizes = [32, 128], strides = [1, 1]} : vector<32x2048xf32> to vector<32x128xf32>
    %33 = vector.extract_strided_slice %14 {offsets = [0, 1152], sizes = [32, 128], strides = [1, 1]} : vector<32x2048xf32> to vector<32x128xf32>
    %34 = arith.maximumf %32, %33 : vector<32x128xf32>
    %35 = arith.truncf %34 : vector<32x128xf32> to vector<32x128xbf16>
    %36 = vector.extract_strided_slice %14 {offsets = [0, 1280], sizes = [32, 128], strides = [1, 1]} : vector<32x2048xf32> to vector<32x128xf32>
    %37 = vector.extract_strided_slice %14 {offsets = [0, 1408], sizes = [32, 128], strides = [1, 1]} : vector<32x2048xf32> to vector<32x128xf32>
    %38 = arith.maximumf %36, %37 : vector<32x128xf32>
    %39 = arith.truncf %38 : vector<32x128xf32> to vector<32x128xbf16>
    %40 = vector.extract_strided_slice %14 {offsets = [0, 1536], sizes = [32, 128], strides = [1, 1]} : vector<32x2048xf32> to vector<32x128xf32>
    %41 = vector.extract_strided_slice %14 {offsets = [0, 1664], sizes = [32, 128], strides = [1, 1]} : vector<32x2048xf32> to vector<32x128xf32>
    %42 = arith.maximumf %40, %41 : vector<32x128xf32>
    %43 = arith.truncf %42 : vector<32x128xf32> to vector<32x128xbf16>
    %44 = vector.extract_strided_slice %14 {offsets = [0, 1792], sizes = [32, 128], strides = [1, 1]} : vector<32x2048xf32> to vector<32x128xf32>
    %45 = vector.extract_strided_slice %14 {offsets = [0, 1920], sizes = [32, 128], strides = [1, 1]} : vector<32x2048xf32> to vector<32x128xf32>
    %46 = arith.maximumf %44, %45 : vector<32x128xf32>
    %47 = arith.truncf %46 : vector<32x128xf32> to vector<32x128xbf16>
    %48 = tpu.concatenate %15, %19, %23, %27, %31, %35, %39, %43, %47, %15 in 1 : vector<32x128xbf16>, vector<32x128xbf16>, vector<32x128xbf16>, vector<32x128xbf16>, vector<32x128xbf16>, vector<32x128xbf16>, vector<32x128xbf16>, vector<32x128xbf16>, vector<32x128xbf16>, vector<32x128xbf16> -> vector<32x1280xbf16>
    %c0_11 = arith.constant 0 : index
    %c0_12 = arith.constant 0 : index
    %49 = vector.load %arg6[%c0_11, %c0_12] : memref<384x256xbf16, #tpu.memory_space<vmem>>, vector<384x256xbf16>
    %c0_13 = arith.constant 0 : index
    %c0_14 = arith.constant 0 : index
    %50 = vector.load %arg7[%c0_13, %c0_14] : memref<1x256xf32, #tpu.memory_space<vmem>>, vector<1x256xf32>
    %c0_15 = arith.constant 0 : index
    %c0_16 = arith.constant 0 : index
    %51 = vector.load %arg8[%c0_15, %c0_16] : memref<1x256xf32, #tpu.memory_space<vmem>>, vector<1x256xf32>
    %c0_17 = arith.constant 0 : index
    %c0_18 = arith.constant 0 : index
    %52 = vector.load %arg9[%c0_17, %c0_18] : memref<1x256xf32, #tpu.memory_space<vmem>>, vector<1x256xf32>
    %53 = vector.extract_strided_slice %48 {offsets = [0, 0], sizes = [32, 384], strides = [1, 1]} : vector<32x1280xbf16> to vector<32x384xbf16>
    %cst_19 = arith.constant dense<0.000000e+00> : vector<32x256xf32>
    %54 = tpu.matmul %53, %49, %cst_19 {dimension_numbers = #tpu.dot_dimension_numbers<[1], [0], [0], [1], [0, 0, 1, 1], [], []>} : vector<32x384xbf16>, vector<384x256xbf16>, vector<32x256xf32> -> vector<32x256xf32>
    %55 = vector.broadcast %50 : vector<1x256xf32> to vector<32x256xf32>
    %56 = arith.addf %54, %55 : vector<32x256xf32>
    %cst_20 = arith.constant 0.000000e+00 : f32
    %57 = vector.broadcast %cst_20 : f32 to vector<32x256xf32>
    %58 = arith.maximumf %56, %57 : vector<32x256xf32>
    %59 = vector.broadcast %51 : vector<1x256xf32> to vector<32x256xf32>
    %60 = arith.mulf %58, %59 : vector<32x256xf32>
    %61 = vector.broadcast %52 : vector<1x256xf32> to vector<32x256xf32>
    %62 = arith.addf %60, %61 : vector<32x256xf32>
    %63 = vector.extract_strided_slice %48 {offsets = [0, 128], sizes = [32, 384], strides = [1, 1]} : vector<32x1280xbf16> to vector<32x384xbf16>
    %cst_21 = arith.constant dense<0.000000e+00> : vector<32x256xf32>
    %64 = tpu.matmul %63, %49, %cst_21 {dimension_numbers = #tpu.dot_dimension_numbers<[1], [0], [0], [1], [0, 0, 1, 1], [], []>} : vector<32x384xbf16>, vector<384x256xbf16>, vector<32x256xf32> -> vector<32x256xf32>
    %65 = vector.broadcast %50 : vector<1x256xf32> to vector<32x256xf32>
    %66 = arith.addf %64, %65 : vector<32x256xf32>
    %cst_22 = arith.constant 0.000000e+00 : f32
    %67 = vector.broadcast %cst_22 : f32 to vector<32x256xf32>
    %68 = arith.maximumf %66, %67 : vector<32x256xf32>
    %69 = vector.broadcast %51 : vector<1x256xf32> to vector<32x256xf32>
    %70 = arith.mulf %68, %69 : vector<32x256xf32>
    %71 = vector.broadcast %52 : vector<1x256xf32> to vector<32x256xf32>
    %72 = arith.addf %70, %71 : vector<32x256xf32>
    %73 = arith.maximumf %62, %72 : vector<32x256xf32>
    %74 = arith.truncf %73 : vector<32x256xf32> to vector<32x256xbf16>
    %75 = vector.extract_strided_slice %48 {offsets = [0, 256], sizes = [32, 384], strides = [1, 1]} : vector<32x1280xbf16> to vector<32x384xbf16>
    %cst_23 = arith.constant dense<0.000000e+00> : vector<32x256xf32>
    %76 = tpu.matmul %75, %49, %cst_23 {dimension_numbers = #tpu.dot_dimension_numbers<[1], [0], [0], [1], [0, 0, 1, 1], [], []>} : vector<32x384xbf16>, vector<384x256xbf16>, vector<32x256xf32> -> vector<32x256xf32>
    %77 = vector.broadcast %50 : vector<1x256xf32> to vector<32x256xf32>
    %78 = arith.addf %76, %77 : vector<32x256xf32>
    %cst_24 = arith.constant 0.000000e+00 : f32
    %79 = vector.broadcast %cst_24 : f32 to vector<32x256xf32>
    %80 = arith.maximumf %78, %79 : vector<32x256xf32>
    %81 = vector.broadcast %51 : vector<1x256xf32> to vector<32x256xf32>
    %82 = arith.mulf %80, %81 : vector<32x256xf32>
    %83 = vector.broadcast %52 : vector<1x256xf32> to vector<32x256xf32>
    %84 = arith.addf %82, %83 : vector<32x256xf32>
    %85 = vector.extract_strided_slice %48 {offsets = [0, 384], sizes = [32, 384], strides = [1, 1]} : vector<32x1280xbf16> to vector<32x384xbf16>
    %cst_25 = arith.constant dense<0.000000e+00> : vector<32x256xf32>
    %86 = tpu.matmul %85, %49, %cst_25 {dimension_numbers = #tpu.dot_dimension_numbers<[1], [0], [0], [1], [0, 0, 1, 1], [], []>} : vector<32x384xbf16>, vector<384x256xbf16>, vector<32x256xf32> -> vector<32x256xf32>
    %87 = vector.broadcast %50 : vector<1x256xf32> to vector<32x256xf32>
    %88 = arith.addf %86, %87 : vector<32x256xf32>
    %cst_26 = arith.constant 0.000000e+00 : f32
    %89 = vector.broadcast %cst_26 : f32 to vector<32x256xf32>
    %90 = arith.maximumf %88, %89 : vector<32x256xf32>
    %91 = vector.broadcast %51 : vector<1x256xf32> to vector<32x256xf32>
    %92 = arith.mulf %90, %91 : vector<32x256xf32>
    %93 = vector.broadcast %52 : vector<1x256xf32> to vector<32x256xf32>
    %94 = arith.addf %92, %93 : vector<32x256xf32>
    %95 = arith.maximumf %84, %94 : vector<32x256xf32>
    %96 = arith.truncf %95 : vector<32x256xf32> to vector<32x256xbf16>
    %97 = vector.extract_strided_slice %48 {offsets = [0, 512], sizes = [32, 384], strides = [1, 1]} : vector<32x1280xbf16> to vector<32x384xbf16>
    %cst_27 = arith.constant dense<0.000000e+00> : vector<32x256xf32>
    %98 = tpu.matmul %97, %49, %cst_27 {dimension_numbers = #tpu.dot_dimension_numbers<[1], [0], [0], [1], [0, 0, 1, 1], [], []>} : vector<32x384xbf16>, vector<384x256xbf16>, vector<32x256xf32> -> vector<32x256xf32>
    %99 = vector.broadcast %50 : vector<1x256xf32> to vector<32x256xf32>
    %100 = arith.addf %98, %99 : vector<32x256xf32>
    %cst_28 = arith.constant 0.000000e+00 : f32
    %101 = vector.broadcast %cst_28 : f32 to vector<32x256xf32>
    %102 = arith.maximumf %100, %101 : vector<32x256xf32>
    %103 = vector.broadcast %51 : vector<1x256xf32> to vector<32x256xf32>
    %104 = arith.mulf %102, %103 : vector<32x256xf32>
    %105 = vector.broadcast %52 : vector<1x256xf32> to vector<32x256xf32>
    %106 = arith.addf %104, %105 : vector<32x256xf32>
    %107 = vector.extract_strided_slice %48 {offsets = [0, 640], sizes = [32, 384], strides = [1, 1]} : vector<32x1280xbf16> to vector<32x384xbf16>
    %cst_29 = arith.constant dense<0.000000e+00> : vector<32x256xf32>
    %108 = tpu.matmul %107, %49, %cst_29 {dimension_numbers = #tpu.dot_dimension_numbers<[1], [0], [0], [1], [0, 0, 1, 1], [], []>} : vector<32x384xbf16>, vector<384x256xbf16>, vector<32x256xf32> -> vector<32x256xf32>
    %109 = vector.broadcast %50 : vector<1x256xf32> to vector<32x256xf32>
    %110 = arith.addf %108, %109 : vector<32x256xf32>
    %cst_30 = arith.constant 0.000000e+00 : f32
    %111 = vector.broadcast %cst_30 : f32 to vector<32x256xf32>
    %112 = arith.maximumf %110, %111 : vector<32x256xf32>
    %113 = vector.broadcast %51 : vector<1x256xf32> to vector<32x256xf32>
    %114 = arith.mulf %112, %113 : vector<32x256xf32>
    %115 = vector.broadcast %52 : vector<1x256xf32> to vector<32x256xf32>
    %116 = arith.addf %114, %115 : vector<32x256xf32>
    %117 = arith.maximumf %106, %116 : vector<32x256xf32>
    %118 = arith.truncf %117 : vector<32x256xf32> to vector<32x256xbf16>
    %119 = vector.extract_strided_slice %48 {offsets = [0, 768], sizes = [32, 384], strides = [1, 1]} : vector<32x1280xbf16> to vector<32x384xbf16>
    %cst_31 = arith.constant dense<0.000000e+00> : vector<32x256xf32>
    %120 = tpu.matmul %119, %49, %cst_31 {dimension_numbers = #tpu.dot_dimension_numbers<[1], [0], [0], [1], [0, 0, 1, 1], [], []>} : vector<32x384xbf16>, vector<384x256xbf16>, vector<32x256xf32> -> vector<32x256xf32>
    %121 = vector.broadcast %50 : vector<1x256xf32> to vector<32x256xf32>
    %122 = arith.addf %120, %121 : vector<32x256xf32>
    %cst_32 = arith.constant 0.000000e+00 : f32
    %123 = vector.broadcast %cst_32 : f32 to vector<32x256xf32>
    %124 = arith.maximumf %122, %123 : vector<32x256xf32>
    %125 = vector.broadcast %51 : vector<1x256xf32> to vector<32x256xf32>
    %126 = arith.mulf %124, %125 : vector<32x256xf32>
    %127 = vector.broadcast %52 : vector<1x256xf32> to vector<32x256xf32>
    %128 = arith.addf %126, %127 : vector<32x256xf32>
    %129 = vector.extract_strided_slice %48 {offsets = [0, 896], sizes = [32, 384], strides = [1, 1]} : vector<32x1280xbf16> to vector<32x384xbf16>
    %cst_33 = arith.constant dense<0.000000e+00> : vector<32x256xf32>
    %130 = tpu.matmul %129, %49, %cst_33 {dimension_numbers = #tpu.dot_dimension_numbers<[1], [0], [0], [1], [0, 0, 1, 1], [], []>} : vector<32x384xbf16>, vector<384x256xbf16>, vector<32x256xf32> -> vector<32x256xf32>
    %131 = vector.broadcast %50 : vector<1x256xf32> to vector<32x256xf32>
    %132 = arith.addf %130, %131 : vector<32x256xf32>
    %cst_34 = arith.constant 0.000000e+00 : f32
    %133 = vector.broadcast %cst_34 : f32 to vector<32x256xf32>
    %134 = arith.maximumf %132, %133 : vector<32x256xf32>
    %135 = vector.broadcast %51 : vector<1x256xf32> to vector<32x256xf32>
    %136 = arith.mulf %134, %135 : vector<32x256xf32>
    %137 = vector.broadcast %52 : vector<1x256xf32> to vector<32x256xf32>
    %138 = arith.addf %136, %137 : vector<32x256xf32>
    %139 = arith.maximumf %128, %138 : vector<32x256xf32>
    %140 = arith.truncf %139 : vector<32x256xf32> to vector<32x256xbf16>
    %141 = tpu.concatenate %74, %96, %118, %140 in 1 : vector<32x256xbf16>, vector<32x256xbf16>, vector<32x256xbf16>, vector<32x256xbf16> -> vector<32x1024xbf16>
    %c0_35 = arith.constant 0 : index
    %c0_36 = arith.constant 0 : index
    %142 = vector.load %arg10[%c0_35, %c0_36] : memref<1024x128xbf16, #tpu.memory_space<vmem>>, vector<1024x128xbf16>
    %cst_37 = arith.constant dense<0.000000e+00> : vector<32x128xf32>
    %143 = tpu.matmul %141, %142, %cst_37 {dimension_numbers = #tpu.dot_dimension_numbers<[1], [0], [0], [1], [0, 0, 1, 1], [], []>} : vector<32x1024xbf16>, vector<1024x128xbf16>, vector<32x128xf32> -> vector<32x128xf32>
    %c0_38 = arith.constant 0 : index
    %c0_39 = arith.constant 0 : index
    %144 = vector.load %arg11[%c0_38, %c0_39] : memref<1x128xf32, #tpu.memory_space<vmem>>, vector<1x128xf32>
    %145 = vector.broadcast %144 : vector<1x128xf32> to vector<32x128xf32>
    %146 = arith.addf %143, %145 : vector<32x128xf32>
    %147 = math.absf %146 : vector<32x128xf32>
    %cst_40 = arith.constant 0.000000e+00 : f32
    %148 = vector.broadcast %cst_40 : f32 to vector<32x128xf32>
    %149 = arith.subf %148, %147 : vector<32x128xf32>
    %150 = math.exp %149 : vector<32x128xf32>
    %cst_41 = arith.constant 1.000000e+00 : f32
    %151 = vector.broadcast %cst_41 : f32 to vector<32x128xf32>
    %152 = arith.addf %151, %150 : vector<32x128xf32>
    %cst_42 = arith.constant 1.000000e+00 : f32
    %153 = vector.broadcast %cst_42 : f32 to vector<32x128xf32>
    %154 = arith.divf %153, %152 : vector<32x128xf32>
    %cst_43 = arith.constant 0.000000e+00 : f32
    %155 = vector.broadcast %cst_43 : f32 to vector<32x128xf32>
    %156 = arith.cmpf oge, %146, %155 : vector<32x128xf32>
    %cst_44 = arith.constant 1.000000e+00 : f32
    %157 = vector.broadcast %cst_44 : f32 to vector<32x128xf32>
    %158 = arith.subf %157, %154 : vector<32x128xf32>
    %159 = arith.select %156, %154, %158 : vector<32x128xi1>, vector<32x128xf32>
    %c0_45 = arith.constant 0 : index
    %c0_46 = arith.constant 0 : index
    %160 = vector.load %arg12[%c0_45, %c0_46] : memref<32x128xf32, #tpu.memory_space<vmem>>, vector<32x128xf32>
    tpu.vector_store %arg12[%c0_45, %c0_46], %159 {strides = array<i32>} : memref<32x128xf32, #tpu.memory_space<vmem>>, vector<32x128xf32>,
    return
  }
  func.func @transform_0(%arg0: i32) -> (i32, i32) {
    %c0_i32 = arith.constant 0 : i32
    %c0_i32_0 = arith.constant 0 : i32
    return %arg0, %c0_i32 : i32, i32
  }
  func.func @transform_1(%arg0: i32) -> (i32, i32) {
    %c0_i32 = arith.constant 0 : i32
    %c0_i32_0 = arith.constant 0 : i32
    %c0_i32_1 = arith.constant 0 : i32
    return %c0_i32, %c0_i32_0 : i32, i32
  }
  func.func @transform_2(%arg0: i32) -> (i32, i32) {
    %c0_i32 = arith.constant 0 : i32
    %c0_i32_0 = arith.constant 0 : i32
    %c0_i32_1 = arith.constant 0 : i32
    return %c0_i32, %c0_i32_0 : i32, i32
  }
  func.func @transform_3(%arg0: i32) -> (i32, i32) {
    %c0_i32 = arith.constant 0 : i32
    %c0_i32_0 = arith.constant 0 : i32
    %c0_i32_1 = arith.constant 0 : i32
    return %c0_i32, %c0_i32_0 : i32, i32
  }
  func.func @transform_4(%arg0: i32) -> (i32, i32) {
    %c0_i32 = arith.constant 0 : i32
    %c0_i32_0 = arith.constant 0 : i32
    %c0_i32_1 = arith.constant 0 : i32
    return %c0_i32, %c0_i32_0 : i32, i32
  }
  func.func @transform_5(%arg0: i32) -> (i32, i32) {
    %c0_i32 = arith.constant 0 : i32
    %c0_i32_0 = arith.constant 0 : i32
    %c0_i32_1 = arith.constant 0 : i32
    return %c0_i32, %c0_i32_0 : i32, i32
  }
  func.func @transform_6(%arg0: i32) -> (i32, i32) {
    %c0_i32 = arith.constant 0 : i32
    %c0_i32_0 = arith.constant 0 : i32
    %c0_i32_1 = arith.constant 0 : i32
    return %c0_i32, %c0_i32_0 : i32, i32
  }
  func.func @transform_7(%arg0: i32) -> (i32, i32) {
    %c0_i32 = arith.constant 0 : i32
    %c0_i32_0 = arith.constant 0 : i32
    %c0_i32_1 = arith.constant 0 : i32
    return %c0_i32, %c0_i32_0 : i32, i32
  }
  func.func @transform_8(%arg0: i32) -> (i32, i32) {
    %c0_i32 = arith.constant 0 : i32
    %c0_i32_0 = arith.constant 0 : i32
    %c0_i32_1 = arith.constant 0 : i32
    return %c0_i32, %c0_i32_0 : i32, i32
  }
  func.func @transform_9(%arg0: i32) -> (i32, i32) {
    %c0_i32 = arith.constant 0 : i32
    %c0_i32_0 = arith.constant 0 : i32
    %c0_i32_1 = arith.constant 0 : i32
    return %c0_i32, %c0_i32_0 : i32, i32
  }
  func.func @transform_10(%arg0: i32) -> (i32, i32) {
    %c0_i32 = arith.constant 0 : i32
    %c0_i32_0 = arith.constant 0 : i32
    %c0_i32_1 = arith.constant 0 : i32
    return %c0_i32, %c0_i32_0 : i32, i32
  }
  func.func @transform_11(%arg0: i32) -> (i32, i32) {
    %c0_i32 = arith.constant 0 : i32
    %c0_i32_0 = arith.constant 0 : i32
    return %arg0, %c0_i32 : i32, i32
  }
}

</mosaic_0001>

<llo_original>
// kernel: tpu_custom_call.1
$region0: #{tpu_custom_call.1}
  #allocation0 [shape = 'u32[]', space=smem, size = 0x4, offset = 0x4, fixed_abs, tag = 'smem constant byte address 0x4 - core index']
  #allocation1 [shape = 'u32[144,128]{1,0:T(1,128)}', space=vmem, size = 0x12000, scoped, tag = 'internal scratch']
  %s0 = inlined_call_operand.vmem [shape: f32[64,16], index: 0, kind: input, shape index: {}]
  %s1 = inlined_call_operand.hbm [shape: bf16[16,2048], index: 1, kind: input, shape index: {}]
  %s2 = inlined_call_operand.vmem [shape: f32[1,2048], index: 2, kind: input, shape index: {}]
  %s3 = inlined_call_operand.vmem [shape: f32[1,2048], index: 3, kind: input, shape index: {}]
  %s4 = inlined_call_operand.vmem [shape: f32[1,2048], index: 4, kind: input, shape index: {}]
  %s5 = inlined_call_operand.hbm [shape: bf16[384,256], index: 5, kind: input, shape index: {}]
  %s6 = inlined_call_operand.vmem [shape: f32[1,256], index: 6, kind: input, shape index: {}]
  %s7 = inlined_call_operand.vmem [shape: f32[1,256], index: 7, kind: input, shape index: {}]
  %s8 = inlined_call_operand.vmem [shape: f32[1,256], index: 8, kind: input, shape index: {}]
  %s9 = inlined_call_operand.hbm [shape: bf16[1024,128], index: 9, kind: input, shape index: {}]
  %s10 = inlined_call_operand.vmem [shape: f32[1,128], index: 10, kind: input, shape index: {}]
  %s11 = inlined_call_operand.hbm [shape: f32[64,128], index: 11, kind: output, shape index: {}]
  %s12 = sld [smem:[#allocation0]]
  $region89: #{tpu_custom_call.1} parent=0
    _
  %s14 = ssub.s32 1, %s12
  %s15 = scalar_select 0, %s14, %s12
  $region1: #{tpu_custom_call.1} parent=0
    #allocation2 [shape = 'u8[65536]{0}', space=vmem, size = 0x10000, scoped, tag = 'input window, operand 1, single buffered']
    #allocation3 [shape = 's32[2]{0}', space=sflag, size = 0x8, scoped, tag = 'scoped memory for tpu_custom_call.1']
    #allocation4 [shape = 's32[2]{0}', space=sflag, size = 0x8, scoped, tag = 'scoped memory for tpu_custom_call.1']
    #allocation5 [shape = 'u8[196608]{0}', space=vmem, size = 0x30000, scoped, tag = 'input window, operand 5, single buffered']
    #allocation6 [shape = 's32[1]{0}', space=sflag, size = 0x4, scoped, tag = 'scoped memory for tpu_custom_call.1']
    #allocation7 [shape = 'u8[262144]{0}', space=vmem, size = 0x40000, scoped, tag = 'input window, operand 9, single buffered']
    #allocation8 [shape = 'u8[32768]{0}', space=vmem, size = 0x8000, scoped, tag = 'output window, operand 0']
    %16 = vsyncpa [#allocation3], 0
    %17 = vsyncpa [#allocation6], 0
    %18 = vsyncpa [#allocation4], 0
    %s19 = scalar_lea.sflag [#allocation4], 1
    %20 = vsyncpa %s19, 0
    loop: start=0, step=1, limit=4
    $region2: #{tpu_custom_call.1} parent=1 // loop_pre_header
      _
    $region3: #{tpu_custom_call.1} parent=1 // loop_header
      %s22 = sphi 0, %s26
      %p23 = scmp.ge.s32.totalorder %s22, 4
      %s32 = sphi 0, %s34
      %s35 = sphi 0, %s32
      %s36 = sphi 0, %s35
      %s52 = sphi 0, %s36
      %s56 = sphi 0, %s56
      %s58 = sphi 0, %s56
      %s59 = sphi 0, %s58
      %s73 = sphi 0, %s59
      %s77 = sphi 0, %s77
      %s79 = sphi 0, %s77
      %s80 = sphi 0, %s79
      %s94 = sphi 0, %s80
      %s98 = sphi 0, %s98
      %s100 = sphi 0, %s98
      %s101 = sphi 0, %s100
      %s115 = sphi 0, %s101
      %s119 = sphi 0, %s119
      %s121 = sphi 0, %s119
      %s122 = sphi 0, %s121
      %s136 = sphi 0, %s122
      %s140 = sphi 0, %s140
      %s142 = sphi 0, %s140
      %s143 = sphi 0, %s142
      %s157 = sphi 0, %s143
      %s161 = sphi 0, %s161
      %s163 = sphi 0, %s161
      %s164 = sphi 0, %s163
      %s178 = sphi 0, %s164
      %s182 = sphi 0, %s182
      %s184 = sphi 0, %s182
      %s185 = sphi 0, %s184
      %s199 = sphi 0, %s185
      %s203 = sphi 0, %s203
      %s205 = sphi 0, %s203
      %s206 = sphi 0, %s205
      %s220 = sphi 0, %s206
      %s224 = sphi 0, %s224
      %s226 = sphi 0, %s224
      %s227 = sphi 0, %s226
      %s241 = sphi 0, %s227
      %s245 = sphi 0, %s245
      %s247 = sphi 0, %s245
      %s248 = sphi 0, %s247
      %s262 = sphi 0, %s248
      %s268 = sphi 0, %s270
      %s271 = sphi 0, %s268
      %s272 = sphi 0, %s271
      %s288 = sphi 0, %s272
    $region4: #{tpu_custom_call.1} parent=1 // loop_header_branch
      %25 = sbr.rel (%p23) target = $region8
    $region5: #{tpu_custom_call.1} parent=1 // loop_body
      %s27 = ssub.s32 %s22, 1
      %s28 = ssub.s32 %s22, 2
      %s29 = sadd.s32 %s22, 1
      %s30 = ssub.s32 %s22, %s29
      %p31 = scmp.eq.s32.totalorder %s30, 0
      %s33 = sadd.s32 %s32, 1
      %s34 = scalar_select %p31, %s32, %s33
      %p37 = pneg %p31
      %p38 = scmp.eq.s32.totalorder %s22, 1
      %p39 = por %p37, %p38
      %p40 = scmp.ne.s32.totalorder %s32, %s35
      %p41 = scmp.eq.s32.totalorder %s22, 0
      %p42 = por %p40, %p41
      %p43 = scmp.ne.s32.totalorder %s32, %s35
      %p44 = scmp.eq.s32.totalorder %s27, 1
      %p45 = por %p43, %p44
      %p46 = scmp.ne.s32.totalorder %s35, %s36
      %p47 = scmp.eq.s32.totalorder %s27, 0
      %p48 = por %p46, %p47
      %p49 = scmp.ne.s32.totalorder %s35, %s36
      %p50 = scmp.eq.s32.totalorder %s28, 1
      %p51 = por %p49, %p50
      %p53 = scmp.ne.s32.totalorder %s36, %s52
      %p54 = scmp.eq.s32.totalorder %s28, 0
      %p55 = por %p53, %p54
      %s57 = sadd.s32 %s56, 1
      %p60 = scmp.eq.s32.totalorder %s22, 1
      %p61 = scmp.ne.s32.totalorder %s56, %s58
      %p62 = scmp.eq.s32.totalorder %s22, 0
      %p63 = por %p61, %p62
      %p64 = scmp.ne.s32.totalorder %s56, %s58
      %p65 = scmp.eq.s32.totalorder %s27, 1
      %p66 = por %p64, %p65
      %p67 = scmp.ne.s32.totalorder %s58, %s59
      %p68 = scmp.eq.s32.totalorder %s27, 0
      %p69 = por %p67, %p68
      %p70 = scmp.ne.s32.totalorder %s58, %s59
      %p71 = scmp.eq.s32.totalorder %s28, 1
      %p72 = por %p70, %p71
      %p74 = scmp.ne.s32.totalorder %s59, %s73
      %p75 = scmp.eq.s32.totalorder %s28, 0
      %p76 = por %p74, %p75
      %s78 = sadd.s32 %s77, 1
      %p81 = scmp.eq.s32.totalorder %s22, 1
      %p82 = scmp.ne.s32.totalorder %s77, %s79
      %p83 = scmp.eq.s32.totalorder %s22, 0
      %p84 = por %p82, %p83
      %p85 = scmp.ne.s32.totalorder %s77, %s79
      %p86 = scmp.eq.s32.totalorder %s27, 1
      %p87 = por %p85, %p86
      %p88 = scmp.ne.s32.totalorder %s79, %s80
      %p89 = scmp.eq.s32.totalorder %s27, 0
      %p90 = por %p88, %p89
      %p91 = scmp.ne.s32.totalorder %s79, %s80
      %p92 = scmp.eq.s32.totalorder %s28, 1
      %p93 = por %p91, %p92
      %p95 = scmp.ne.s32.totalorder %s80, %s94
      %p96 = scmp.eq.s32.totalorder %s28, 0
      %p97 = por %p95, %p96
      %s99 = sadd.s32 %s98, 1
      %p102 = scmp.eq.s32.totalorder %s22, 1
      %p103 = scmp.ne.s32.totalorder %s98, %s100
      %p104 = scmp.eq.s32.totalorder %s22, 0
      %p105 = por %p103, %p104
      %p106 = scmp.ne.s32.totalorder %s98, %s100
      %p107 = scmp.eq.s32.totalorder %s27, 1
      %p108 = por %p106, %p107
      %p109 = scmp.ne.s32.totalorder %s100, %s101
      %p110 = scmp.eq.s32.totalorder %s27, 0
      %p111 = por %p109, %p110
      %p112 = scmp.ne.s32.totalorder %s100, %s101
      %p113 = scmp.eq.s32.totalorder %s28, 1
      %p114 = por %p112, %p113
      %p116 = scmp.ne.s32.totalorder %s101, %s115
      %p117 = scmp.eq.s32.totalorder %s28, 0
      %p118 = por %p116, %p117
      %s120 = sadd.s32 %s119, 1
      %p123 = scmp.eq.s32.totalorder %s22, 1
      %p124 = scmp.ne.s32.totalorder %s119, %s121
      %p125 = scmp.eq.s32.totalorder %s22, 0
      %p126 = por %p124, %p125
      %p127 = scmp.ne.s32.totalorder %s119, %s121
      %p128 = scmp.eq.s32.totalorder %s27, 1
      %p129 = por %p127, %p128
      %p130 = scmp.ne.s32.totalorder %s121, %s122
      %p131 = scmp.eq.s32.totalorder %s27, 0
      %p132 = por %p130, %p131
      %p133 = scmp.ne.s32.totalorder %s121, %s122
      %p134 = scmp.eq.s32.totalorder %s28, 1
      %p135 = por %p133, %p134
      %p137 = scmp.ne.s32.totalorder %s122, %s136
      %p138 = scmp.eq.s32.totalorder %s28, 0
      %p139 = por %p137, %p138
      %s141 = sadd.s32 %s140, 1
      %p144 = scmp.eq.s32.totalorder %s22, 1
      %p145 = scmp.ne.s32.totalorder %s140, %s142
      %p146 = scmp.eq.s32.totalorder %s22, 0
      %p147 = por %p145, %p146
      %p148 = scmp.ne.s32.totalorder %s140, %s142
      %p149 = scmp.eq.s32.totalorder %s27, 1
      %p150 = por %p148, %p149
      %p151 = scmp.ne.s32.totalorder %s142, %s143
      %p152 = scmp.eq.s32.totalorder %s27, 0
      %p153 = por %p151, %p152
      %p154 = scmp.ne.s32.totalorder %s142, %s143
      %p155 = scmp.eq.s32.totalorder %s28, 1
      %p156 = por %p154, %p155
      %p158 = scmp.ne.s32.totalorder %s143, %s157
      %p159 = scmp.eq.s32.totalorder %s28, 0
      %p160 = por %p158, %p159
      %s162 = sadd.s32 %s161, 1
      %p165 = scmp.eq.s32.totalorder %s22, 1
      %p166 = scmp.ne.s32.totalorder %s161, %s163
      %p167 = scmp.eq.s32.totalorder %s22, 0
      %p168 = por %p166, %p167
      %p169 = scmp.ne.s32.totalorder %s161, %s163
      %p170 = scmp.eq.s32.totalorder %s27, 1
      %p171 = por %p169, %p170
      %p172 = scmp.ne.s32.totalorder %s163, %s164
      %p173 = scmp.eq.s32.totalorder %s27, 0
      %p174 = por %p172, %p173
      %p175 = scmp.ne.s32.totalorder %s163, %s164
      %p176 = scmp.eq.s32.totalorder %s28, 1
      %p177 = por %p175, %p176
      %p179 = scmp.ne.s32.totalorder %s164, %s178
      %p180 = scmp.eq.s32.totalorder %s28, 0
      %p181 = por %p179, %p180
      %s183 = sadd.s32 %s182, 1
      %p186 = scmp.eq.s32.totalorder %s22, 1
      %p187 = scmp.ne.s32.totalorder %s182, %s184
      %p188 = scmp.eq.s32.totalorder %s22, 0
      %p189 = por %p187, %p188
      %p190 = scmp.ne.s32.totalorder %s182, %s184
      %p191 = scmp.eq.s32.totalorder %s27, 1
      %p192 = por %p190, %p191
      %p193 = scmp.ne.s32.totalorder %s184, %s185
      %p194 = scmp.eq.s32.totalorder %s27, 0
      %p195 = por %p193, %p194
      %p196 = scmp.ne.s32.totalorder %s184, %s185
      %p197 = scmp.eq.s32.totalorder %s28, 1
      %p198 = por %p196, %p197
      %p200 = scmp.ne.s32.totalorder %s185, %s199
      %p201 = scmp.eq.s32.totalorder %s28, 0
      %p202 = por %p200, %p201
      %s204 = sadd.s32 %s203, 1
      %p207 = scmp.eq.s32.totalorder %s22, 1
      %p208 = scmp.ne.s32.totalorder %s203, %s205
      %p209 = scmp.eq.s32.totalorder %s22, 0
      %p210 = por %p208, %p209
      %p211 = scmp.ne.s32.totalorder %s203, %s205
      %p212 = scmp.eq.s32.totalorder %s27, 1
      %p213 = por %p211, %p212
      %p214 = scmp.ne.s32.totalorder %s205, %s206
      %p215 = scmp.eq.s32.totalorder %s27, 0
      %p216 = por %p214, %p215
      %p217 = scmp.ne.s32.totalorder %s205, %s206
      %p218 = scmp.eq.s32.totalorder %s28, 1
      %p219 = por %p217, %p218
      %p221 = scmp.ne.s32.totalorder %s206, %s220
      %p222 = scmp.eq.s32.totalorder %s28, 0
      %p223 = por %p221, %p222
      %s225 = sadd.s32 %s224, 1
      %p228 = scmp.eq.s32.totalorder %s22, 1
      %p229 = scmp.ne.s32.totalorder %s224, %s226
      %p230 = scmp.eq.s32.totalorder %s22, 0
      %p231 = por %p229, %p230
      %p232 = scmp.ne.s32.totalorder %s224, %s226
      %p233 = scmp.eq.s32.totalorder %s27, 1
      %p234 = por %p232, %p233
      %p235 = scmp.ne.s32.totalorder %s226, %s227
      %p236 = scmp.eq.s32.totalorder %s27, 0
      %p237 = por %p235, %p236
      %p238 = scmp.ne.s32.totalorder %s226, %s227
      %p239 = scmp.eq.s32.totalorder %s28, 1
      %p240 = por %p238, %p239
      %p242 = scmp.ne.s32.totalorder %s227, %s241
      %p243 = scmp.eq.s32.totalorder %s28, 0
      %p244 = por %p242, %p243
      %s246 = sadd.s32 %s245, 1
      %p249 = scmp.eq.s32.totalorder %s22, 1
      %p250 = scmp.ne.s32.totalorder %s245, %s247
      %p251 = scmp.eq.s32.totalorder %s22, 0
      %p252 = por %p250, %p251
      %p253 = scmp.ne.s32.totalorder %s245, %s247
      %p254 = scmp.eq.s32.totalorder %s27, 1
      %p255 = por %p253, %p254
      %p256 = scmp.ne.s32.totalorder %s247, %s248
      %p257 = scmp.eq.s32.totalorder %s27, 0
      %p258 = por %p256, %p257
      %p259 = scmp.ne.s32.totalorder %s247, %s248
      %p260 = scmp.eq.s32.totalorder %s28, 1
      %p261 = por %p259, %p260
      %p263 = scmp.ne.s32.totalorder %s248, %s262
      %p264 = scmp.eq.s32.totalorder %s28, 0
      %p265 = por %p263, %p264
      %s266 = ssub.s32 %s22, %s29
      %p267 = scmp.eq.s32.totalorder %s266, 0
      %s269 = sadd.s32 %s268, 1
      %s270 = scalar_select %p267, %s268, %s269
      %p273 = pneg %p267
      %p274 = scmp.eq.s32.totalorder %s22, 1
      %p275 = por %p273, %p274
      %p276 = scmp.ne.s32.totalorder %s268, %s271
      %p277 = scmp.eq.s32.totalorder %s22, 0
      %p278 = por %p276, %p277
      %p279 = scmp.ne.s32.totalorder %s268, %s271
      %p280 = scmp.eq.s32.totalorder %s27, 1
      %p281 = por %p279, %p280
      %p282 = scmp.ne.s32.totalorder %s271, %s272
      %p283 = scmp.eq.s32.totalorder %s27, 0
      %p284 = por %p282, %p283
      %p285 = scmp.ne.s32.totalorder %s271, %s272
      %p286 = scmp.eq.s32.totalorder %s28, 1
      %p287 = por %p285, %p286
      %p289 = scmp.ne.s32.totalorder %s272, %s288
      %p290 = scmp.eq.s32.totalorder %s28, 0
      %p291 = por %p289, %p290
      %p292 = scmp.le.s32.totalorder 1, %s22
      %p293 = scmp.lt.s32.totalorder %s22, 3
      %p294 = pnand %p292, %p293
      %p295 = pneg %p294
      // Predicated region
      $region9: #{tpu_custom_call.1} parent=5 // pred_check
        _
      $region10: #{tpu_custom_call.1} parent=5 // pred_check_branch
        %297 = sbr.rel (%p294) target = $region12
      $region11: #{tpu_custom_call.1} parent=5 // pred_region
        %s298 = ssub.s32 %s22, 1
        // Predicated region
        $region13: #{tpu_custom_call.1} parent=11 // pred_check
          %p299 = pneg %p69
        $region14: #{tpu_custom_call.1} parent=11 // pred_check_branch
          %301 = sbr.rel (%p299) target = $region16
        $region15: #{tpu_custom_call.1} parent=11 // pred_region
          %s303 = ssub.s32 2048, 2048
          %304 = vsyncadd [#allocation3], %s303
          %s305 = sshll.u32 [#allocation2], 4
          %s306 = int_to_ptr.vmem [resolvable:$true] %s305
          %311 = dma.hbm_to_vmem [thread:$0]  %s1, 2048, %s306, [#allocation3], 1024, 1024, 64
        $region16: #{tpu_custom_call.1} parent=11 // pred_fallthru
          _
        // Predicated region
        $region17: #{tpu_custom_call.1} parent=11 // pred_check
          %p312 = pneg %p90
        $region18: #{tpu_custom_call.1} parent=11 // pred_check_branch
          %314 = sbr.rel (%p312) target = $region20
        $region19: #{tpu_custom_call.1} parent=11 // pred_region
          _
        $region20: #{tpu_custom_call.1} parent=11 // pred_fallthru
          _
        // Predicated region
        $region21: #{tpu_custom_call.1} parent=11 // pred_check
          %p315 = pneg %p111
        $region22: #{tpu_custom_call.1} parent=11 // pred_check_branch
          %317 = sbr.rel (%p315) target = $region24
        $region23: #{tpu_custom_call.1} parent=11 // pred_region
          _
        $region24: #{tpu_custom_call.1} parent=11 // pred_fallthru
          _
        // Predicated region
        $region25: #{tpu_custom_call.1} parent=11 // pred_check
          %p318 = pneg %p132
        $region26: #{tpu_custom_call.1} parent=11 // pred_check_branch
          %320 = sbr.rel (%p318) target = $region28
        $region27: #{tpu_custom_call.1} parent=11 // pred_region
          _
        $region28: #{tpu_custom_call.1} parent=11 // pred_fallthru
          _
        // Predicated region
        $region29: #{tpu_custom_call.1} parent=11 // pred_check
          %p321 = pneg %p153
        $region30: #{tpu_custom_call.1} parent=11 // pred_check_branch
          %323 = sbr.rel (%p321) target = $region32
        $region31: #{tpu_custom_call.1} parent=11 // pred_region
          %s325 = ssub.s32 6144, 6144
          %326 = vsyncadd [#allocation6], %s325
          %s327 = sshll.u32 [#allocation5], 4
          %s328 = int_to_ptr.vmem [resolvable:$true] %s327
          %333 = dma.hbm_to_vmem [thread:$0]  %s5, 6144, %s328, [#allocation6], 128, 128, 8
        $region32: #{tpu_custom_call.1} parent=11 // pred_fallthru
          _
        // Predicated region
        $region33: #{tpu_custom_call.1} parent=11 // pred_check
          %p334 = pneg %p174
        $region34: #{tpu_custom_call.1} parent=11 // pred_check_branch
          %336 = sbr.rel (%p334) target = $region36
        $region35: #{tpu_custom_call.1} parent=11 // pred_region
          _
        $region36: #{tpu_custom_call.1} parent=11 // pred_fallthru
          _
        // Predicated region
        $region37: #{tpu_custom_call.1} parent=11 // pred_check
          %p337 = pneg %p195
        $region38: #{tpu_custom_call.1} parent=11 // pred_check_branch
          %339 = sbr.rel (%p337) target = $region40
        $region39: #{tpu_custom_call.1} parent=11 // pred_region
          _
        $region40: #{tpu_custom_call.1} parent=11 // pred_fallthru
          _
        // Predicated region
        $region41: #{tpu_custom_call.1} parent=11 // pred_check
          %p340 = pneg %p216
        $region42: #{tpu_custom_call.1} parent=11 // pred_check_branch
          %342 = sbr.rel (%p340) target = $region44
        $region43: #{tpu_custom_call.1} parent=11 // pred_region
          _
        $region44: #{tpu_custom_call.1} parent=11 // pred_fallthru
          _
        // Predicated region
        $region45: #{tpu_custom_call.1} parent=11 // pred_check
          %p343 = pneg %p237
        $region46: #{tpu_custom_call.1} parent=11 // pred_check_branch
          %345 = sbr.rel (%p343) target = $region48
        $region47: #{tpu_custom_call.1} parent=11 // pred_region
          %s347 = ssub.s32 8192, 8192
          %348 = vsyncadd [#allocation6], %s347
          %s349 = sshll.u32 [#allocation7], 4
          %s350 = int_to_ptr.vmem [resolvable:$true] %s349
          %355 = dma.hbm_to_vmem [thread:$0]  %s9, 8192, %s350, [#allocation6], 64, 64, 4
        $region48: #{tpu_custom_call.1} parent=11 // pred_fallthru
          _
        // Predicated region
        $region49: #{tpu_custom_call.1} parent=11 // pred_check
          %p356 = pneg %p258
        $region50: #{tpu_custom_call.1} parent=11 // pred_check_branch
          %358 = sbr.rel (%p356) target = $region52
        $region51: #{tpu_custom_call.1} parent=11 // pred_region
          _
        $region52: #{tpu_custom_call.1} parent=11 // pred_fallthru
          _
      $region12: #{tpu_custom_call.1} parent=5 // pred_fallthru
        _
      %p359 = scmp.lt.s32.totalorder %s22, 2
      // Predicated region
      $region53: #{tpu_custom_call.1} parent=5 // pred_check
        %p360 = pneg %p359
      $region54: #{tpu_custom_call.1} parent=5 // pred_check_branch
        %362 = sbr.rel (%p360) target = $region56
      $region55: #{tpu_custom_call.1} parent=5 // pred_region
        // Predicated region
        $region57: #{tpu_custom_call.1} parent=55 // pred_check
          %p363 = pneg %p42
        $region58: #{tpu_custom_call.1} parent=55 // pred_check_branch
          %365 = sbr.rel (%p363) target = $region60
        $region59: #{tpu_custom_call.1} parent=55 // pred_region
          %s366 = smul.u32 4, %s22
          %p367 = scmp.lt.s32.totalorder %s366, 7
          %s368 = scalar_select %p367, %s366, 7
          %s369 = smul.addr %s368, 8
          %s370 = scalar_lea.vmem %s0, %s369
          %s371 = smul.u32 4, %s22
        $region60: #{tpu_custom_call.1} parent=55 // pred_fallthru
          _
      $region56: #{tpu_custom_call.1} parent=5 // pred_fallthru
        _
      %p372 = scmp.le.s32.totalorder 1, %s22
      %p373 = scmp.lt.s32.totalorder %s22, 3
      %p374 = pnand %p372, %p373
      %p375 = pneg %p374
      // Predicated region
      $region61: #{tpu_custom_call.1} parent=5 // pred_check
        _
      $region62: #{tpu_custom_call.1} parent=5 // pred_check_branch
        %377 = sbr.rel (%p374) target = $region64
      $region63: #{tpu_custom_call.1} parent=5 // pred_region
        %s378 = ssub.s32 %s22, 1
        // Predicated region
        $region65: #{tpu_custom_call.1} parent=63 // pred_check
          %p379 = pneg %p69
        $region66: #{tpu_custom_call.1} parent=63 // pred_check_branch
          %381 = sbr.rel (%p379) target = $region68
        $region67: #{tpu_custom_call.1} parent=63 // pred_region
          %382 = dma.done [#allocation3], 2048
        $region68: #{tpu_custom_call.1} parent=63 // pred_fallthru
          _
        // Predicated region
        $region69: #{tpu_custom_call.1} parent=63 // pred_check
          %p383 = pneg %p153
        $region70: #{tpu_custom_call.1} parent=63 // pred_check_branch
          %385 = sbr.rel (%p383) target = $region72
        $region71: #{tpu_custom_call.1} parent=63 // pred_region
          %386 = dma.done [#allocation6], 6144
        $region72: #{tpu_custom_call.1} parent=63 // pred_fallthru
          _
        // Predicated region
        $region73: #{tpu_custom_call.1} parent=63 // pred_check
          %p387 = pneg %p237
        $region74: #{tpu_custom_call.1} parent=63 // pred_check_branch
          %389 = sbr.rel (%p387) target = $region76
        $region75: #{tpu_custom_call.1} parent=63 // pred_region
          %390 = dma.done [#allocation6], 8192
        $region76: #{tpu_custom_call.1} parent=63 // pred_fallthru
          _
        %s391 = smul.u32 4, %s27
        %p392 = scmp.lt.s32.totalorder %s391, 7
        %s393 = scalar_select %p392, %s391, 7
        %s394 = smul.addr %s393, 8
        %s395 = scalar_lea.vmem %s0, %s394
        %p396 = pneg %p48
        %p397 = pneg %p45
        %p398 = pneg %p69
        %p399 = pneg %p66
        %p400 = pneg %p90
        %p401 = pneg %p87
        %p402 = pneg %p111
        %p403 = pneg %p108
        %p404 = pneg %p132
        %p405 = pneg %p129
        %p406 = pneg %p153
        %p407 = pneg %p150
        %p408 = pneg %p174
        %p409 = pneg %p171
        %p410 = pneg %p195
        %p411 = pneg %p192
        %p412 = pneg %p216
        %p413 = pneg %p213
        %p414 = pneg %p237
        %p415 = pneg %p234
        %p416 = pneg %p258
        %p417 = pneg %p255
        %p418 = pneg %p284
        %p419 = pneg %p281
        %s420 = sand.u32 %s271, 1
        %s421 = scalar_lea.sflag [#allocation4], %s420
        %s422 = sand.u32 %s271, 1
        %s423 = smul.addr %s422, 32
        %s424 = scalar_lea.vmem [#allocation8], %s423
        %s425 = smul.u32 4, %s27
        %p426 = scmp.lt.s32.totalorder %s425, 7
        %s427 = scalar_select %p426, %s425, 7
        %s428 = smul.addr %s427, 8
        %s429 = scalar_lea.vmem %s0, %s428
        %s430 = smul.u32 4, %s27
        %s431 = smul.u32 4, %s27
        %v433 = vld [vmem:[%s429] sm:$0xff]
        %v434 = vld [vmem:[%s429 + $0x8] sm:$0xff]
        %v435 = vld [vmem:[%s429 + $0x10] sm:$0xff]
        %v436 = vld [vmem:[%s429 + $0x18] sm:$0xff]
        %v437 = vpack.c.bf16 %v434, %v433
        %v438 = vpack.c.bf16 %v436, %v435
        %v439 = vld [vmem:[#allocation2] sm:$0xff]
        %v440 = vld [vmem:[#allocation2 + $0x8] sm:$0xff]
        %v441 = vld [vmem:[#allocation2 + $0x10] sm:$0xff]
        %v442 = vld [vmem:[#allocation2 + $0x18] sm:$0xff]
        %v443 = vld [vmem:[#allocation2 + $0x20] sm:$0xff]
        %v444 = vld [vmem:[#allocation2 + $0x28] sm:$0xff]
        %v445 = vld [vmem:[#allocation2 + $0x30] sm:$0xff]
        %v446 = vld [vmem:[#allocation2 + $0x38] sm:$0xff]
        %v447 = vld [vmem:[#allocation2 + $0x40] sm:$0xff]
        %v448 = vld [vmem:[#allocation2 + $0x48] sm:$0xff]
        %v449 = vld [vmem:[#allocation2 + $0x50] sm:$0xff]
        %v450 = vld [vmem:[#allocation2 + $0x58] sm:$0xff]
        %v451 = vld [vmem:[#allocation2 + $0x60] sm:$0xff]
        %v452 = vld [vmem:[#allocation2 + $0x68] sm:$0xff]
        %v453 = vld [vmem:[#allocation2 + $0x70] sm:$0xff]
        %v454 = vld [vmem:[#allocation2 + $0x78] sm:$0xff]
        %v455 = vld [vmem:[%s2] sm:$0xff]
        %v456 = vld [vmem:[%s2 + $0x8] sm:$0xff]
        %v459 = vlaneseq
        %v460 = vshrl.u32 %v459, 7
        %v461 = vsub.s32 0, %v460
        %v462 = vrot.slane %v455, %v461
        %v463 = vlaneseq
        %v464 = vshrl.u32 %v463, 7
        %v465 = vsub.s32 1, %v464
        %v466 = vrot.slane %v455, %v465
        %v467 = vlaneseq
        %v468 = vshrl.u32 %v467, 7
        %v469 = vsub.s32 2, %v468
        %v470 = vrot.slane %v455, %v469
        %v471 = vlaneseq
        %v472 = vshrl.u32 %v471, 7
        %v473 = vsub.s32 3, %v472
        %v474 = vrot.slane %v455, %v473
        %v475 = vlaneseq
        %v476 = vshrl.u32 %v475, 7
        %v477 = vsub.s32 4, %v476
        %v478 = vrot.slane %v455, %v477
        %v479 = vlaneseq
        %v480 = vshrl.u32 %v479, 7
        %v481 = vsub.s32 5, %v480
        %v482 = vrot.slane %v455, %v481
        %v483 = vlaneseq
        %v484 = vshrl.u32 %v483, 7
        %v485 = vsub.s32 6, %v484
        %v486 = vrot.slane %v455, %v485
        %v487 = vlaneseq
        %v488 = vshrl.u32 %v487, 7
        %v489 = vsub.s32 7, %v488
        %v490 = vrot.slane %v455, %v489
        %v491 = vlaneseq
        %v492 = vshrl.u32 %v491, 7
        %v493 = vsub.s32 0, %v492
        %v494 = vrot.slane %v456, %v493
        %v495 = vlaneseq
        %v496 = vshrl.u32 %v495, 7
        %v497 = vsub.s32 1, %v496
        %v498 = vrot.slane %v456, %v497
        %v499 = vlaneseq
        %v500 = vshrl.u32 %v499, 7
        %v501 = vsub.s32 2, %v500
        %v502 = vrot.slane %v456, %v501
        %v503 = vlaneseq
        %v504 = vshrl.u32 %v503, 7
        %v505 = vsub.s32 3, %v504
        %v506 = vrot.slane %v456, %v505
        %v507 = vlaneseq
        %v508 = vshrl.u32 %v507, 7
        %v509 = vsub.s32 4, %v508
        %v510 = vrot.slane %v456, %v509
        %v511 = vlaneseq
        %v512 = vshrl.u32 %v511, 7
        %v513 = vsub.s32 5, %v512
        %v514 = vrot.slane %v456, %v513
        %v515 = vlaneseq
        %v516 = vshrl.u32 %v515, 7
        %v517 = vsub.s32 6, %v516
        %v518 = vrot.slane %v456, %v517
        %v519 = vlaneseq
        %v520 = vshrl.u32 %v519, 7
        %v521 = vsub.s32 7, %v520
        %v522 = vrot.slane %v456, %v521
        %v555 = vunpack.c.l.b16 %v439
        %v556 = vunpack.c.h.b16 %v439
        %v557 = vunpack.c.l.b16 %v440
        %v558 = vunpack.c.h.b16 %v440
        %v559 = vunpack.c.l.b16 %v441
        %v560 = vunpack.c.h.b16 %v441
        %v561 = vunpack.c.l.b16 %v442
        %v562 = vunpack.c.h.b16 %v442
        %v563 = vunpack.c.l.b16 %v443
        %v564 = vunpack.c.h.b16 %v443
        %v565 = vunpack.c.l.b16 %v444
        %v566 = vunpack.c.h.b16 %v444
        %v567 = vunpack.c.l.b16 %v445
        %v568 = vunpack.c.h.b16 %v445
        %v569 = vunpack.c.l.b16 %v446
        %v570 = vunpack.c.h.b16 %v446
        %v571 = vunpack.c.l.b16 %v447
        %v572 = vunpack.c.h.b16 %v447
        %v573 = vunpack.c.l.b16 %v448
        %v574 = vunpack.c.h.b16 %v448
        %v575 = vunpack.c.l.b16 %v449
        %v576 = vunpack.c.h.b16 %v449
        %v577 = vunpack.c.l.b16 %v450
        %v578 = vunpack.c.h.b16 %v450
        %v579 = vunpack.c.l.b16 %v451
        %v580 = vunpack.c.h.b16 %v451
        %v581 = vunpack.c.l.b16 %v452
        %v582 = vunpack.c.h.b16 %v452
        %v583 = vunpack.c.l.b16 %v453
        %v584 = vunpack.c.h.b16 %v453
        %v585 = vunpack.c.l.b16 %v454
        %v586 = vunpack.c.h.b16 %v454
        %v587 = vpack.c.b16 %v571, %v555
        %v588 = vpack.c.b16 %v572, %v556
        %v589 = vpack.c.b16 %v573, %v557
        %v590 = vpack.c.b16 %v574, %v558
        %v591 = vpack.c.b16 %v575, %v559
        %v592 = vpack.c.b16 %v576, %v560
        %v593 = vpack.c.b16 %v577, %v561
        %v594 = vpack.c.b16 %v578, %v562
        %v595 = vpack.c.b16 %v579, %v563
        %v596 = vpack.c.b16 %v580, %v564
        %v597 = vpack.c.b16 %v581, %v565
        %v598 = vpack.c.b16 %v582, %v566
        %v599 = vpack.c.b16 %v583, %v567
        %v600 = vpack.c.b16 %v584, %v568
        %v601 = vpack.c.b16 %v585, %v569
        %v602 = vpack.c.b16 %v586, %v570
        %vm619 = vcmask 130048
        %v621 = vsel %vm619, %v437, 0
        %v624 = vsel %vm619, %v438, 0
        %626 = vmatprep.subr.bf16.mxu0 0
        %627 = vmatpush1.bf16.msra.mxu0 0
        %628 = vmatprep.subr.bf16.mxu0 0
        %629 = vmatpush1.bf16.msra.mxu0 0
        %630 = vmatprep.subr.bf16.mxu0 0
        %631 = vmatpush1.bf16.msra.mxu0 0
        %632 = vmatprep.subr.bf16.mxu0 0
        %633 = vmatpush1.bf16.msra.mxu0 0
        %634 = vmatprep.subr.bf16.mxu0 0
        %635 = vmatpush1.bf16.msra.mxu0 0
        %636 = vmatprep.subr.bf16.mxu0 0
        %637 = vmatpush1.bf16.msra.mxu0 0
        %638 = vmatprep.subr.bf16.mxu0 0
        %639 = vmatpush1.bf16.msra.mxu0 0
        %640 = vmatprep.subr.bf16.mxu0 %v588
        %641 = vmatpush1.bf16.msra.mxu0 %v587
        %642 = vmatprep.subr.bf16.mxu0 0
        %643 = vmatpush2.bf16.msra.mxu0 0
        %644 = vmatprep.subr.bf16.mxu0 0
        %645 = vmatpush2.bf16.msra.mxu0 0
        %646 = vmatprep.subr.bf16.mxu0 0
        %647 = vmatpush2.bf16.msra.mxu0 0
        %648 = vmatprep.subr.bf16.mxu0 0
        %649 = vmatpush2.bf16.msra.mxu0 0
        %650 = vmatprep.subr.bf16.mxu0 0
        %651 = vmatpush2.bf16.msra.mxu0 0
        %652 = vmatprep.subr.bf16.mxu0 0
        %653 = vmatpush2.bf16.msra.mxu0 0
        %654 = vmatprep.subr.bf16.mxu0 0
        %655 = vmatpush2.bf16.msra.mxu0 0
        %656 = vmatprep.subr.bf16.mxu0 0
        %657 = vmatpush2.bf16.msra.mxu0 0
        %658 = vmatprep.mubr.bf16.mxu0 0
        %659 = vmatmul.mubr.bf16.gmra.mxu0 %v621
        %v660 = vpop.f32.mrf.mxu0
        %v661 = vadd.f32 %v462, %v660
        %v662 = vpop.f32.mrf.mxu0
        %v663 = vadd.f32 %v466, %v662
        %v664 = vpop.f32.mrf.mxu0
        %v665 = vadd.f32 %v462, %v664
        %v666 = vpop.f32.mrf.mxu0
        %v667 = vadd.f32 %v466, %v666
        %668 = vmatprep.mubr.bf16.mxu0 0
        %669 = vmatmul.mubr.bf16.gmra.mxu0 %v624
        %v670 = vpop.f32.mrf.mxu0
        %v671 = vadd.f32 %v462, %v670
        %v672 = vpop.f32.mrf.mxu0
        %v673 = vadd.f32 %v466, %v672
        %v674 = vpop.f32.mrf.mxu0
        %v675 = vadd.f32 %v462, %v674
        %v676 = vpop.f32.mrf.mxu0
        %v677 = vadd.f32 %v466, %v676
        %678 = vdwg.mxu0
        %679 = vmatprep.subr.bf16.mxu0 0
        %680 = vmatpush1.bf16.msra.mxu0 0
        %681 = vmatprep.subr.bf16.mxu0 0
        %682 = vmatpush1.bf16.msra.mxu0 0
        %683 = vmatprep.subr.bf16.mxu0 0
        %684 = vmatpush1.bf16.msra.mxu0 0
        %685 = vmatprep.subr.bf16.mxu0 0
        %686 = vmatpush1.bf16.msra.mxu0 0
        %687 = vmatprep.subr.bf16.mxu0 0
        %688 = vmatpush1.bf16.msra.mxu0 0
        %689 = vmatprep.subr.bf16.mxu0 0
        %690 = vmatpush1.bf16.msra.mxu0 0
        %691 = vmatprep.subr.bf16.mxu0 0
        %692 = vmatpush1.bf16.msra.mxu0 0
        %693 = vmatprep.subr.bf16.mxu0 %v590
        %694 = vmatpush1.bf16.msra.mxu0 %v589
        %695 = vmatprep.subr.bf16.mxu0 0
        %696 = vmatpush2.bf16.msra.mxu0 0
        %697 = vmatprep.subr.bf16.mxu0 0
        %698 = vmatpush2.bf16.msra.mxu0 0
        %699 = vmatprep.subr.bf16.mxu0 0
        %700 = vmatpush2.bf16.msra.mxu0 0
        %701 = vmatprep.subr.bf16.mxu0 0
        %702 = vmatpush2.bf16.msra.mxu0 0
        %703 = vmatprep.subr.bf16.mxu0 0
        %704 = vmatpush2.bf16.msra.mxu0 0
        %705 = vmatprep.subr.bf16.mxu0 0
        %706 = vmatpush2.bf16.msra.mxu0 0
        %707 = vmatprep.subr.bf16.mxu0 0
        %708 = vmatpush2.bf16.msra.mxu0 0
        %709 = vmatprep.subr.bf16.mxu0 0
        %710 = vmatpush2.bf16.msra.mxu0 0
        %711 = vmatprep.mubr.bf16.mxu0 0
        %712 = vmatmul.mubr.bf16.gmra.mxu0 %v621
        %v713 = vpop.f32.mrf.mxu0
        %v714 = vadd.f32 %v470, %v713
        %v715 = vpop.f32.mrf.mxu0
        %v716 = vadd.f32 %v474, %v715
        %v717 = vpop.f32.mrf.mxu0
        %v718 = vadd.f32 %v470, %v717
        %v719 = vpop.f32.mrf.mxu0
        %v720 = vadd.f32 %v474, %v719
        %721 = vmatprep.mubr.bf16.mxu0 0
        %722 = vmatmul.mubr.bf16.gmra.mxu0 %v624
        %v723 = vpop.f32.mrf.mxu0
        %v724 = vadd.f32 %v470, %v723
        %v725 = vpop.f32.mrf.mxu0
        %v726 = vadd.f32 %v474, %v725
        %v727 = vpop.f32.mrf.mxu0
        %v728 = vadd.f32 %v470, %v727
        %v729 = vpop.f32.mrf.mxu0
        %v730 = vadd.f32 %v474, %v729
        %731 = vdwg.mxu0
        %732 = vmatprep.subr.bf16.mxu0 0
        %733 = vmatpush1.bf16.msra.mxu0 0
        %734 = vmatprep.subr.bf16.mxu0 0
        %735 = vmatpush1.bf16.msra.mxu0 0
        %736 = vmatprep.subr.bf16.mxu0 0
        %737 = vmatpush1.bf16.msra.mxu0 0
        %738 = vmatprep.subr.bf16.mxu0 0
        %739 = vmatpush1.bf16.msra.mxu0 0
        %740 = vmatprep.subr.bf16.mxu0 0
        %741 = vmatpush1.bf16.msra.mxu0 0
        %742 = vmatprep.subr.bf16.mxu0 0
        %743 = vmatpush1.bf16.msra.mxu0 0
        %744 = vmatprep.subr.bf16.mxu0 0
        %745 = vmatpush1.bf16.msra.mxu0 0
        %746 = vmatprep.subr.bf16.mxu0 %v592
        %747 = vmatpush1.bf16.msra.mxu0 %v591
        %748 = vmatprep.subr.bf16.mxu0 0
        %749 = vmatpush2.bf16.msra.mxu0 0
        %750 = vmatprep.subr.bf16.mxu0 0
        %751 = vmatpush2.bf16.msra.mxu0 0
        %752 = vmatprep.subr.bf16.mxu0 0
        %753 = vmatpush2.bf16.msra.mxu0 0
        %754 = vmatprep.subr.bf16.mxu0 0
        %755 = vmatpush2.bf16.msra.mxu0 0
        %756 = vmatprep.subr.bf16.mxu0 0
        %757 = vmatpush2.bf16.msra.mxu0 0
        %758 = vmatprep.subr.bf16.mxu0 0
        %759 = vmatpush2.bf16.msra.mxu0 0
        %760 = vmatprep.subr.bf16.mxu0 0
        %761 = vmatpush2.bf16.msra.mxu0 0
        %762 = vmatprep.subr.bf16.mxu0 0
        %763 = vmatpush2.bf16.msra.mxu0 0
        %764 = vmatprep.mubr.bf16.mxu0 0
        %765 = vmatmul.mubr.bf16.gmra.mxu0 %v621
        %v766 = vpop.f32.mrf.mxu0
        %v767 = vadd.f32 %v478, %v766
        %v768 = vpop.f32.mrf.mxu0
        %v769 = vadd.f32 %v482, %v768
        %v770 = vpop.f32.mrf.mxu0
        %v771 = vadd.f32 %v478, %v770
        %v772 = vpop.f32.mrf.mxu0
        %v773 = vadd.f32 %v482, %v772
        %774 = vmatprep.mubr.bf16.mxu0 0
        %775 = vmatmul.mubr.bf16.gmra.mxu0 %v624
        %v776 = vpop.f32.mrf.mxu0
        %v777 = vadd.f32 %v478, %v776
        %v778 = vpop.f32.mrf.mxu0
        %v779 = vadd.f32 %v482, %v778
        %v780 = vpop.f32.mrf.mxu0
        %v781 = vadd.f32 %v478, %v780
        %v782 = vpop.f32.mrf.mxu0
        %v783 = vadd.f32 %v482, %v782
        %784 = vdwg.mxu0
        %785 = vmatprep.subr.bf16.mxu0 0
        %786 = vmatpush1.bf16.msra.mxu0 0
        %787 = vmatprep.subr.bf16.mxu0 0
        %788 = vmatpush1.bf16.msra.mxu0 0
        %789 = vmatprep.subr.bf16.mxu0 0
        %790 = vmatpush1.bf16.msra.mxu0 0
        %791 = vmatprep.subr.bf16.mxu0 0
        %792 = vmatpush1.bf16.msra.mxu0 0
        %793 = vmatprep.subr.bf16.mxu0 0
        %794 = vmatpush1.bf16.msra.mxu0 0
        %795 = vmatprep.subr.bf16.mxu0 0
        %796 = vmatpush1.bf16.msra.mxu0 0
        %797 = vmatprep.subr.bf16.mxu0 0
        %798 = vmatpush1.bf16.msra.mxu0 0
        %799 = vmatprep.subr.bf16.mxu0 %v594
        %800 = vmatpush1.bf16.msra.mxu0 %v593
        %801 = vmatprep.subr.bf16.mxu0 0
        %802 = vmatpush2.bf16.msra.mxu0 0
        %803 = vmatprep.subr.bf16.mxu0 0
        %804 = vmatpush2.bf16.msra.mxu0 0
        %805 = vmatprep.subr.bf16.mxu0 0
        %806 = vmatpush2.bf16.msra.mxu0 0
        %807 = vmatprep.subr.bf16.mxu0 0
        %808 = vmatpush2.bf16.msra.mxu0 0
        %809 = vmatprep.subr.bf16.mxu0 0
        %810 = vmatpush2.bf16.msra.mxu0 0
        %811 = vmatprep.subr.bf16.mxu0 0
        %812 = vmatpush2.bf16.msra.mxu0 0
        %813 = vmatprep.subr.bf16.mxu0 0
        %814 = vmatpush2.bf16.msra.mxu0 0
        %815 = vmatprep.subr.bf16.mxu0 0
        %816 = vmatpush2.bf16.msra.mxu0 0
        %817 = vmatprep.mubr.bf16.mxu0 0
        %818 = vmatmul.mubr.bf16.gmra.mxu0 %v621
        %v819 = vpop.f32.mrf.mxu0
        %v820 = vadd.f32 %v486, %v819
        %v821 = vpop.f32.mrf.mxu0
        %v822 = vadd.f32 %v490, %v821
        %v823 = vpop.f32.mrf.mxu0
        %v824 = vadd.f32 %v486, %v823
        %v825 = vpop.f32.mrf.mxu0
        %v826 = vadd.f32 %v490, %v825
        %827 = vmatprep.mubr.bf16.mxu0 0
        %828 = vmatmul.mubr.bf16.gmra.mxu0 %v624
        %v829 = vpop.f32.mrf.mxu0
        %v830 = vadd.f32 %v486, %v829
        %v831 = vpop.f32.mrf.mxu0
        %v832 = vadd.f32 %v490, %v831
        %v833 = vpop.f32.mrf.mxu0
        %v834 = vadd.f32 %v486, %v833
        %v835 = vpop.f32.mrf.mxu0
        %v836 = vadd.f32 %v490, %v835
        %837 = vdwg.mxu0
        %838 = vmatprep.subr.bf16.mxu0 0
        %839 = vmatpush1.bf16.msra.mxu0 0
        %840 = vmatprep.subr.bf16.mxu0 0
        %841 = vmatpush1.bf16.msra.mxu0 0
        %842 = vmatprep.subr.bf16.mxu0 0
        %843 = vmatpush1.bf16.msra.mxu0 0
        %844 = vmatprep.subr.bf16.mxu0 0
        %845 = vmatpush1.bf16.msra.mxu0 0
        %846 = vmatprep.subr.bf16.mxu0 0
        %847 = vmatpush1.bf16.msra.mxu0 0
        %848 = vmatprep.subr.bf16.mxu0 0
        %849 = vmatpush1.bf16.msra.mxu0 0
        %850 = vmatprep.subr.bf16.mxu0 0
        %851 = vmatpush1.bf16.msra.mxu0 0
        %852 = vmatprep.subr.bf16.mxu0 %v596
        %853 = vmatpush1.bf16.msra.mxu0 %v595
        %854 = vmatprep.subr.bf16.mxu0 0
        %855 = vmatpush2.bf16.msra.mxu0 0
        %856 = vmatprep.subr.bf16.mxu0 0
        %857 = vmatpush2.bf16.msra.mxu0 0
        %858 = vmatprep.subr.bf16.mxu0 0
        %859 = vmatpush2.bf16.msra.mxu0 0
        %860 = vmatprep.subr.bf16.mxu0 0
        %861 = vmatpush2.bf16.msra.mxu0 0
        %862 = vmatprep.subr.bf16.mxu0 0
        %863 = vmatpush2.bf16.msra.mxu0 0
        %864 = vmatprep.subr.bf16.mxu0 0
        %865 = vmatpush2.bf16.msra.mxu0 0
        %866 = vmatprep.subr.bf16.mxu0 0
        %867 = vmatpush2.bf16.msra.mxu0 0
        %868 = vmatprep.subr.bf16.mxu0 0
        %869 = vmatpush2.bf16.msra.mxu0 0
        %870 = vmatprep.mubr.bf16.mxu0 0
        %871 = vmatmul.mubr.bf16.gmra.mxu0 %v621
        %v872 = vpop.f32.mrf.mxu0
        %v873 = vadd.f32 %v494, %v872
        %v874 = vpop.f32.mrf.mxu0
        %v875 = vadd.f32 %v498, %v874
        %v876 = vpop.f32.mrf.mxu0
        %v877 = vadd.f32 %v494, %v876
        %v878 = vpop.f32.mrf.mxu0
        %v879 = vadd.f32 %v498, %v878
        %880 = vmatprep.mubr.bf16.mxu0 0
        %881 = vmatmul.mubr.bf16.gmra.mxu0 %v624
        %v882 = vpop.f32.mrf.mxu0
        %v883 = vadd.f32 %v494, %v882
        %v884 = vpop.f32.mrf.mxu0
        %v885 = vadd.f32 %v498, %v884
        %v886 = vpop.f32.mrf.mxu0
        %v887 = vadd.f32 %v494, %v886
        %v888 = vpop.f32.mrf.mxu0
        %v889 = vadd.f32 %v498, %v888
        %890 = vdwg.mxu0
        %891 = vmatprep.subr.bf16.mxu0 0
        %892 = vmatpush1.bf16.msra.mxu0 0
        %893 = vmatprep.subr.bf16.mxu0 0
        %894 = vmatpush1.bf16.msra.mxu0 0
        %895 = vmatprep.subr.bf16.mxu0 0
        %896 = vmatpush1.bf16.msra.mxu0 0
        %897 = vmatprep.subr.bf16.mxu0 0
        %898 = vmatpush1.bf16.msra.mxu0 0
        %899 = vmatprep.subr.bf16.mxu0 0
        %900 = vmatpush1.bf16.msra.mxu0 0
        %901 = vmatprep.subr.bf16.mxu0 0
        %902 = vmatpush1.bf16.msra.mxu0 0
        %903 = vmatprep.subr.bf16.mxu0 0
        %904 = vmatpush1.bf16.msra.mxu0 0
        %905 = vmatprep.subr.bf16.mxu0 %v598
        %906 = vmatpush1.bf16.msra.mxu0 %v597
        %907 = vmatprep.subr.bf16.mxu0 0
        %908 = vmatpush2.bf16.msra.mxu0 0
        %909 = vmatprep.subr.bf16.mxu0 0
        %910 = vmatpush2.bf16.msra.mxu0 0
        %911 = vmatprep.subr.bf16.mxu0 0
        %912 = vmatpush2.bf16.msra.mxu0 0
        %913 = vmatprep.subr.bf16.mxu0 0
        %914 = vmatpush2.bf16.msra.mxu0 0
        %915 = vmatprep.subr.bf16.mxu0 0
        %916 = vmatpush2.bf16.msra.mxu0 0
        %917 = vmatprep.subr.bf16.mxu0 0
        %918 = vmatpush2.bf16.msra.mxu0 0
        %919 = vmatprep.subr.bf16.mxu0 0
        %920 = vmatpush2.bf16.msra.mxu0 0
        %921 = vmatprep.subr.bf16.mxu0 0
        %922 = vmatpush2.bf16.msra.mxu0 0
        %923 = vmatprep.mubr.bf16.mxu0 0
        %924 = vmatmul.mubr.bf16.gmra.mxu0 %v621
        %v925 = vpop.f32.mrf.mxu0
        %v926 = vadd.f32 %v502, %v925
        %v927 = vpop.f32.mrf.mxu0
        %v928 = vadd.f32 %v506, %v927
        %v929 = vpop.f32.mrf.mxu0
        %v930 = vadd.f32 %v502, %v929
        %v931 = vpop.f32.mrf.mxu0
        %v932 = vadd.f32 %v506, %v931
        %933 = vmatprep.mubr.bf16.mxu0 0
        %934 = vmatmul.mubr.bf16.gmra.mxu0 %v624
        %v935 = vpop.f32.mrf.mxu0
        %v936 = vadd.f32 %v502, %v935
        %v937 = vpop.f32.mrf.mxu0
        %v938 = vadd.f32 %v506, %v937
        %v939 = vpop.f32.mrf.mxu0
        %v940 = vadd.f32 %v502, %v939
        %v941 = vpop.f32.mrf.mxu0
        %v942 = vadd.f32 %v506, %v941
        %943 = vdwg.mxu0
        %944 = vmatprep.subr.bf16.mxu0 0
        %945 = vmatpush1.bf16.msra.mxu0 0
        %946 = vmatprep.subr.bf16.mxu0 0
        %947 = vmatpush1.bf16.msra.mxu0 0
        %948 = vmatprep.subr.bf16.mxu0 0
        %949 = vmatpush1.bf16.msra.mxu0 0
        %950 = vmatprep.subr.bf16.mxu0 0
        %951 = vmatpush1.bf16.msra.mxu0 0
        %952 = vmatprep.subr.bf16.mxu0 0
        %953 = vmatpush1.bf16.msra.mxu0 0
        %954 = vmatprep.subr.bf16.mxu0 0
        %955 = vmatpush1.bf16.msra.mxu0 0
        %956 = vmatprep.subr.bf16.mxu0 0
        %957 = vmatpush1.bf16.msra.mxu0 0
        %958 = vmatprep.subr.bf16.mxu0 %v600
        %959 = vmatpush1.bf16.msra.mxu0 %v599
        %960 = vmatprep.subr.bf16.mxu0 0
        %961 = vmatpush2.bf16.msra.mxu0 0
        %962 = vmatprep.subr.bf16.mxu0 0
        %963 = vmatpush2.bf16.msra.mxu0 0
        %964 = vmatprep.subr.bf16.mxu0 0
        %965 = vmatpush2.bf16.msra.mxu0 0
        %966 = vmatprep.subr.bf16.mxu0 0
        %967 = vmatpush2.bf16.msra.mxu0 0
        %968 = vmatprep.subr.bf16.mxu0 0
        %969 = vmatpush2.bf16.msra.mxu0 0
        %970 = vmatprep.subr.bf16.mxu0 0
        %971 = vmatpush2.bf16.msra.mxu0 0
        %972 = vmatprep.subr.bf16.mxu0 0
        %973 = vmatpush2.bf16.msra.mxu0 0
        %974 = vmatprep.subr.bf16.mxu0 0
        %975 = vmatpush2.bf16.msra.mxu0 0
        %976 = vmatprep.mubr.bf16.mxu0 0
        %977 = vmatmul.mubr.bf16.gmra.mxu0 %v621
        %v978 = vpop.f32.mrf.mxu0
        %v979 = vadd.f32 %v510, %v978
        %v980 = vpop.f32.mrf.mxu0
        %v981 = vadd.f32 %v514, %v980
        %v982 = vpop.f32.mrf.mxu0
        %v983 = vadd.f32 %v510, %v982
        %v984 = vpop.f32.mrf.mxu0
        %v985 = vadd.f32 %v514, %v984
        %986 = vmatprep.mubr.bf16.mxu0 0
        %987 = vmatmul.mubr.bf16.gmra.mxu0 %v624
        %v988 = vpop.f32.mrf.mxu0
        %v989 = vadd.f32 %v510, %v988
        %v990 = vpop.f32.mrf.mxu0
        %v991 = vadd.f32 %v514, %v990
        %v992 = vpop.f32.mrf.mxu0
        %v993 = vadd.f32 %v510, %v992
        %v994 = vpop.f32.mrf.mxu0
        %v995 = vadd.f32 %v514, %v994
        %996 = vdwg.mxu0
        %997 = vmatprep.subr.bf16.mxu0 0
        %998 = vmatpush1.bf16.msra.mxu0 0
        %999 = vmatprep.subr.bf16.mxu0 0
        %1000 = vmatpush1.bf16.msra.mxu0 0
        %1001 = vmatprep.subr.bf16.mxu0 0
        %1002 = vmatpush1.bf16.msra.mxu0 0
        %1003 = vmatprep.subr.bf16.mxu0 0
        %1004 = vmatpush1.bf16.msra.mxu0 0
        %1005 = vmatprep.subr.bf16.mxu0 0
        %1006 = vmatpush1.bf16.msra.mxu0 0
        %1007 = vmatprep.subr.bf16.mxu0 0
        %1008 = vmatpush1.bf16.msra.mxu0 0
        %1009 = vmatprep.subr.bf16.mxu0 0
        %1010 = vmatpush1.bf16.msra.mxu0 0
        %1011 = vmatprep.subr.bf16.mxu0 %v602
        %1012 = vmatpush1.bf16.msra.mxu0 %v601
        %1013 = vmatprep.subr.bf16.mxu0 0
        %1014 = vmatpush2.bf16.msra.mxu0 0
        %1015 = vmatprep.subr.bf16.mxu0 0
        %1016 = vmatpush2.bf16.msra.mxu0 0
        %1017 = vmatprep.subr.bf16.mxu0 0
        %1018 = vmatpush2.bf16.msra.mxu0 0
        %1019 = vmatprep.subr.bf16.mxu0 0
        %1020 = vmatpush2.bf16.msra.mxu0 0
        %1021 = vmatprep.subr.bf16.mxu0 0
        %1022 = vmatpush2.bf16.msra.mxu0 0
        %1023 = vmatprep.subr.bf16.mxu0 0
        %1024 = vmatpush2.bf16.msra.mxu0 0
        %1025 = vmatprep.subr.bf16.mxu0 0
        %1026 = vmatpush2.bf16.msra.mxu0 0
        %1027 = vmatprep.subr.bf16.mxu0 0
        %1028 = vmatpush2.bf16.msra.mxu0 0
        %1029 = vmatprep.mubr.bf16.mxu0 0
        %1030 = vmatmul.mubr.bf16.gmra.mxu0 %v621
        %v1031 = vpop.f32.mrf.mxu0
        %v1032 = vadd.f32 %v518, %v1031
        %v1033 = vpop.f32.mrf.mxu0
        %v1034 = vadd.f32 %v522, %v1033
        %v1035 = vpop.f32.mrf.mxu0
        %v1036 = vadd.f32 %v518, %v1035
        %v1037 = vpop.f32.mrf.mxu0
        %v1038 = vadd.f32 %v522, %v1037
        %1039 = vmatprep.mubr.bf16.mxu0 0
        %1040 = vmatmul.mubr.bf16.gmra.mxu0 %v624
        %v1041 = vpop.f32.mrf.mxu0
        %v1042 = vadd.f32 %v518, %v1041
        %v1043 = vpop.f32.mrf.mxu0
        %v1044 = vadd.f32 %v522, %v1043
        %v1045 = vpop.f32.mrf.mxu0
        %v1046 = vadd.f32 %v518, %v1045
        %v1047 = vpop.f32.mrf.mxu0
        %v1048 = vadd.f32 %v522, %v1047
        %1049 = vdwg.mxu0
        %v1050 = vmax.f32 %v661, 0.0
        %v1051 = vmax.f32 %v663, 0.0
        %v1052 = vmax.f32 %v714, 0.0
        %v1053 = vmax.f32 %v716, 0.0
        %v1054 = vmax.f32 %v767, 0.0
        %v1055 = vmax.f32 %v769, 0.0
        %v1056 = vmax.f32 %v820, 0.0
        %v1057 = vmax.f32 %v822, 0.0
        %v1058 = vmax.f32 %v873, 0.0
        %v1059 = vmax.f32 %v875, 0.0
        %v1060 = vmax.f32 %v926, 0.0
        %v1061 = vmax.f32 %v928, 0.0
        %v1062 = vmax.f32 %v979, 0.0
        %v1063 = vmax.f32 %v981, 0.0
        %v1064 = vmax.f32 %v1032, 0.0
        %v1065 = vmax.f32 %v1034, 0.0
        %v1066 = vmax.f32 %v665, 0.0
        %v1067 = vmax.f32 %v667, 0.0
        %v1068 = vmax.f32 %v718, 0.0
        %v1069 = vmax.f32 %v720, 0.0
        %v1070 = vmax.f32 %v771, 0.0
        %v1071 = vmax.f32 %v773, 0.0
        %v1072 = vmax.f32 %v824, 0.0
        %v1073 = vmax.f32 %v826, 0.0
        %v1074 = vmax.f32 %v877, 0.0
        %v1075 = vmax.f32 %v879, 0.0
        %v1076 = vmax.f32 %v930, 0.0
        %v1077 = vmax.f32 %v932, 0.0
        %v1078 = vmax.f32 %v983, 0.0
        %v1079 = vmax.f32 %v985, 0.0
        %v1080 = vmax.f32 %v1036, 0.0
        %v1081 = vmax.f32 %v1038, 0.0
        %v1082 = vmax.f32 %v671, 0.0
        %v1083 = vmax.f32 %v673, 0.0
        %v1084 = vmax.f32 %v724, 0.0
        %v1085 = vmax.f32 %v726, 0.0
        %v1086 = vmax.f32 %v777, 0.0
        %v1087 = vmax.f32 %v779, 0.0
        %v1088 = vmax.f32 %v830, 0.0
        %v1089 = vmax.f32 %v832, 0.0
        %v1090 = vmax.f32 %v883, 0.0
        %v1091 = vmax.f32 %v885, 0.0
        %v1092 = vmax.f32 %v936, 0.0
        %v1093 = vmax.f32 %v938, 0.0
        %v1094 = vmax.f32 %v989, 0.0
        %v1095 = vmax.f32 %v991, 0.0
        %v1096 = vmax.f32 %v1042, 0.0
        %v1097 = vmax.f32 %v1044, 0.0
        %v1098 = vmax.f32 %v675, 0.0
        %v1099 = vmax.f32 %v677, 0.0
        %v1100 = vmax.f32 %v728, 0.0
        %v1101 = vmax.f32 %v730, 0.0
        %v1102 = vmax.f32 %v781, 0.0
        %v1103 = vmax.f32 %v783, 0.0
        %v1104 = vmax.f32 %v834, 0.0
        %v1105 = vmax.f32 %v836, 0.0
        %v1106 = vmax.f32 %v887, 0.0
        %v1107 = vmax.f32 %v889, 0.0
        %v1108 = vmax.f32 %v940, 0.0
        %v1109 = vmax.f32 %v942, 0.0
        %v1110 = vmax.f32 %v993, 0.0
        %v1111 = vmax.f32 %v995, 0.0
        %v1112 = vmax.f32 %v1046, 0.0
        %v1113 = vmax.f32 %v1048, 0.0
        %v1114 = vld [vmem:[%s3] sm:$0xff]
        %v1115 = vld [vmem:[%s3 + $0x8] sm:$0xff]
        %v1118 = vlaneseq
        %v1119 = vshrl.u32 %v1118, 7
        %v1120 = vsub.s32 0, %v1119
        %v1121 = vrot.slane %v1114, %v1120
        %v1122 = vlaneseq
        %v1123 = vshrl.u32 %v1122, 7
        %v1124 = vsub.s32 1, %v1123
        %v1125 = vrot.slane %v1114, %v1124
        %v1126 = vlaneseq
        %v1127 = vshrl.u32 %v1126, 7
        %v1128 = vsub.s32 2, %v1127
        %v1129 = vrot.slane %v1114, %v1128
        %v1130 = vlaneseq
        %v1131 = vshrl.u32 %v1130, 7
        %v1132 = vsub.s32 3, %v1131
        %v1133 = vrot.slane %v1114, %v1132
        %v1134 = vlaneseq
        %v1135 = vshrl.u32 %v1134, 7
        %v1136 = vsub.s32 4, %v1135
        %v1137 = vrot.slane %v1114, %v1136
        %v1138 = vlaneseq
        %v1139 = vshrl.u32 %v1138, 7
        %v1140 = vsub.s32 5, %v1139
        %v1141 = vrot.slane %v1114, %v1140
        %v1142 = vlaneseq
        %v1143 = vshrl.u32 %v1142, 7
        %v1144 = vsub.s32 6, %v1143
        %v1145 = vrot.slane %v1114, %v1144
        %v1146 = vlaneseq
        %v1147 = vshrl.u32 %v1146, 7
        %v1148 = vsub.s32 7, %v1147
        %v1149 = vrot.slane %v1114, %v1148
        %v1150 = vlaneseq
        %v1151 = vshrl.u32 %v1150, 7
        %v1152 = vsub.s32 0, %v1151
        %v1153 = vrot.slane %v1115, %v1152
        %v1154 = vlaneseq
        %v1155 = vshrl.u32 %v1154, 7
        %v1156 = vsub.s32 1, %v1155
        %v1157 = vrot.slane %v1115, %v1156
        %v1158 = vlaneseq
        %v1159 = vshrl.u32 %v1158, 7
        %v1160 = vsub.s32 2, %v1159
        %v1161 = vrot.slane %v1115, %v1160
        %v1162 = vlaneseq
        %v1163 = vshrl.u32 %v1162, 7
        %v1164 = vsub.s32 3, %v1163
        %v1165 = vrot.slane %v1115, %v1164
        %v1166 = vlaneseq
        %v1167 = vshrl.u32 %v1166, 7
        %v1168 = vsub.s32 4, %v1167
        %v1169 = vrot.slane %v1115, %v1168
        %v1170 = vlaneseq
        %v1171 = vshrl.u32 %v1170, 7
        %v1172 = vsub.s32 5, %v1171
        %v1173 = vrot.slane %v1115, %v1172
        %v1174 = vlaneseq
        %v1175 = vshrl.u32 %v1174, 7
        %v1176 = vsub.s32 6, %v1175
        %v1177 = vrot.slane %v1115, %v1176
        %v1178 = vlaneseq
        %v1179 = vshrl.u32 %v1178, 7
        %v1180 = vsub.s32 7, %v1179
        %v1181 = vrot.slane %v1115, %v1180
        %v1198 = vmul.f32 %v1050, %v1121
        %v1199 = vmul.f32 %v1051, %v1125
        %v1200 = vmul.f32 %v1052, %v1129
        %v1201 = vmul.f32 %v1053, %v1133
        %v1202 = vmul.f32 %v1054, %v1137
        %v1203 = vmul.f32 %v1055, %v1141
        %v1204 = vmul.f32 %v1056, %v1145
        %v1205 = vmul.f32 %v1057, %v1149
        %v1206 = vmul.f32 %v1058, %v1153
        %v1207 = vmul.f32 %v1059, %v1157
        %v1208 = vmul.f32 %v1060, %v1161
        %v1209 = vmul.f32 %v1061, %v1165
        %v1210 = vmul.f32 %v1062, %v1169
        %v1211 = vmul.f32 %v1063, %v1173
        %v1212 = vmul.f32 %v1064, %v1177
        %v1213 = vmul.f32 %v1065, %v1181
        %v1214 = vmul.f32 %v1066, %v1121
        %v1215 = vmul.f32 %v1067, %v1125
        %v1216 = vmul.f32 %v1068, %v1129
        %v1217 = vmul.f32 %v1069, %v1133
        %v1218 = vmul.f32 %v1070, %v1137
        %v1219 = vmul.f32 %v1071, %v1141
        %v1220 = vmul.f32 %v1072, %v1145
        %v1221 = vmul.f32 %v1073, %v1149
        %v1222 = vmul.f32 %v1074, %v1153
        %v1223 = vmul.f32 %v1075, %v1157
        %v1224 = vmul.f32 %v1076, %v1161
        %v1225 = vmul.f32 %v1077, %v1165
        %v1226 = vmul.f32 %v1078, %v1169
        %v1227 = vmul.f32 %v1079, %v1173
        %v1228 = vmul.f32 %v1080, %v1177
        %v1229 = vmul.f32 %v1081, %v1181
        %v1230 = vmul.f32 %v1082, %v1121
        %v1231 = vmul.f32 %v1083, %v1125
        %v1232 = vmul.f32 %v1084, %v1129
        %v1233 = vmul.f32 %v1085, %v1133
        %v1234 = vmul.f32 %v1086, %v1137
        %v1235 = vmul.f32 %v1087, %v1141
        %v1236 = vmul.f32 %v1088, %v1145
        %v1237 = vmul.f32 %v1089, %v1149
        %v1238 = vmul.f32 %v1090, %v1153
        %v1239 = vmul.f32 %v1091, %v1157
        %v1240 = vmul.f32 %v1092, %v1161
        %v1241 = vmul.f32 %v1093, %v1165
        %v1242 = vmul.f32 %v1094, %v1169
        %v1243 = vmul.f32 %v1095, %v1173
        %v1244 = vmul.f32 %v1096, %v1177
        %v1245 = vmul.f32 %v1097, %v1181
        %v1246 = vmul.f32 %v1098, %v1121
        %v1247 = vmul.f32 %v1099, %v1125
        %v1248 = vmul.f32 %v1100, %v1129
        %v1249 = vmul.f32 %v1101, %v1133
        %v1250 = vmul.f32 %v1102, %v1137
        %v1251 = vmul.f32 %v1103, %v1141
        %v1252 = vmul.f32 %v1104, %v1145
        %v1253 = vmul.f32 %v1105, %v1149
        %v1254 = vmul.f32 %v1106, %v1153
        %v1255 = vmul.f32 %v1107, %v1157
        %v1256 = vmul.f32 %v1108, %v1161
        %v1257 = vmul.f32 %v1109, %v1165
        %v1258 = vmul.f32 %v1110, %v1169
        %v1259 = vmul.f32 %v1111, %v1173
        %v1260 = vmul.f32 %v1112, %v1177
        %v1261 = vmul.f32 %v1113, %v1181
        %v1262 = vld [vmem:[%s4] sm:$0xff]
        %v1263 = vld [vmem:[%s4 + $0x8] sm:$0xff]
        %v1266 = vlaneseq
        %v1267 = vshrl.u32 %v1266, 7
        %v1268 = vsub.s32 0, %v1267
        %v1269 = vrot.slane %v1262, %v1268
        %v1270 = vlaneseq
        %v1271 = vshrl.u32 %v1270, 7
        %v1272 = vsub.s32 1, %v1271
        %v1273 = vrot.slane %v1262, %v1272
        %v1274 = vlaneseq
        %v1275 = vshrl.u32 %v1274, 7
        %v1276 = vsub.s32 2, %v1275
        %v1277 = vrot.slane %v1262, %v1276
        %v1278 = vlaneseq
        %v1279 = vshrl.u32 %v1278, 7
        %v1280 = vsub.s32 3, %v1279
        %v1281 = vrot.slane %v1262, %v1280
        %v1282 = vlaneseq
        %v1283 = vshrl.u32 %v1282, 7
        %v1284 = vsub.s32 4, %v1283
        %v1285 = vrot.slane %v1262, %v1284
        %v1286 = vlaneseq
        %v1287 = vshrl.u32 %v1286, 7
        %v1288 = vsub.s32 5, %v1287
        %v1289 = vrot.slane %v1262, %v1288
        %v1290 = vlaneseq
        %v1291 = vshrl.u32 %v1290, 7
        %v1292 = vsub.s32 6, %v1291
        %v1293 = vrot.slane %v1262, %v1292
        %v1294 = vlaneseq
        %v1295 = vshrl.u32 %v1294, 7
        %v1296 = vsub.s32 7, %v1295
        %v1297 = vrot.slane %v1262, %v1296
        %v1298 = vlaneseq
        %v1299 = vshrl.u32 %v1298, 7
        %v1300 = vsub.s32 0, %v1299
        %v1301 = vrot.slane %v1263, %v1300
        %v1302 = vlaneseq
        %v1303 = vshrl.u32 %v1302, 7
        %v1304 = vsub.s32 1, %v1303
        %v1305 = vrot.slane %v1263, %v1304
        %v1306 = vlaneseq
        %v1307 = vshrl.u32 %v1306, 7
        %v1308 = vsub.s32 2, %v1307
        %v1309 = vrot.slane %v1263, %v1308
        %v1310 = vlaneseq
        %v1311 = vshrl.u32 %v1310, 7
        %v1312 = vsub.s32 3, %v1311
        %v1313 = vrot.slane %v1263, %v1312
        %v1314 = vlaneseq
        %v1315 = vshrl.u32 %v1314, 7
        %v1316 = vsub.s32 4, %v1315
        %v1317 = vrot.slane %v1263, %v1316
        %v1318 = vlaneseq
        %v1319 = vshrl.u32 %v1318, 7
        %v1320 = vsub.s32 5, %v1319
        %v1321 = vrot.slane %v1263, %v1320
        %v1322 = vlaneseq
        %v1323 = vshrl.u32 %v1322, 7
        %v1324 = vsub.s32 6, %v1323
        %v1325 = vrot.slane %v1263, %v1324
        %v1326 = vlaneseq
        %v1327 = vshrl.u32 %v1326, 7
        %v1328 = vsub.s32 7, %v1327
        %v1329 = vrot.slane %v1263, %v1328
        %v1346 = vadd.f32 %v1198, %v1269
        %v1347 = vadd.f32 %v1199, %v1273
        %v1348 = vadd.f32 %v1200, %v1277
        %v1349 = vadd.f32 %v1201, %v1281
        %v1350 = vadd.f32 %v1202, %v1285
        %v1351 = vadd.f32 %v1203, %v1289
        %v1352 = vadd.f32 %v1204, %v1293
        %v1353 = vadd.f32 %v1205, %v1297
        %v1354 = vadd.f32 %v1206, %v1301
        %v1355 = vadd.f32 %v1207, %v1305
        %v1356 = vadd.f32 %v1208, %v1309
        %v1357 = vadd.f32 %v1209, %v1313
        %v1358 = vadd.f32 %v1210, %v1317
        %v1359 = vadd.f32 %v1211, %v1321
        %v1360 = vadd.f32 %v1212, %v1325
        %v1361 = vadd.f32 %v1213, %v1329
        %v1362 = vadd.f32 %v1214, %v1269
        %v1363 = vadd.f32 %v1215, %v1273
        %v1364 = vadd.f32 %v1216, %v1277
        %v1365 = vadd.f32 %v1217, %v1281
        %v1366 = vadd.f32 %v1218, %v1285
        %v1367 = vadd.f32 %v1219, %v1289
        %v1368 = vadd.f32 %v1220, %v1293
        %v1369 = vadd.f32 %v1221, %v1297
        %v1370 = vadd.f32 %v1222, %v1301
        %v1371 = vadd.f32 %v1223, %v1305
        %v1372 = vadd.f32 %v1224, %v1309
        %v1373 = vadd.f32 %v1225, %v1313
        %v1374 = vadd.f32 %v1226, %v1317
        %v1375 = vadd.f32 %v1227, %v1321
        %v1376 = vadd.f32 %v1228, %v1325
        %v1377 = vadd.f32 %v1229, %v1329
        %v1378 = vadd.f32 %v1230, %v1269
        %v1379 = vadd.f32 %v1231, %v1273
        %v1380 = vadd.f32 %v1232, %v1277
        %v1381 = vadd.f32 %v1233, %v1281
        %v1382 = vadd.f32 %v1234, %v1285
        %v1383 = vadd.f32 %v1235, %v1289
        %v1384 = vadd.f32 %v1236, %v1293
        %v1385 = vadd.f32 %v1237, %v1297
        %v1386 = vadd.f32 %v1238, %v1301
        %v1387 = vadd.f32 %v1239, %v1305
        %v1388 = vadd.f32 %v1240, %v1309
        %v1389 = vadd.f32 %v1241, %v1313
        %v1390 = vadd.f32 %v1242, %v1317
        %v1391 = vadd.f32 %v1243, %v1321
        %v1392 = vadd.f32 %v1244, %v1325
        %v1393 = vadd.f32 %v1245, %v1329
        %v1394 = vadd.f32 %v1246, %v1269
        %v1395 = vadd.f32 %v1247, %v1273
        %v1396 = vadd.f32 %v1248, %v1277
        %v1397 = vadd.f32 %v1249, %v1281
        %v1398 = vadd.f32 %v1250, %v1285
        %v1399 = vadd.f32 %v1251, %v1289
        %v1400 = vadd.f32 %v1252, %v1293
        %v1401 = vadd.f32 %v1253, %v1297
        %v1402 = vadd.f32 %v1254, %v1301
        %v1403 = vadd.f32 %v1255, %v1305
        %v1404 = vadd.f32 %v1256, %v1309
        %v1405 = vadd.f32 %v1257, %v1313
        %v1406 = vadd.f32 %v1258, %v1317
        %v1407 = vadd.f32 %v1259, %v1321
        %v1408 = vadd.f32 %v1260, %v1325
        %v1409 = vadd.f32 %v1261, %v1329
        %v1410 = vmax.f32 %v1346, %v1347
        %v1411 = vmax.f32 %v1362, %v1363
        %v1412 = vmax.f32 %v1378, %v1379
        %v1413 = vmax.f32 %v1394, %v1395
        %v1414 = vpack.c.bf16 %v1411, %v1410
        %v1415 = vpack.c.bf16 %v1413, %v1412
        %v1416 = vmax.f32 %v1348, %v1349
        %v1417 = vmax.f32 %v1364, %v1365
        %v1418 = vmax.f32 %v1380, %v1381
        %v1419 = vmax.f32 %v1396, %v1397
        %v1420 = vpack.c.bf16 %v1417, %v1416
        %v1421 = vpack.c.bf16 %v1419, %v1418
        %v1422 = vmax.f32 %v1350, %v1351
        %v1423 = vmax.f32 %v1366, %v1367
        %v1424 = vmax.f32 %v1382, %v1383
        %v1425 = vmax.f32 %v1398, %v1399
        %v1426 = vpack.c.bf16 %v1423, %v1422
        %v1427 = vpack.c.bf16 %v1425, %v1424
        %v1428 = vmax.f32 %v1352, %v1353
        %v1429 = vmax.f32 %v1368, %v1369
        %v1430 = vmax.f32 %v1384, %v1385
        %v1431 = vmax.f32 %v1400, %v1401
        %v1432 = vpack.c.bf16 %v1429, %v1428
        %v1433 = vpack.c.bf16 %v1431, %v1430
        %v1434 = vmax.f32 %v1354, %v1355
        %v1435 = vmax.f32 %v1370, %v1371
        %v1436 = vmax.f32 %v1386, %v1387
        %v1437 = vmax.f32 %v1402, %v1403
        %v1438 = vpack.c.bf16 %v1435, %v1434
        %v1439 = vpack.c.bf16 %v1437, %v1436
        %v1440 = vmax.f32 %v1356, %v1357
        %v1441 = vmax.f32 %v1372, %v1373
        %v1442 = vmax.f32 %v1388, %v1389
        %v1443 = vmax.f32 %v1404, %v1405
        %v1444 = vpack.c.bf16 %v1441, %v1440
        %v1445 = vpack.c.bf16 %v1443, %v1442
        %v1446 = vmax.f32 %v1358, %v1359
        %v1447 = vmax.f32 %v1374, %v1375
        %v1448 = vmax.f32 %v1390, %v1391
        %v1449 = vmax.f32 %v1406, %v1407
        %v1450 = vpack.c.bf16 %v1447, %v1446
        %v1451 = vpack.c.bf16 %v1449, %v1448
        %v1452 = vmax.f32 %v1360, %v1361
        %v1453 = vmax.f32 %v1376, %v1377
        %v1454 = vmax.f32 %v1392, %v1393
        %v1455 = vmax.f32 %v1408, %v1409
        %v1456 = vpack.c.bf16 %v1453, %v1452
        %v1457 = vpack.c.bf16 %v1455, %v1454
        %v1458 = vld [vmem:[#allocation5] sm:$0xff]
        %v1459 = vld [vmem:[#allocation5 + $0x8] sm:$0xff]
        %v1460 = vld [vmem:[#allocation5 + $0x10] sm:$0xff]
        %v1461 = vld [vmem:[#allocation5 + $0x18] sm:$0xff]
        %v1462 = vld [vmem:[#allocation5 + $0x20] sm:$0xff]
        %v1463 = vld [vmem:[#allocation5 + $0x28] sm:$0xff]
        %v1464 = vld [vmem:[#allocation5 + $0x30] sm:$0xff]
        %v1465 = vld [vmem:[#allocation5 + $0x38] sm:$0xff]
        %v1466 = vld [vmem:[#allocation5 + $0x40] sm:$0xff]
        %v1467 = vld [vmem:[#allocation5 + $0x48] sm:$0xff]
        %v1468 = vld [vmem:[#allocation5 + $0x50] sm:$0xff]
        %v1469 = vld [vmem:[#allocation5 + $0x58] sm:$0xff]
        %v1470 = vld [vmem:[#allocation5 + $0x60] sm:$0xff]
        %v1471 = vld [vmem:[#allocation5 + $0x68] sm:$0xff]
        %v1472 = vld [vmem:[#allocation5 + $0x70] sm:$0xff]
        %v1473 = vld [vmem:[#allocation5 + $0x78] sm:$0xff]
        %v1474 = vld [vmem:[#allocation5 + $0x80] sm:$0xff]
        %v1475 = vld [vmem:[#allocation5 + $0x88] sm:$0xff]
        %v1476 = vld [vmem:[#allocation5 + $0x90] sm:$0xff]
        %v1477 = vld [vmem:[#allocation5 + $0x98] sm:$0xff]
        %v1478 = vld [vmem:[#allocation5 + $0xa0] sm:$0xff]
        %v1479 = vld [vmem:[#allocation5 + $0xa8] sm:$0xff]
        %v1480 = vld [vmem:[#allocation5 + $0xb0] sm:$0xff]
        %v1481 = vld [vmem:[#allocation5 + $0xb8] sm:$0xff]
        %v1482 = vld [vmem:[#allocation5 + $0xc0] sm:$0xff]
        %v1483 = vld [vmem:[#allocation5 + $0xc8] sm:$0xff]
        %v1484 = vld [vmem:[#allocation5 + $0xd0] sm:$0xff]
        %v1485 = vld [vmem:[#allocation5 + $0xd8] sm:$0xff]
        %v1486 = vld [vmem:[#allocation5 + $0xe0] sm:$0xff]
        %v1487 = vld [vmem:[#allocation5 + $0xe8] sm:$0xff]
        %v1488 = vld [vmem:[#allocation5 + $0xf0] sm:$0xff]
        %v1489 = vld [vmem:[#allocation5 + $0xf8] sm:$0xff]
        %v1490 = vld [vmem:[#allocation5 + $0x100] sm:$0xff]
        %v1491 = vld [vmem:[#allocation5 + $0x108] sm:$0xff]
        %v1492 = vld [vmem:[#allocation5 + $0x110] sm:$0xff]
        %v1493 = vld [vmem:[#allocation5 + $0x118] sm:$0xff]
        %v1494 = vld [vmem:[#allocation5 + $0x120] sm:$0xff]
        %v1495 = vld [vmem:[#allocation5 + $0x128] sm:$0xff]
        %v1496 = vld [vmem:[#allocation5 + $0x130] sm:$0xff]
        %v1497 = vld [vmem:[#allocation5 + $0x138] sm:$0xff]
        %v1498 = vld [vmem:[#allocation5 + $0x140] sm:$0xff]
        %v1499 = vld [vmem:[#allocation5 + $0x148] sm:$0xff]
        %v1500 = vld [vmem:[#allocation5 + $0x150] sm:$0xff]
        %v1501 = vld [vmem:[#allocation5 + $0x158] sm:$0xff]
        %v1502 = vld [vmem:[#allocation5 + $0x160] sm:$0xff]
        %v1503 = vld [vmem:[#allocation5 + $0x168] sm:$0xff]
        %v1504 = vld [vmem:[#allocation5 + $0x170] sm:$0xff]
        %v1505 = vld [vmem:[#allocation5 + $0x178] sm:$0xff]
        %v1506 = vld [vmem:[%s6] sm:$0x3]
        %v1507 = vld [vmem:[%s7] sm:$0x3]
        %v1508 = vld [vmem:[%s8] sm:$0x3]
        %v1510 = vlaneseq
        %v1511 = vshrl.u32 %v1510, 7
        %v1512 = vsub.s32 0, %v1511
        %v1513 = vrot.slane %v1506, %v1512
        %v1514 = vlaneseq
        %v1515 = vshrl.u32 %v1514, 7
        %v1516 = vsub.s32 1, %v1515
        %v1517 = vrot.slane %v1506, %v1516
        %v1568 = vunpack.c.l.b16 %v1458
        %v1569 = vunpack.c.h.b16 %v1458
        %v1570 = vunpack.c.l.b16 %v1459
        %v1571 = vunpack.c.h.b16 %v1459
        %v1572 = vunpack.c.l.b16 %v1460
        %v1573 = vunpack.c.h.b16 %v1460
        %v1574 = vunpack.c.l.b16 %v1461
        %v1575 = vunpack.c.h.b16 %v1461
        %v1576 = vunpack.c.l.b16 %v1462
        %v1577 = vunpack.c.h.b16 %v1462
        %v1578 = vunpack.c.l.b16 %v1463
        %v1579 = vunpack.c.h.b16 %v1463
        %v1580 = vunpack.c.l.b16 %v1464
        %v1581 = vunpack.c.h.b16 %v1464
        %v1582 = vunpack.c.l.b16 %v1465
        %v1583 = vunpack.c.h.b16 %v1465
        %v1584 = vunpack.c.l.b16 %v1466
        %v1585 = vunpack.c.h.b16 %v1466
        %v1586 = vunpack.c.l.b16 %v1467
        %v1587 = vunpack.c.h.b16 %v1467
        %v1588 = vunpack.c.l.b16 %v1468
        %v1589 = vunpack.c.h.b16 %v1468
        %v1590 = vunpack.c.l.b16 %v1469
        %v1591 = vunpack.c.h.b16 %v1469
        %v1592 = vunpack.c.l.b16 %v1470
        %v1593 = vunpack.c.h.b16 %v1470
        %v1594 = vunpack.c.l.b16 %v1471
        %v1595 = vunpack.c.h.b16 %v1471
        %v1596 = vunpack.c.l.b16 %v1472
        %v1597 = vunpack.c.h.b16 %v1472
        %v1598 = vunpack.c.l.b16 %v1473
        %v1599 = vunpack.c.h.b16 %v1473
        %v1600 = vunpack.c.l.b16 %v1474
        %v1601 = vunpack.c.h.b16 %v1474
        %v1602 = vunpack.c.l.b16 %v1475
        %v1603 = vunpack.c.h.b16 %v1475
        %v1604 = vunpack.c.l.b16 %v1476
        %v1605 = vunpack.c.h.b16 %v1476
        %v1606 = vunpack.c.l.b16 %v1477
        %v1607 = vunpack.c.h.b16 %v1477
        %v1608 = vunpack.c.l.b16 %v1478
        %v1609 = vunpack.c.h.b16 %v1478
        %v1610 = vunpack.c.l.b16 %v1479
        %v1611 = vunpack.c.h.b16 %v1479
        %v1612 = vunpack.c.l.b16 %v1480
        %v1613 = vunpack.c.h.b16 %v1480
        %v1614 = vunpack.c.l.b16 %v1481
        %v1615 = vunpack.c.h.b16 %v1481
        %v1616 = vunpack.c.l.b16 %v1482
        %v1617 = vunpack.c.h.b16 %v1482
        %v1618 = vunpack.c.l.b16 %v1483
        %v1619 = vunpack.c.h.b16 %v1483
        %v1620 = vunpack.c.l.b16 %v1484
        %v1621 = vunpack.c.h.b16 %v1484
        %v1622 = vunpack.c.l.b16 %v1485
        %v1623 = vunpack.c.h.b16 %v1485
        %v1624 = vunpack.c.l.b16 %v1486
        %v1625 = vunpack.c.h.b16 %v1486
        %v1626 = vunpack.c.l.b16 %v1487
        %v1627 = vunpack.c.h.b16 %v1487
        %v1628 = vunpack.c.l.b16 %v1488
        %v1629 = vunpack.c.h.b16 %v1488
        %v1630 = vunpack.c.l.b16 %v1489
        %v1631 = vunpack.c.h.b16 %v1489
        %v1632 = vunpack.c.l.b16 %v1490
        %v1633 = vunpack.c.h.b16 %v1490
        %v1634 = vunpack.c.l.b16 %v1491
        %v1635 = vunpack.c.h.b16 %v1491
        %v1636 = vunpack.c.l.b16 %v1492
        %v1637 = vunpack.c.h.b16 %v1492
        %v1638 = vunpack.c.l.b16 %v1493
        %v1639 = vunpack.c.h.b16 %v1493
        %v1640 = vunpack.c.l.b16 %v1494
        %v1641 = vunpack.c.h.b16 %v1494
        %v1642 = vunpack.c.l.b16 %v1495
        %v1643 = vunpack.c.h.b16 %v1495
        %v1644 = vunpack.c.l.b16 %v1496
        %v1645 = vunpack.c.h.b16 %v1496
        %v1646 = vunpack.c.l.b16 %v1497
        %v1647 = vunpack.c.h.b16 %v1497
        %v1648 = vunpack.c.l.b16 %v1498
        %v1649 = vunpack.c.h.b16 %v1498
        %v1650 = vunpack.c.l.b16 %v1499
        %v1651 = vunpack.c.h.b16 %v1499
        %v1652 = vunpack.c.l.b16 %v1500
        %v1653 = vunpack.c.h.b16 %v1500
        %v1654 = vunpack.c.l.b16 %v1501
        %v1655 = vunpack.c.h.b16 %v1501
        %v1656 = vunpack.c.l.b16 %v1502
        %v1657 = vunpack.c.h.b16 %v1502
        %v1658 = vunpack.c.l.b16 %v1503
        %v1659 = vunpack.c.h.b16 %v1503
        %v1660 = vunpack.c.l.b16 %v1504
        %v1661 = vunpack.c.h.b16 %v1504
        %v1662 = vunpack.c.l.b16 %v1505
        %v1663 = vunpack.c.h.b16 %v1505
        %v1664 = vpack.c.b16 %v1570, %v1568
        %v1665 = vpack.c.b16 %v1571, %v1569
        %v1666 = vpack.c.b16 %v1574, %v1572
        %v1667 = vpack.c.b16 %v1575, %v1573
        %v1668 = vpack.c.b16 %v1578, %v1576
        %v1669 = vpack.c.b16 %v1579, %v1577
        %v1670 = vpack.c.b16 %v1582, %v1580
        %v1671 = vpack.c.b16 %v1583, %v1581
        %v1672 = vpack.c.b16 %v1586, %v1584
        %v1673 = vpack.c.b16 %v1587, %v1585
        %v1674 = vpack.c.b16 %v1590, %v1588
        %v1675 = vpack.c.b16 %v1591, %v1589
        %v1676 = vpack.c.b16 %v1594, %v1592
        %v1677 = vpack.c.b16 %v1595, %v1593
        %v1678 = vpack.c.b16 %v1598, %v1596
        %v1679 = vpack.c.b16 %v1599, %v1597
        %v1680 = vpack.c.b16 %v1602, %v1600
        %v1681 = vpack.c.b16 %v1603, %v1601
        %v1682 = vpack.c.b16 %v1606, %v1604
        %v1683 = vpack.c.b16 %v1607, %v1605
        %v1684 = vpack.c.b16 %v1610, %v1608
        %v1685 = vpack.c.b16 %v1611, %v1609
        %v1686 = vpack.c.b16 %v1614, %v1612
        %v1687 = vpack.c.b16 %v1615, %v1613
        %v1688 = vpack.c.b16 %v1618, %v1616
        %v1689 = vpack.c.b16 %v1619, %v1617
        %v1690 = vpack.c.b16 %v1622, %v1620
        %v1691 = vpack.c.b16 %v1623, %v1621
        %v1692 = vpack.c.b16 %v1626, %v1624
        %v1693 = vpack.c.b16 %v1627, %v1625
        %v1694 = vpack.c.b16 %v1630, %v1628
        %v1695 = vpack.c.b16 %v1631, %v1629
        %v1696 = vpack.c.b16 %v1634, %v1632
        %v1697 = vpack.c.b16 %v1635, %v1633
        %v1698 = vpack.c.b16 %v1638, %v1636
        %v1699 = vpack.c.b16 %v1639, %v1637
        %v1700 = vpack.c.b16 %v1642, %v1640
        %v1701 = vpack.c.b16 %v1643, %v1641
        %v1702 = vpack.c.b16 %v1646, %v1644
        %v1703 = vpack.c.b16 %v1647, %v1645
        %v1704 = vpack.c.b16 %v1650, %v1648
        %v1705 = vpack.c.b16 %v1651, %v1649
        %v1706 = vpack.c.b16 %v1654, %v1652
        %v1707 = vpack.c.b16 %v1655, %v1653
        %v1708 = vpack.c.b16 %v1658, %v1656
        %v1709 = vpack.c.b16 %v1659, %v1657
        %v1710 = vpack.c.b16 %v1662, %v1660
        %v1711 = vpack.c.b16 %v1663, %v1661
        %1760 = vmatprep.subr.bf16.mxu0 %v1679
        %1761 = vmatpush1.bf16.msra.mxu0 %v1678
        %1762 = vmatprep.subr.bf16.mxu0 %v1677
        %1763 = vmatpush1.bf16.msra.mxu0 %v1676
        %1764 = vmatprep.subr.bf16.mxu0 %v1675
        %1765 = vmatpush1.bf16.msra.mxu0 %v1674
        %1766 = vmatprep.subr.bf16.mxu0 %v1673
        %1767 = vmatpush1.bf16.msra.mxu0 %v1672
        %1768 = vmatprep.subr.bf16.mxu0 %v1671
        %1769 = vmatpush1.bf16.msra.mxu0 %v1670
        %1770 = vmatprep.subr.bf16.mxu0 %v1669
        %1771 = vmatpush1.bf16.msra.mxu0 %v1668
        %1772 = vmatprep.subr.bf16.mxu0 %v1667
        %1773 = vmatpush1.bf16.msra.mxu0 %v1666
        %1774 = vmatprep.subr.bf16.mxu0 %v1665
        %1775 = vmatpush1.bf16.msra.mxu0 %v1664
        %1776 = vmatprep.subr.bf16.mxu0 %v1695
        %1777 = vmatpush2.bf16.msra.mxu0 %v1694
        %1778 = vmatprep.subr.bf16.mxu0 %v1693
        %1779 = vmatpush2.bf16.msra.mxu0 %v1692
        %1780 = vmatprep.subr.bf16.mxu0 %v1691
        %1781 = vmatpush2.bf16.msra.mxu0 %v1690
        %1782 = vmatprep.subr.bf16.mxu0 %v1689
        %1783 = vmatpush2.bf16.msra.mxu0 %v1688
        %1784 = vmatprep.subr.bf16.mxu0 %v1687
        %1785 = vmatpush2.bf16.msra.mxu0 %v1686
        %1786 = vmatprep.subr.bf16.mxu0 %v1685
        %1787 = vmatpush2.bf16.msra.mxu0 %v1684
        %1788 = vmatprep.subr.bf16.mxu0 %v1683
        %1789 = vmatpush2.bf16.msra.mxu0 %v1682
        %1790 = vmatprep.subr.bf16.mxu0 %v1681
        %1791 = vmatpush2.bf16.msra.mxu0 %v1680
        %1792 = vmatprep.mubr.bf16.mxu0 %v1414
        %1793 = vmatmul.mubr.bf16.gmra.mxu0 0
        %v1794 = vpop.f32.mrf.mxu0
        %v1795 = vadd.f32 %v1513, %v1794
        %v1796 = vpop.f32.mrf.mxu0
        %v1797 = vadd.f32 %v1517, %v1796
        %v1798 = vpop.f32.mrf.mxu0
        %v1799 = vadd.f32 %v1513, %v1798
        %v1800 = vpop.f32.mrf.mxu0
        %v1801 = vadd.f32 %v1517, %v1800
        %1802 = vmatprep.mubr.bf16.mxu0 %v1415
        %1803 = vmatmul.mubr.bf16.gmra.mxu0 0
        %v1804 = vpop.f32.mrf.mxu0
        %v1805 = vadd.f32 %v1513, %v1804
        %v1806 = vpop.f32.mrf.mxu0
        %v1807 = vadd.f32 %v1517, %v1806
        %v1808 = vpop.f32.mrf.mxu0
        %v1809 = vadd.f32 %v1513, %v1808
        %v1810 = vpop.f32.mrf.mxu0
        %v1811 = vadd.f32 %v1517, %v1810
        %1812 = vdwg.mxu0
        %1813 = vmatprep.subr.bf16.mxu0 %v1711
        %1814 = vmatpush1.bf16.msra.mxu0 %v1710
        %1815 = vmatprep.subr.bf16.mxu0 %v1709
        %1816 = vmatpush1.bf16.msra.mxu0 %v1708
        %1817 = vmatprep.subr.bf16.mxu0 %v1707
        %1818 = vmatpush1.bf16.msra.mxu0 %v1706
        %1819 = vmatprep.subr.bf16.mxu0 %v1705
        %1820 = vmatpush1.bf16.msra.mxu0 %v1704
        %1821 = vmatprep.subr.bf16.mxu0 %v1703
        %1822 = vmatpush1.bf16.msra.mxu0 %v1702
        %1823 = vmatprep.subr.bf16.mxu0 %v1701
        %1824 = vmatpush1.bf16.msra.mxu0 %v1700
        %1825 = vmatprep.subr.bf16.mxu0 %v1699
        %1826 = vmatpush1.bf16.msra.mxu0 %v1698
        %1827 = vmatprep.subr.bf16.mxu0 %v1697
        %1828 = vmatpush1.bf16.msra.mxu0 %v1696
        %1829 = vmatprep.subr.bf16.mxu0 0
        %1830 = vmatpush2.bf16.msra.mxu0 0
        %1831 = vmatprep.subr.bf16.mxu0 0
        %1832 = vmatpush2.bf16.msra.mxu0 0
        %1833 = vmatprep.subr.bf16.mxu0 0
        %1834 = vmatpush2.bf16.msra.mxu0 0
        %1835 = vmatprep.subr.bf16.mxu0 0
        %1836 = vmatpush2.bf16.msra.mxu0 0
        %1837 = vmatprep.subr.bf16.mxu0 0
        %1838 = vmatpush2.bf16.msra.mxu0 0
        %1839 = vmatprep.subr.bf16.mxu0 0
        %1840 = vmatpush2.bf16.msra.mxu0 0
        %1841 = vmatprep.subr.bf16.mxu0 0
        %1842 = vmatpush2.bf16.msra.mxu0 0
        %1843 = vmatprep.subr.bf16.mxu0 0
        %1844 = vmatpush2.bf16.msra.mxu0 0
        %1845 = vmatprep.mubr.bf16.mxu0 0
        %1846 = vmatmul.mubr.bf16.gmra.mxu0 %v1420
        %v1847 = vpop.f32.mrf.mxu0
        %v1848 = vadd.f32 %v1795, %v1847
        %v1849 = vpop.f32.mrf.mxu0
        %v1850 = vadd.f32 %v1797, %v1849
        %v1851 = vpop.f32.mrf.mxu0
        %v1852 = vadd.f32 %v1799, %v1851
        %v1853 = vpop.f32.mrf.mxu0
        %v1854 = vadd.f32 %v1801, %v1853
        %1855 = vmatprep.mubr.bf16.mxu0 0
        %1856 = vmatmul.mubr.bf16.gmra.mxu0 %v1421
        %v1857 = vpop.f32.mrf.mxu0
        %v1858 = vadd.f32 %v1805, %v1857
        %v1859 = vpop.f32.mrf.mxu0
        %v1860 = vadd.f32 %v1807, %v1859
        %v1861 = vpop.f32.mrf.mxu0
        %v1862 = vadd.f32 %v1809, %v1861
        %v1863 = vpop.f32.mrf.mxu0
        %v1864 = vadd.f32 %v1811, %v1863
        %1865 = vdwg.mxu0
        %v1866 = vmax.f32 %v1848, 0.0
        %v1867 = vmax.f32 %v1850, 0.0
        %v1868 = vmax.f32 %v1852, 0.0
        %v1869 = vmax.f32 %v1854, 0.0
        %v1870 = vmax.f32 %v1858, 0.0
        %v1871 = vmax.f32 %v1860, 0.0
        %v1872 = vmax.f32 %v1862, 0.0
        %v1873 = vmax.f32 %v1864, 0.0
        %v1875 = vlaneseq
        %v1876 = vshrl.u32 %v1875, 7
        %v1877 = vsub.s32 0, %v1876
        %v1878 = vrot.slane %v1507, %v1877
        %v1879 = vlaneseq
        %v1880 = vshrl.u32 %v1879, 7
        %v1881 = vsub.s32 1, %v1880
        %v1882 = vrot.slane %v1507, %v1881
        %v1885 = vmul.f32 %v1866, %v1878
        %v1886 = vmul.f32 %v1867, %v1882
        %v1887 = vmul.f32 %v1868, %v1878
        %v1888 = vmul.f32 %v1869, %v1882
        %v1889 = vmul.f32 %v1870, %v1878
        %v1890 = vmul.f32 %v1871, %v1882
        %v1891 = vmul.f32 %v1872, %v1878
        %v1892 = vmul.f32 %v1873, %v1882
        %v1894 = vlaneseq
        %v1895 = vshrl.u32 %v1894, 7
        %v1896 = vsub.s32 0, %v1895
        %v1897 = vrot.slane %v1508, %v1896
        %v1898 = vlaneseq
        %v1899 = vshrl.u32 %v1898, 7
        %v1900 = vsub.s32 1, %v1899
        %v1901 = vrot.slane %v1508, %v1900
        %v1904 = vadd.f32 %v1885, %v1897
        %v1905 = vadd.f32 %v1886, %v1901
        %v1906 = vadd.f32 %v1887, %v1897
        %v1907 = vadd.f32 %v1888, %v1901
        %v1908 = vadd.f32 %v1889, %v1897
        %v1909 = vadd.f32 %v1890, %v1901
        %v1910 = vadd.f32 %v1891, %v1897
        %v1911 = vadd.f32 %v1892, %v1901
        %1912 = vmatprep.subr.bf16.mxu0 %v1679
        %1913 = vmatpush1.bf16.msra.mxu0 %v1678
        %1914 = vmatprep.subr.bf16.mxu0 %v1677
        %1915 = vmatpush1.bf16.msra.mxu0 %v1676
        %1916 = vmatprep.subr.bf16.mxu0 %v1675
        %1917 = vmatpush1.bf16.msra.mxu0 %v1674
        %1918 = vmatprep.subr.bf16.mxu0 %v1673
        %1919 = vmatpush1.bf16.msra.mxu0 %v1672
        %1920 = vmatprep.subr.bf16.mxu0 %v1671
        %1921 = vmatpush1.bf16.msra.mxu0 %v1670
        %1922 = vmatprep.subr.bf16.mxu0 %v1669
        %1923 = vmatpush1.bf16.msra.mxu0 %v1668
        %1924 = vmatprep.subr.bf16.mxu0 %v1667
        %1925 = vmatpush1.bf16.msra.mxu0 %v1666
        %1926 = vmatprep.subr.bf16.mxu0 %v1665
        %1927 = vmatpush1.bf16.msra.mxu0 %v1664
        %1928 = vmatprep.subr.bf16.mxu0 %v1695
        %1929 = vmatpush2.bf16.msra.mxu0 %v1694
        %1930 = vmatprep.subr.bf16.mxu0 %v1693
        %1931 = vmatpush2.bf16.msra.mxu0 %v1692
        %1932 = vmatprep.subr.bf16.mxu0 %v1691
        %1933 = vmatpush2.bf16.msra.mxu0 %v1690
        %1934 = vmatprep.subr.bf16.mxu0 %v1689
        %1935 = vmatpush2.bf16.msra.mxu0 %v1688
        %1936 = vmatprep.subr.bf16.mxu0 %v1687
        %1937 = vmatpush2.bf16.msra.mxu0 %v1686
        %1938 = vmatprep.subr.bf16.mxu0 %v1685
        %1939 = vmatpush2.bf16.msra.mxu0 %v1684
        %1940 = vmatprep.subr.bf16.mxu0 %v1683
        %1941 = vmatpush2.bf16.msra.mxu0 %v1682
        %1942 = vmatprep.subr.bf16.mxu0 %v1681
        %1943 = vmatpush2.bf16.msra.mxu0 %v1680
        %1944 = vmatprep.mubr.bf16.mxu0 %v1420
        %1945 = vmatmul.mubr.bf16.gmra.mxu0 %v1414
        %v1946 = vpop.f32.mrf.mxu0
        %v1947 = vadd.f32 %v1513, %v1946
        %v1948 = vpop.f32.mrf.mxu0
        %v1949 = vadd.f32 %v1517, %v1948
        %v1950 = vpop.f32.mrf.mxu0
        %v1951 = vadd.f32 %v1513, %v1950
        %v1952 = vpop.f32.mrf.mxu0
        %v1953 = vadd.f32 %v1517, %v1952
        %1954 = vmatprep.mubr.bf16.mxu0 %v1421
        %1955 = vmatmul.mubr.bf16.gmra.mxu0 %v1415
        %v1956 = vpop.f32.mrf.mxu0
        %v1957 = vadd.f32 %v1513, %v1956
        %v1958 = vpop.f32.mrf.mxu0
        %v1959 = vadd.f32 %v1517, %v1958
        %v1960 = vpop.f32.mrf.mxu0
        %v1961 = vadd.f32 %v1513, %v1960
        %v1962 = vpop.f32.mrf.mxu0
        %v1963 = vadd.f32 %v1517, %v1962
        %1964 = vdwg.mxu0
        %1965 = vmatprep.subr.bf16.mxu0 %v1711
        %1966 = vmatpush1.bf16.msra.mxu0 %v1710
        %1967 = vmatprep.subr.bf16.mxu0 %v1709
        %1968 = vmatpush1.bf16.msra.mxu0 %v1708
        %1969 = vmatprep.subr.bf16.mxu0 %v1707
        %1970 = vmatpush1.bf16.msra.mxu0 %v1706
        %1971 = vmatprep.subr.bf16.mxu0 %v1705
        %1972 = vmatpush1.bf16.msra.mxu0 %v1704
        %1973 = vmatprep.subr.bf16.mxu0 %v1703
        %1974 = vmatpush1.bf16.msra.mxu0 %v1702
        %1975 = vmatprep.subr.bf16.mxu0 %v1701
        %1976 = vmatpush1.bf16.msra.mxu0 %v1700
        %1977 = vmatprep.subr.bf16.mxu0 %v1699
        %1978 = vmatpush1.bf16.msra.mxu0 %v1698
        %1979 = vmatprep.subr.bf16.mxu0 %v1697
        %1980 = vmatpush1.bf16.msra.mxu0 %v1696
        %1981 = vmatprep.subr.bf16.mxu0 0
        %1982 = vmatpush2.bf16.msra.mxu0 0
        %1983 = vmatprep.subr.bf16.mxu0 0
        %1984 = vmatpush2.bf16.msra.mxu0 0
        %1985 = vmatprep.subr.bf16.mxu0 0
        %1986 = vmatpush2.bf16.msra.mxu0 0
        %1987 = vmatprep.subr.bf16.mxu0 0
        %1988 = vmatpush2.bf16.msra.mxu0 0
        %1989 = vmatprep.subr.bf16.mxu0 0
        %1990 = vmatpush2.bf16.msra.mxu0 0
        %1991 = vmatprep.subr.bf16.mxu0 0
        %1992 = vmatpush2.bf16.msra.mxu0 0
        %1993 = vmatprep.subr.bf16.mxu0 0
        %1994 = vmatpush2.bf16.msra.mxu0 0
        %1995 = vmatprep.subr.bf16.mxu0 0
        %1996 = vmatpush2.bf16.msra.mxu0 0
        %1997 = vmatprep.mubr.bf16.mxu0 0
        %1998 = vmatmul.mubr.bf16.gmra.mxu0 %v1426
        %v1999 = vpop.f32.mrf.mxu0
        %v2000 = vadd.f32 %v1947, %v1999
        %v2001 = vpop.f32.mrf.mxu0
        %v2002 = vadd.f32 %v1949, %v2001
        %v2003 = vpop.f32.mrf.mxu0
        %v2004 = vadd.f32 %v1951, %v2003
        %v2005 = vpop.f32.mrf.mxu0
        %v2006 = vadd.f32 %v1953, %v2005
        %2007 = vmatprep.mubr.bf16.mxu0 0
        %2008 = vmatmul.mubr.bf16.gmra.mxu0 %v1427
        %v2009 = vpop.f32.mrf.mxu0
        %v2010 = vadd.f32 %v1957, %v2009
        %v2011 = vpop.f32.mrf.mxu0
        %v2012 = vadd.f32 %v1959, %v2011
        %v2013 = vpop.f32.mrf.mxu0
        %v2014 = vadd.f32 %v1961, %v2013
        %v2015 = vpop.f32.mrf.mxu0
        %v2016 = vadd.f32 %v1963, %v2015
        %2017 = vdwg.mxu0
        %v2018 = vmax.f32 %v2000, 0.0
        %v2019 = vmax.f32 %v2002, 0.0
        %v2020 = vmax.f32 %v2004, 0.0
        %v2021 = vmax.f32 %v2006, 0.0
        %v2022 = vmax.f32 %v2010, 0.0
        %v2023 = vmax.f32 %v2012, 0.0
        %v2024 = vmax.f32 %v2014, 0.0
        %v2025 = vmax.f32 %v2016, 0.0
        %v2026 = vmul.f32 %v2018, %v1878
        %v2027 = vmul.f32 %v2019, %v1882
        %v2028 = vmul.f32 %v2020, %v1878
        %v2029 = vmul.f32 %v2021, %v1882
        %v2030 = vmul.f32 %v2022, %v1878
        %v2031 = vmul.f32 %v2023, %v1882
        %v2032 = vmul.f32 %v2024, %v1878
        %v2033 = vmul.f32 %v2025, %v1882
        %v2034 = vadd.f32 %v2026, %v1897
        %v2035 = vadd.f32 %v2027, %v1901
        %v2036 = vadd.f32 %v2028, %v1897
        %v2037 = vadd.f32 %v2029, %v1901
        %v2038 = vadd.f32 %v2030, %v1897
        %v2039 = vadd.f32 %v2031, %v1901
        %v2040 = vadd.f32 %v2032, %v1897
        %v2041 = vadd.f32 %v2033, %v1901
        %v2042 = vmax.f32 %v1904, %v2034
        %v2043 = vmax.f32 %v1905, %v2035
        %v2044 = vmax.f32 %v1906, %v2036
        %v2045 = vmax.f32 %v1907, %v2037
        %v2046 = vmax.f32 %v1908, %v2038
        %v2047 = vmax.f32 %v1909, %v2039
        %v2048 = vmax.f32 %v1910, %v2040
        %v2049 = vmax.f32 %v1911, %v2041
        %v2050 = vpack.c.bf16 %v2044, %v2042
        %v2051 = vpack.c.bf16 %v2045, %v2043
        %v2052 = vpack.c.bf16 %v2048, %v2046
        %v2053 = vpack.c.bf16 %v2049, %v2047
        %2054 = vmatprep.subr.bf16.mxu0 %v1679
        %2055 = vmatpush1.bf16.msra.mxu0 %v1678
        %2056 = vmatprep.subr.bf16.mxu0 %v1677
        %2057 = vmatpush1.bf16.msra.mxu0 %v1676
        %2058 = vmatprep.subr.bf16.mxu0 %v1675
        %2059 = vmatpush1.bf16.msra.mxu0 %v1674
        %2060 = vmatprep.subr.bf16.mxu0 %v1673
        %2061 = vmatpush1.bf16.msra.mxu0 %v1672
        %2062 = vmatprep.subr.bf16.mxu0 %v1671
        %2063 = vmatpush1.bf16.msra.mxu0 %v1670
        %2064 = vmatprep.subr.bf16.mxu0 %v1669
        %2065 = vmatpush1.bf16.msra.mxu0 %v1668
        %2066 = vmatprep.subr.bf16.mxu0 %v1667
        %2067 = vmatpush1.bf16.msra.mxu0 %v1666
        %2068 = vmatprep.subr.bf16.mxu0 %v1665
        %2069 = vmatpush1.bf16.msra.mxu0 %v1664
        %2070 = vmatprep.subr.bf16.mxu0 %v1695
        %2071 = vmatpush2.bf16.msra.mxu0 %v1694
        %2072 = vmatprep.subr.bf16.mxu0 %v1693
        %2073 = vmatpush2.bf16.msra.mxu0 %v1692
        %2074 = vmatprep.subr.bf16.mxu0 %v1691
        %2075 = vmatpush2.bf16.msra.mxu0 %v1690
        %2076 = vmatprep.subr.bf16.mxu0 %v1689
        %2077 = vmatpush2.bf16.msra.mxu0 %v1688
        %2078 = vmatprep.subr.bf16.mxu0 %v1687
        %2079 = vmatpush2.bf16.msra.mxu0 %v1686
        %2080 = vmatprep.subr.bf16.mxu0 %v1685
        %2081 = vmatpush2.bf16.msra.mxu0 %v1684
        %2082 = vmatprep.subr.bf16.mxu0 %v1683
        %2083 = vmatpush2.bf16.msra.mxu0 %v1682
        %2084 = vmatprep.subr.bf16.mxu0 %v1681
        %2085 = vmatpush2.bf16.msra.mxu0 %v1680
        %2086 = vmatprep.mubr.bf16.mxu0 %v1426
        %2087 = vmatmul.mubr.bf16.gmra.mxu0 %v1420
        %v2088 = vpop.f32.mrf.mxu0
        %v2089 = vadd.f32 %v1513, %v2088
        %v2090 = vpop.f32.mrf.mxu0
        %v2091 = vadd.f32 %v1517, %v2090
        %v2092 = vpop.f32.mrf.mxu0
        %v2093 = vadd.f32 %v1513, %v2092
        %v2094 = vpop.f32.mrf.mxu0
        %v2095 = vadd.f32 %v1517, %v2094
        %2096 = vmatprep.mubr.bf16.mxu0 %v1427
        %2097 = vmatmul.mubr.bf16.gmra.mxu0 %v1421
        %v2098 = vpop.f32.mrf.mxu0
        %v2099 = vadd.f32 %v1513, %v2098
        %v2100 = vpop.f32.mrf.mxu0
        %v2101 = vadd.f32 %v1517, %v2100
        %v2102 = vpop.f32.mrf.mxu0
        %v2103 = vadd.f32 %v1513, %v2102
        %v2104 = vpop.f32.mrf.mxu0
        %v2105 = vadd.f32 %v1517, %v2104
        %2106 = vdwg.mxu0
        %2107 = vmatprep.subr.bf16.mxu0 %v1711
        %2108 = vmatpush1.bf16.msra.mxu0 %v1710
        %2109 = vmatprep.subr.bf16.mxu0 %v1709
        %2110 = vmatpush1.bf16.msra.mxu0 %v1708
        %2111 = vmatprep.subr.bf16.mxu0 %v1707
        %2112 = vmatpush1.bf16.msra.mxu0 %v1706
        %2113 = vmatprep.subr.bf16.mxu0 %v1705
        %2114 = vmatpush1.bf16.msra.mxu0 %v1704
        %2115 = vmatprep.subr.bf16.mxu0 %v1703
        %2116 = vmatpush1.bf16.msra.mxu0 %v1702
        %2117 = vmatprep.subr.bf16.mxu0 %v1701
        %2118 = vmatpush1.bf16.msra.mxu0 %v1700
        %2119 = vmatprep.subr.bf16.mxu0 %v1699
        %2120 = vmatpush1.bf16.msra.mxu0 %v1698
        %2121 = vmatprep.subr.bf16.mxu0 %v1697
        %2122 = vmatpush1.bf16.msra.mxu0 %v1696
        %2123 = vmatprep.subr.bf16.mxu0 0
        %2124 = vmatpush2.bf16.msra.mxu0 0
        %2125 = vmatprep.subr.bf16.mxu0 0
        %2126 = vmatpush2.bf16.msra.mxu0 0
        %2127 = vmatprep.subr.bf16.mxu0 0
        %2128 = vmatpush2.bf16.msra.mxu0 0
        %2129 = vmatprep.subr.bf16.mxu0 0
        %2130 = vmatpush2.bf16.msra.mxu0 0
        %2131 = vmatprep.subr.bf16.mxu0 0
        %2132 = vmatpush2.bf16.msra.mxu0 0
        %2133 = vmatprep.subr.bf16.mxu0 0
        %2134 = vmatpush2.bf16.msra.mxu0 0
        %2135 = vmatprep.subr.bf16.mxu0 0
        %2136 = vmatpush2.bf16.msra.mxu0 0
        %2137 = vmatprep.subr.bf16.mxu0 0
        %2138 = vmatpush2.bf16.msra.mxu0 0
        %2139 = vmatprep.mubr.bf16.mxu0 0
        %2140 = vmatmul.mubr.bf16.gmra.mxu0 %v1432
        %v2141 = vpop.f32.mrf.mxu0
        %v2142 = vadd.f32 %v2089, %v2141
        %v2143 = vpop.f32.mrf.mxu0
        %v2144 = vadd.f32 %v2091, %v2143
        %v2145 = vpop.f32.mrf.mxu0
        %v2146 = vadd.f32 %v2093, %v2145
        %v2147 = vpop.f32.mrf.mxu0
        %v2148 = vadd.f32 %v2095, %v2147
        %2149 = vmatprep.mubr.bf16.mxu0 0
        %2150 = vmatmul.mubr.bf16.gmra.mxu0 %v1433
        %v2151 = vpop.f32.mrf.mxu0
        %v2152 = vadd.f32 %v2099, %v2151
        %v2153 = vpop.f32.mrf.mxu0
        %v2154 = vadd.f32 %v2101, %v2153
        %v2155 = vpop.f32.mrf.mxu0
        %v2156 = vadd.f32 %v2103, %v2155
        %v2157 = vpop.f32.mrf.mxu0
        %v2158 = vadd.f32 %v2105, %v2157
        %2159 = vdwg.mxu0
        %v2160 = vmax.f32 %v2142, 0.0
        %v2161 = vmax.f32 %v2144, 0.0
        %v2162 = vmax.f32 %v2146, 0.0
        %v2163 = vmax.f32 %v2148, 0.0
        %v2164 = vmax.f32 %v2152, 0.0
        %v2165 = vmax.f32 %v2154, 0.0
        %v2166 = vmax.f32 %v2156, 0.0
        %v2167 = vmax.f32 %v2158, 0.0
        %v2168 = vmul.f32 %v2160, %v1878
        %v2169 = vmul.f32 %v2161, %v1882
        %v2170 = vmul.f32 %v2162, %v1878
        %v2171 = vmul.f32 %v2163, %v1882
        %v2172 = vmul.f32 %v2164, %v1878
        %v2173 = vmul.f32 %v2165, %v1882
        %v2174 = vmul.f32 %v2166, %v1878
        %v2175 = vmul.f32 %v2167, %v1882
        %v2176 = vadd.f32 %v2168, %v1897
        %v2177 = vadd.f32 %v2169, %v1901
        %v2178 = vadd.f32 %v2170, %v1897
        %v2179 = vadd.f32 %v2171, %v1901
        %v2180 = vadd.f32 %v2172, %v1897
        %v2181 = vadd.f32 %v2173, %v1901
        %v2182 = vadd.f32 %v2174, %v1897
        %v2183 = vadd.f32 %v2175, %v1901
        %2184 = vmatprep.subr.bf16.mxu0 %v1679
        %2185 = vmatpush1.bf16.msra.mxu0 %v1678
        %2186 = vmatprep.subr.bf16.mxu0 %v1677
        %2187 = vmatpush1.bf16.msra.mxu0 %v1676
        %2188 = vmatprep.subr.bf16.mxu0 %v1675
        %2189 = vmatpush1.bf16.msra.mxu0 %v1674
        %2190 = vmatprep.subr.bf16.mxu0 %v1673
        %2191 = vmatpush1.bf16.msra.mxu0 %v1672
        %2192 = vmatprep.subr.bf16.mxu0 %v1671
        %2193 = vmatpush1.bf16.msra.mxu0 %v1670
        %2194 = vmatprep.subr.bf16.mxu0 %v1669
        %2195 = vmatpush1.bf16.msra.mxu0 %v1668
        %2196 = vmatprep.subr.bf16.mxu0 %v1667
        %2197 = vmatpush1.bf16.msra.mxu0 %v1666
        %2198 = vmatprep.subr.bf16.mxu0 %v1665
        %2199 = vmatpush1.bf16.msra.mxu0 %v1664
        %2200 = vmatprep.subr.bf16.mxu0 %v1695
        %2201 = vmatpush2.bf16.msra.mxu0 %v1694
        %2202 = vmatprep.subr.bf16.mxu0 %v1693
        %2203 = vmatpush2.bf16.msra.mxu0 %v1692
        %2204 = vmatprep.subr.bf16.mxu0 %v1691
        %2205 = vmatpush2.bf16.msra.mxu0 %v1690
        %2206 = vmatprep.subr.bf16.mxu0 %v1689
        %2207 = vmatpush2.bf16.msra.mxu0 %v1688
        %2208 = vmatprep.subr.bf16.mxu0 %v1687
        %2209 = vmatpush2.bf16.msra.mxu0 %v1686
        %2210 = vmatprep.subr.bf16.mxu0 %v1685
        %2211 = vmatpush2.bf16.msra.mxu0 %v1684
        %2212 = vmatprep.subr.bf16.mxu0 %v1683
        %2213 = vmatpush2.bf16.msra.mxu0 %v1682
        %2214 = vmatprep.subr.bf16.mxu0 %v1681
        %2215 = vmatpush2.bf16.msra.mxu0 %v1680
        %2216 = vmatprep.mubr.bf16.mxu0 %v1432
        %2217 = vmatmul.mubr.bf16.gmra.mxu0 %v1426
        %v2218 = vpop.f32.mrf.mxu0
        %v2219 = vadd.f32 %v1513, %v2218
        %v2220 = vpop.f32.mrf.mxu0
        %v2221 = vadd.f32 %v1517, %v2220
        %v2222 = vpop.f32.mrf.mxu0
        %v2223 = vadd.f32 %v1513, %v2222
        %v2224 = vpop.f32.mrf.mxu0
        %v2225 = vadd.f32 %v1517, %v2224
        %2226 = vmatprep.mubr.bf16.mxu0 %v1433
        %2227 = vmatmul.mubr.bf16.gmra.mxu0 %v1427
        %v2228 = vpop.f32.mrf.mxu0
        %v2229 = vadd.f32 %v1513, %v2228
        %v2230 = vpop.f32.mrf.mxu0
        %v2231 = vadd.f32 %v1517, %v2230
        %v2232 = vpop.f32.mrf.mxu0
        %v2233 = vadd.f32 %v1513, %v2232
        %v2234 = vpop.f32.mrf.mxu0
        %v2235 = vadd.f32 %v1517, %v2234
        %2236 = vdwg.mxu0
        %2237 = vmatprep.subr.bf16.mxu0 %v1711
        %2238 = vmatpush1.bf16.msra.mxu0 %v1710
        %2239 = vmatprep.subr.bf16.mxu0 %v1709
        %2240 = vmatpush1.bf16.msra.mxu0 %v1708
        %2241 = vmatprep.subr.bf16.mxu0 %v1707
        %2242 = vmatpush1.bf16.msra.mxu0 %v1706
        %2243 = vmatprep.subr.bf16.mxu0 %v1705
        %2244 = vmatpush1.bf16.msra.mxu0 %v1704
        %2245 = vmatprep.subr.bf16.mxu0 %v1703
        %2246 = vmatpush1.bf16.msra.mxu0 %v1702
        %2247 = vmatprep.subr.bf16.mxu0 %v1701
        %2248 = vmatpush1.bf16.msra.mxu0 %v1700
        %2249 = vmatprep.subr.bf16.mxu0 %v1699
        %2250 = vmatpush1.bf16.msra.mxu0 %v1698
        %2251 = vmatprep.subr.bf16.mxu0 %v1697
        %2252 = vmatpush1.bf16.msra.mxu0 %v1696
        %2253 = vmatprep.subr.bf16.mxu0 0
        %2254 = vmatpush2.bf16.msra.mxu0 0
        %2255 = vmatprep.subr.bf16.mxu0 0
        %2256 = vmatpush2.bf16.msra.mxu0 0
        %2257 = vmatprep.subr.bf16.mxu0 0
        %2258 = vmatpush2.bf16.msra.mxu0 0
        %2259 = vmatprep.subr.bf16.mxu0 0
        %2260 = vmatpush2.bf16.msra.mxu0 0
        %2261 = vmatprep.subr.bf16.mxu0 0
        %2262 = vmatpush2.bf16.msra.mxu0 0
        %2263 = vmatprep.subr.bf16.mxu0 0
        %2264 = vmatpush2.bf16.msra.mxu0 0
        %2265 = vmatprep.subr.bf16.mxu0 0
        %2266 = vmatpush2.bf16.msra.mxu0 0
        %2267 = vmatprep.subr.bf16.mxu0 0
        %2268 = vmatpush2.bf16.msra.mxu0 0
        %2269 = vmatprep.mubr.bf16.mxu0 0
        %2270 = vmatmul.mubr.bf16.gmra.mxu0 %v1438
        %v2271 = vpop.f32.mrf.mxu0
        %v2272 = vadd.f32 %v2219, %v2271
        %v2273 = vpop.f32.mrf.mxu0
        %v2274 = vadd.f32 %v2221, %v2273
        %v2275 = vpop.f32.mrf.mxu0
        %v2276 = vadd.f32 %v2223, %v2275
        %v2277 = vpop.f32.mrf.mxu0
        %v2278 = vadd.f32 %v2225, %v2277
        %2279 = vmatprep.mubr.bf16.mxu0 0
        %2280 = vmatmul.mubr.bf16.gmra.mxu0 %v1439
        %v2281 = vpop.f32.mrf.mxu0
        %v2282 = vadd.f32 %v2229, %v2281
        %v2283 = vpop.f32.mrf.mxu0
        %v2284 = vadd.f32 %v2231, %v2283
        %v2285 = vpop.f32.mrf.mxu0
        %v2286 = vadd.f32 %v2233, %v2285
        %v2287 = vpop.f32.mrf.mxu0
        %v2288 = vadd.f32 %v2235, %v2287
        %2289 = vdwg.mxu0
        %v2290 = vmax.f32 %v2272, 0.0
        %v2291 = vmax.f32 %v2274, 0.0
        %v2292 = vmax.f32 %v2276, 0.0
        %v2293 = vmax.f32 %v2278, 0.0
        %v2294 = vmax.f32 %v2282, 0.0
        %v2295 = vmax.f32 %v2284, 0.0
        %v2296 = vmax.f32 %v2286, 0.0
        %v2297 = vmax.f32 %v2288, 0.0
        %v2298 = vmul.f32 %v2290, %v1878
        %v2299 = vmul.f32 %v2291, %v1882
        %v2300 = vmul.f32 %v2292, %v1878
        %v2301 = vmul.f32 %v2293, %v1882
        %v2302 = vmul.f32 %v2294, %v1878
        %v2303 = vmul.f32 %v2295, %v1882
        %v2304 = vmul.f32 %v2296, %v1878
        %v2305 = vmul.f32 %v2297, %v1882
        %v2306 = vadd.f32 %v2298, %v1897
        %v2307 = vadd.f32 %v2299, %v1901
        %v2308 = vadd.f32 %v2300, %v1897
        %v2309 = vadd.f32 %v2301, %v1901
        %v2310 = vadd.f32 %v2302, %v1897
        %v2311 = vadd.f32 %v2303, %v1901
        %v2312 = vadd.f32 %v2304, %v1897
        %v2313 = vadd.f32 %v2305, %v1901
        %v2314 = vmax.f32 %v2176, %v2306
        %v2315 = vmax.f32 %v2177, %v2307
        %v2316 = vmax.f32 %v2178, %v2308
        %v2317 = vmax.f32 %v2179, %v2309
        %v2318 = vmax.f32 %v2180, %v2310
        %v2319 = vmax.f32 %v2181, %v2311
        %v2320 = vmax.f32 %v2182, %v2312
        %v2321 = vmax.f32 %v2183, %v2313
        %v2322 = vpack.c.bf16 %v2316, %v2314
        %v2323 = vpack.c.bf16 %v2317, %v2315
        %v2324 = vpack.c.bf16 %v2320, %v2318
        %v2325 = vpack.c.bf16 %v2321, %v2319
        %2326 = vmatprep.subr.bf16.mxu0 %v1679
        %2327 = vmatpush1.bf16.msra.mxu0 %v1678
        %2328 = vmatprep.subr.bf16.mxu0 %v1677
        %2329 = vmatpush1.bf16.msra.mxu0 %v1676
        %2330 = vmatprep.subr.bf16.mxu0 %v1675
        %2331 = vmatpush1.bf16.msra.mxu0 %v1674
        %2332 = vmatprep.subr.bf16.mxu0 %v1673
        %2333 = vmatpush1.bf16.msra.mxu0 %v1672
        %2334 = vmatprep.subr.bf16.mxu0 %v1671
        %2335 = vmatpush1.bf16.msra.mxu0 %v1670
        %2336 = vmatprep.subr.bf16.mxu0 %v1669
        %2337 = vmatpush1.bf16.msra.mxu0 %v1668
        %2338 = vmatprep.subr.bf16.mxu0 %v1667
        %2339 = vmatpush1.bf16.msra.mxu0 %v1666
        %2340 = vmatprep.subr.bf16.mxu0 %v1665
        %2341 = vmatpush1.bf16.msra.mxu0 %v1664
        %2342 = vmatprep.subr.bf16.mxu0 %v1695
        %2343 = vmatpush2.bf16.msra.mxu0 %v1694
        %2344 = vmatprep.subr.bf16.mxu0 %v1693
        %2345 = vmatpush2.bf16.msra.mxu0 %v1692
        %2346 = vmatprep.subr.bf16.mxu0 %v1691
        %2347 = vmatpush2.bf16.msra.mxu0 %v1690
        %2348 = vmatprep.subr.bf16.mxu0 %v1689
        %2349 = vmatpush2.bf16.msra.mxu0 %v1688
        %2350 = vmatprep.subr.bf16.mxu0 %v1687
        %2351 = vmatpush2.bf16.msra.mxu0 %v1686
        %2352 = vmatprep.subr.bf16.mxu0 %v1685
        %2353 = vmatpush2.bf16.msra.mxu0 %v1684
        %2354 = vmatprep.subr.bf16.mxu0 %v1683
        %2355 = vmatpush2.bf16.msra.mxu0 %v1682
        %2356 = vmatprep.subr.bf16.mxu0 %v1681
        %2357 = vmatpush2.bf16.msra.mxu0 %v1680
        %2358 = vmatprep.mubr.bf16.mxu0 %v1438
        %2359 = vmatmul.mubr.bf16.gmra.mxu0 %v1432
        %v2360 = vpop.f32.mrf.mxu0
        %v2361 = vadd.f32 %v1513, %v2360
        %v2362 = vpop.f32.mrf.mxu0
        %v2363 = vadd.f32 %v1517, %v2362
        %v2364 = vpop.f32.mrf.mxu0
        %v2365 = vadd.f32 %v1513, %v2364
        %v2366 = vpop.f32.mrf.mxu0
        %v2367 = vadd.f32 %v1517, %v2366
        %2368 = vmatprep.mubr.bf16.mxu0 %v1439
        %2369 = vmatmul.mubr.bf16.gmra.mxu0 %v1433
        %v2370 = vpop.f32.mrf.mxu0
        %v2371 = vadd.f32 %v1513, %v2370
        %v2372 = vpop.f32.mrf.mxu0
        %v2373 = vadd.f32 %v1517, %v2372
        %v2374 = vpop.f32.mrf.mxu0
        %v2375 = vadd.f32 %v1513, %v2374
        %v2376 = vpop.f32.mrf.mxu0
        %v2377 = vadd.f32 %v1517, %v2376
        %2378 = vdwg.mxu0
        %2379 = vmatprep.subr.bf16.mxu0 %v1711
        %2380 = vmatpush1.bf16.msra.mxu0 %v1710
        %2381 = vmatprep.subr.bf16.mxu0 %v1709
        %2382 = vmatpush1.bf16.msra.mxu0 %v1708
        %2383 = vmatprep.subr.bf16.mxu0 %v1707
        %2384 = vmatpush1.bf16.msra.mxu0 %v1706
        %2385 = vmatprep.subr.bf16.mxu0 %v1705
        %2386 = vmatpush1.bf16.msra.mxu0 %v1704
        %2387 = vmatprep.subr.bf16.mxu0 %v1703
        %2388 = vmatpush1.bf16.msra.mxu0 %v1702
        %2389 = vmatprep.subr.bf16.mxu0 %v1701
        %2390 = vmatpush1.bf16.msra.mxu0 %v1700
        %2391 = vmatprep.subr.bf16.mxu0 %v1699
        %2392 = vmatpush1.bf16.msra.mxu0 %v1698
        %2393 = vmatprep.subr.bf16.mxu0 %v1697
        %2394 = vmatpush1.bf16.msra.mxu0 %v1696
        %2395 = vmatprep.subr.bf16.mxu0 0
        %2396 = vmatpush2.bf16.msra.mxu0 0
        %2397 = vmatprep.subr.bf16.mxu0 0
        %2398 = vmatpush2.bf16.msra.mxu0 0
        %2399 = vmatprep.subr.bf16.mxu0 0
        %2400 = vmatpush2.bf16.msra.mxu0 0
        %2401 = vmatprep.subr.bf16.mxu0 0
        %2402 = vmatpush2.bf16.msra.mxu0 0
        %2403 = vmatprep.subr.bf16.mxu0 0
        %2404 = vmatpush2.bf16.msra.mxu0 0
        %2405 = vmatprep.subr.bf16.mxu0 0
        %2406 = vmatpush2.bf16.msra.mxu0 0
        %2407 = vmatprep.subr.bf16.mxu0 0
        %2408 = vmatpush2.bf16.msra.mxu0 0
        %2409 = vmatprep.subr.bf16.mxu0 0
        %2410 = vmatpush2.bf16.msra.mxu0 0
        %2411 = vmatprep.mubr.bf16.mxu0 0
        %2412 = vmatmul.mubr.bf16.gmra.mxu0 %v1444
        %v2413 = vpop.f32.mrf.mxu0
        %v2414 = vadd.f32 %v2361, %v2413
        %v2415 = vpop.f32.mrf.mxu0
        %v2416 = vadd.f32 %v2363, %v2415
        %v2417 = vpop.f32.mrf.mxu0
        %v2418 = vadd.f32 %v2365, %v2417
        %v2419 = vpop.f32.mrf.mxu0
        %v2420 = vadd.f32 %v2367, %v2419
        %2421 = vmatprep.mubr.bf16.mxu0 0
        %2422 = vmatmul.mubr.bf16.gmra.mxu0 %v1445
        %v2423 = vpop.f32.mrf.mxu0
        %v2424 = vadd.f32 %v2371, %v2423
        %v2425 = vpop.f32.mrf.mxu0
        %v2426 = vadd.f32 %v2373, %v2425
        %v2427 = vpop.f32.mrf.mxu0
        %v2428 = vadd.f32 %v2375, %v2427
        %v2429 = vpop.f32.mrf.mxu0
        %v2430 = vadd.f32 %v2377, %v2429
        %2431 = vdwg.mxu0
        %v2432 = vmax.f32 %v2414, 0.0
        %v2433 = vmax.f32 %v2416, 0.0
        %v2434 = vmax.f32 %v2418, 0.0
        %v2435 = vmax.f32 %v2420, 0.0
        %v2436 = vmax.f32 %v2424, 0.0
        %v2437 = vmax.f32 %v2426, 0.0
        %v2438 = vmax.f32 %v2428, 0.0
        %v2439 = vmax.f32 %v2430, 0.0
        %v2440 = vmul.f32 %v2432, %v1878
        %v2441 = vmul.f32 %v2433, %v1882
        %v2442 = vmul.f32 %v2434, %v1878
        %v2443 = vmul.f32 %v2435, %v1882
        %v2444 = vmul.f32 %v2436, %v1878
        %v2445 = vmul.f32 %v2437, %v1882
        %v2446 = vmul.f32 %v2438, %v1878
        %v2447 = vmul.f32 %v2439, %v1882
        %v2448 = vadd.f32 %v2440, %v1897
        %v2449 = vadd.f32 %v2441, %v1901
        %v2450 = vadd.f32 %v2442, %v1897
        %v2451 = vadd.f32 %v2443, %v1901
        %v2452 = vadd.f32 %v2444, %v1897
        %v2453 = vadd.f32 %v2445, %v1901
        %v2454 = vadd.f32 %v2446, %v1897
        %v2455 = vadd.f32 %v2447, %v1901
        %2456 = vmatprep.subr.bf16.mxu0 %v1679
        %2457 = vmatpush1.bf16.msra.mxu0 %v1678
        %2458 = vmatprep.subr.bf16.mxu0 %v1677
        %2459 = vmatpush1.bf16.msra.mxu0 %v1676
        %2460 = vmatprep.subr.bf16.mxu0 %v1675
        %2461 = vmatpush1.bf16.msra.mxu0 %v1674
        %2462 = vmatprep.subr.bf16.mxu0 %v1673
        %2463 = vmatpush1.bf16.msra.mxu0 %v1672
        %2464 = vmatprep.subr.bf16.mxu0 %v1671
        %2465 = vmatpush1.bf16.msra.mxu0 %v1670
        %2466 = vmatprep.subr.bf16.mxu0 %v1669
        %2467 = vmatpush1.bf16.msra.mxu0 %v1668
        %2468 = vmatprep.subr.bf16.mxu0 %v1667
        %2469 = vmatpush1.bf16.msra.mxu0 %v1666
        %2470 = vmatprep.subr.bf16.mxu0 %v1665
        %2471 = vmatpush1.bf16.msra.mxu0 %v1664
        %2472 = vmatprep.subr.bf16.mxu0 %v1695
        %2473 = vmatpush2.bf16.msra.mxu0 %v1694
        %2474 = vmatprep.subr.bf16.mxu0 %v1693
        %2475 = vmatpush2.bf16.msra.mxu0 %v1692
        %2476 = vmatprep.subr.bf16.mxu0 %v1691
        %2477 = vmatpush2.bf16.msra.mxu0 %v1690
        %2478 = vmatprep.subr.bf16.mxu0 %v1689
        %2479 = vmatpush2.bf16.msra.mxu0 %v1688
        %2480 = vmatprep.subr.bf16.mxu0 %v1687
        %2481 = vmatpush2.bf16.msra.mxu0 %v1686
        %2482 = vmatprep.subr.bf16.mxu0 %v1685
        %2483 = vmatpush2.bf16.msra.mxu0 %v1684
        %2484 = vmatprep.subr.bf16.mxu0 %v1683
        %2485 = vmatpush2.bf16.msra.mxu0 %v1682
        %2486 = vmatprep.subr.bf16.mxu0 %v1681
        %2487 = vmatpush2.bf16.msra.mxu0 %v1680
        %2488 = vmatprep.mubr.bf16.mxu0 %v1444
        %2489 = vmatmul.mubr.bf16.gmra.mxu0 %v1438
        %v2490 = vpop.f32.mrf.mxu0
        %v2491 = vadd.f32 %v1513, %v2490
        %v2492 = vpop.f32.mrf.mxu0
        %v2493 = vadd.f32 %v1517, %v2492
        %v2494 = vpop.f32.mrf.mxu0
        %v2495 = vadd.f32 %v1513, %v2494
        %v2496 = vpop.f32.mrf.mxu0
        %v2497 = vadd.f32 %v1517, %v2496
        %2498 = vmatprep.mubr.bf16.mxu0 %v1445
        %2499 = vmatmul.mubr.bf16.gmra.mxu0 %v1439
        %v2500 = vpop.f32.mrf.mxu0
        %v2501 = vadd.f32 %v1513, %v2500
        %v2502 = vpop.f32.mrf.mxu0
        %v2503 = vadd.f32 %v1517, %v2502
        %v2504 = vpop.f32.mrf.mxu0
        %v2505 = vadd.f32 %v1513, %v2504
        %v2506 = vpop.f32.mrf.mxu0
        %v2507 = vadd.f32 %v1517, %v2506
        %2508 = vdwg.mxu0
        %2509 = vmatprep.subr.bf16.mxu0 %v1711
        %2510 = vmatpush1.bf16.msra.mxu0 %v1710
        %2511 = vmatprep.subr.bf16.mxu0 %v1709
        %2512 = vmatpush1.bf16.msra.mxu0 %v1708
        %2513 = vmatprep.subr.bf16.mxu0 %v1707
        %2514 = vmatpush1.bf16.msra.mxu0 %v1706
        %2515 = vmatprep.subr.bf16.mxu0 %v1705
        %2516 = vmatpush1.bf16.msra.mxu0 %v1704
        %2517 = vmatprep.subr.bf16.mxu0 %v1703
        %2518 = vmatpush1.bf16.msra.mxu0 %v1702
        %2519 = vmatprep.subr.bf16.mxu0 %v1701
        %2520 = vmatpush1.bf16.msra.mxu0 %v1700
        %2521 = vmatprep.subr.bf16.mxu0 %v1699
        %2522 = vmatpush1.bf16.msra.mxu0 %v1698
        %2523 = vmatprep.subr.bf16.mxu0 %v1697
        %2524 = vmatpush1.bf16.msra.mxu0 %v1696
        %2525 = vmatprep.subr.bf16.mxu0 0
        %2526 = vmatpush2.bf16.msra.mxu0 0
        %2527 = vmatprep.subr.bf16.mxu0 0
        %2528 = vmatpush2.bf16.msra.mxu0 0
        %2529 = vmatprep.subr.bf16.mxu0 0
        %2530 = vmatpush2.bf16.msra.mxu0 0
        %2531 = vmatprep.subr.bf16.mxu0 0
        %2532 = vmatpush2.bf16.msra.mxu0 0
        %2533 = vmatprep.subr.bf16.mxu0 0
        %2534 = vmatpush2.bf16.msra.mxu0 0
        %2535 = vmatprep.subr.bf16.mxu0 0
        %2536 = vmatpush2.bf16.msra.mxu0 0
        %2537 = vmatprep.subr.bf16.mxu0 0
        %2538 = vmatpush2.bf16.msra.mxu0 0
        %2539 = vmatprep.subr.bf16.mxu0 0
        %2540 = vmatpush2.bf16.msra.mxu0 0
        %2541 = vmatprep.mubr.bf16.mxu0 0
        %2542 = vmatmul.mubr.bf16.gmra.mxu0 %v1450
        %v2543 = vpop.f32.mrf.mxu0
        %v2544 = vadd.f32 %v2491, %v2543
        %v2545 = vpop.f32.mrf.mxu0
        %v2546 = vadd.f32 %v2493, %v2545
        %v2547 = vpop.f32.mrf.mxu0
        %v2548 = vadd.f32 %v2495, %v2547
        %v2549 = vpop.f32.mrf.mxu0
        %v2550 = vadd.f32 %v2497, %v2549
        %2551 = vmatprep.mubr.bf16.mxu0 0
        %2552 = vmatmul.mubr.bf16.gmra.mxu0 %v1451
        %v2553 = vpop.f32.mrf.mxu0
        %v2554 = vadd.f32 %v2501, %v2553
        %v2555 = vpop.f32.mrf.mxu0
        %v2556 = vadd.f32 %v2503, %v2555
        %v2557 = vpop.f32.mrf.mxu0
        %v2558 = vadd.f32 %v2505, %v2557
        %v2559 = vpop.f32.mrf.mxu0
        %v2560 = vadd.f32 %v2507, %v2559
        %2561 = vdwg.mxu0
        %v2562 = vmax.f32 %v2544, 0.0
        %v2563 = vmax.f32 %v2546, 0.0
        %v2564 = vmax.f32 %v2548, 0.0
        %v2565 = vmax.f32 %v2550, 0.0
        %v2566 = vmax.f32 %v2554, 0.0
        %v2567 = vmax.f32 %v2556, 0.0
        %v2568 = vmax.f32 %v2558, 0.0
        %v2569 = vmax.f32 %v2560, 0.0
        %v2570 = vmul.f32 %v2562, %v1878
        %v2571 = vmul.f32 %v2563, %v1882
        %v2572 = vmul.f32 %v2564, %v1878
        %v2573 = vmul.f32 %v2565, %v1882
        %v2574 = vmul.f32 %v2566, %v1878
        %v2575 = vmul.f32 %v2567, %v1882
        %v2576 = vmul.f32 %v2568, %v1878
        %v2577 = vmul.f32 %v2569, %v1882
        %v2578 = vadd.f32 %v2570, %v1897
        %v2579 = vadd.f32 %v2571, %v1901
        %v2580 = vadd.f32 %v2572, %v1897
        %v2581 = vadd.f32 %v2573, %v1901
        %v2582 = vadd.f32 %v2574, %v1897
        %v2583 = vadd.f32 %v2575, %v1901
        %v2584 = vadd.f32 %v2576, %v1897
        %v2585 = vadd.f32 %v2577, %v1901
        %v2586 = vmax.f32 %v2448, %v2578
        %v2587 = vmax.f32 %v2449, %v2579
        %v2588 = vmax.f32 %v2450, %v2580
        %v2589 = vmax.f32 %v2451, %v2581
        %v2590 = vmax.f32 %v2452, %v2582
        %v2591 = vmax.f32 %v2453, %v2583
        %v2592 = vmax.f32 %v2454, %v2584
        %v2593 = vmax.f32 %v2455, %v2585
        %v2594 = vpack.c.bf16 %v2588, %v2586
        %v2595 = vpack.c.bf16 %v2589, %v2587
        %v2596 = vpack.c.bf16 %v2592, %v2590
        %v2597 = vpack.c.bf16 %v2593, %v2591
        %2598 = vmatprep.subr.bf16.mxu0 %v1679
        %2599 = vmatpush1.bf16.msra.mxu0 %v1678
        %2600 = vmatprep.subr.bf16.mxu0 %v1677
        %2601 = vmatpush1.bf16.msra.mxu0 %v1676
        %2602 = vmatprep.subr.bf16.mxu0 %v1675
        %2603 = vmatpush1.bf16.msra.mxu0 %v1674
        %2604 = vmatprep.subr.bf16.mxu0 %v1673
        %2605 = vmatpush1.bf16.msra.mxu0 %v1672
        %2606 = vmatprep.subr.bf16.mxu0 %v1671
        %2607 = vmatpush1.bf16.msra.mxu0 %v1670
        %2608 = vmatprep.subr.bf16.mxu0 %v1669
        %2609 = vmatpush1.bf16.msra.mxu0 %v1668
        %2610 = vmatprep.subr.bf16.mxu0 %v1667
        %2611 = vmatpush1.bf16.msra.mxu0 %v1666
        %2612 = vmatprep.subr.bf16.mxu0 %v1665
        %2613 = vmatpush1.bf16.msra.mxu0 %v1664
        %2614 = vmatprep.subr.bf16.mxu0 %v1695
        %2615 = vmatpush2.bf16.msra.mxu0 %v1694
        %2616 = vmatprep.subr.bf16.mxu0 %v1693
        %2617 = vmatpush2.bf16.msra.mxu0 %v1692
        %2618 = vmatprep.subr.bf16.mxu0 %v1691
        %2619 = vmatpush2.bf16.msra.mxu0 %v1690
        %2620 = vmatprep.subr.bf16.mxu0 %v1689
        %2621 = vmatpush2.bf16.msra.mxu0 %v1688
        %2622 = vmatprep.subr.bf16.mxu0 %v1687
        %2623 = vmatpush2.bf16.msra.mxu0 %v1686
        %2624 = vmatprep.subr.bf16.mxu0 %v1685
        %2625 = vmatpush2.bf16.msra.mxu0 %v1684
        %2626 = vmatprep.subr.bf16.mxu0 %v1683
        %2627 = vmatpush2.bf16.msra.mxu0 %v1682
        %2628 = vmatprep.subr.bf16.mxu0 %v1681
        %2629 = vmatpush2.bf16.msra.mxu0 %v1680
        %2630 = vmatprep.mubr.bf16.mxu0 %v1450
        %2631 = vmatmul.mubr.bf16.gmra.mxu0 %v1444
        %v2632 = vpop.f32.mrf.mxu0
        %v2633 = vadd.f32 %v1513, %v2632
        %v2634 = vpop.f32.mrf.mxu0
        %v2635 = vadd.f32 %v1517, %v2634
        %v2636 = vpop.f32.mrf.mxu0
        %v2637 = vadd.f32 %v1513, %v2636
        %v2638 = vpop.f32.mrf.mxu0
        %v2639 = vadd.f32 %v1517, %v2638
        %2640 = vmatprep.mubr.bf16.mxu0 %v1451
        %2641 = vmatmul.mubr.bf16.gmra.mxu0 %v1445
        %v2642 = vpop.f32.mrf.mxu0
        %v2643 = vadd.f32 %v1513, %v2642
        %v2644 = vpop.f32.mrf.mxu0
        %v2645 = vadd.f32 %v1517, %v2644
        %v2646 = vpop.f32.mrf.mxu0
        %v2647 = vadd.f32 %v1513, %v2646
        %v2648 = vpop.f32.mrf.mxu0
        %v2649 = vadd.f32 %v1517, %v2648
        %2650 = vdwg.mxu0
        %2651 = vmatprep.subr.bf16.mxu0 %v1711
        %2652 = vmatpush1.bf16.msra.mxu0 %v1710
        %2653 = vmatprep.subr.bf16.mxu0 %v1709
        %2654 = vmatpush1.bf16.msra.mxu0 %v1708
        %2655 = vmatprep.subr.bf16.mxu0 %v1707
        %2656 = vmatpush1.bf16.msra.mxu0 %v1706
        %2657 = vmatprep.subr.bf16.mxu0 %v1705
        %2658 = vmatpush1.bf16.msra.mxu0 %v1704
        %2659 = vmatprep.subr.bf16.mxu0 %v1703
        %2660 = vmatpush1.bf16.msra.mxu0 %v1702
        %2661 = vmatprep.subr.bf16.mxu0 %v1701
        %2662 = vmatpush1.bf16.msra.mxu0 %v1700
        %2663 = vmatprep.subr.bf16.mxu0 %v1699
        %2664 = vmatpush1.bf16.msra.mxu0 %v1698
        %2665 = vmatprep.subr.bf16.mxu0 %v1697
        %2666 = vmatpush1.bf16.msra.mxu0 %v1696
        %2667 = vmatprep.subr.bf16.mxu0 0
        %2668 = vmatpush2.bf16.msra.mxu0 0
        %2669 = vmatprep.subr.bf16.mxu0 0
        %2670 = vmatpush2.bf16.msra.mxu0 0
        %2671 = vmatprep.subr.bf16.mxu0 0
        %2672 = vmatpush2.bf16.msra.mxu0 0
        %2673 = vmatprep.subr.bf16.mxu0 0
        %2674 = vmatpush2.bf16.msra.mxu0 0
        %2675 = vmatprep.subr.bf16.mxu0 0
        %2676 = vmatpush2.bf16.msra.mxu0 0
        %2677 = vmatprep.subr.bf16.mxu0 0
        %2678 = vmatpush2.bf16.msra.mxu0 0
        %2679 = vmatprep.subr.bf16.mxu0 0
        %2680 = vmatpush2.bf16.msra.mxu0 0
        %2681 = vmatprep.subr.bf16.mxu0 0
        %2682 = vmatpush2.bf16.msra.mxu0 0
        %2683 = vmatprep.mubr.bf16.mxu0 0
        %2684 = vmatmul.mubr.bf16.gmra.mxu0 %v1456
        %v2685 = vpop.f32.mrf.mxu0
        %v2686 = vadd.f32 %v2633, %v2685
        %v2687 = vpop.f32.mrf.mxu0
        %v2688 = vadd.f32 %v2635, %v2687
        %v2689 = vpop.f32.mrf.mxu0
        %v2690 = vadd.f32 %v2637, %v2689
        %v2691 = vpop.f32.mrf.mxu0
        %v2692 = vadd.f32 %v2639, %v2691
        %2693 = vmatprep.mubr.bf16.mxu0 0
        %2694 = vmatmul.mubr.bf16.gmra.mxu0 %v1457
        %v2695 = vpop.f32.mrf.mxu0
        %v2696 = vadd.f32 %v2643, %v2695
        %v2697 = vpop.f32.mrf.mxu0
        %v2698 = vadd.f32 %v2645, %v2697
        %v2699 = vpop.f32.mrf.mxu0
        %v2700 = vadd.f32 %v2647, %v2699
        %v2701 = vpop.f32.mrf.mxu0
        %v2702 = vadd.f32 %v2649, %v2701
        %2703 = vdwg.mxu0
        %v2704 = vmax.f32 %v2686, 0.0
        %v2705 = vmax.f32 %v2688, 0.0
        %v2706 = vmax.f32 %v2690, 0.0
        %v2707 = vmax.f32 %v2692, 0.0
        %v2708 = vmax.f32 %v2696, 0.0
        %v2709 = vmax.f32 %v2698, 0.0
        %v2710 = vmax.f32 %v2700, 0.0
        %v2711 = vmax.f32 %v2702, 0.0
        %v2712 = vmul.f32 %v2704, %v1878
        %v2713 = vmul.f32 %v2705, %v1882
        %v2714 = vmul.f32 %v2706, %v1878
        %v2715 = vmul.f32 %v2707, %v1882
        %v2716 = vmul.f32 %v2708, %v1878
        %v2717 = vmul.f32 %v2709, %v1882
        %v2718 = vmul.f32 %v2710, %v1878
        %v2719 = vmul.f32 %v2711, %v1882
        %v2720 = vadd.f32 %v2712, %v1897
        %v2721 = vadd.f32 %v2713, %v1901
        %v2722 = vadd.f32 %v2714, %v1897
        %v2723 = vadd.f32 %v2715, %v1901
        %v2724 = vadd.f32 %v2716, %v1897
        %v2725 = vadd.f32 %v2717, %v1901
        %v2726 = vadd.f32 %v2718, %v1897
        %v2727 = vadd.f32 %v2719, %v1901
        %2728 = vmatprep.subr.bf16.mxu0 %v1679
        %2729 = vmatpush1.bf16.msra.mxu0 %v1678
        %2730 = vmatprep.subr.bf16.mxu0 %v1677
        %2731 = vmatpush1.bf16.msra.mxu0 %v1676
        %2732 = vmatprep.subr.bf16.mxu0 %v1675
        %2733 = vmatpush1.bf16.msra.mxu0 %v1674
        %2734 = vmatprep.subr.bf16.mxu0 %v1673
        %2735 = vmatpush1.bf16.msra.mxu0 %v1672
        %2736 = vmatprep.subr.bf16.mxu0 %v1671
        %2737 = vmatpush1.bf16.msra.mxu0 %v1670
        %2738 = vmatprep.subr.bf16.mxu0 %v1669
        %2739 = vmatpush1.bf16.msra.mxu0 %v1668
        %2740 = vmatprep.subr.bf16.mxu0 %v1667
        %2741 = vmatpush1.bf16.msra.mxu0 %v1666
        %2742 = vmatprep.subr.bf16.mxu0 %v1665
        %2743 = vmatpush1.bf16.msra.mxu0 %v1664
        %2744 = vmatprep.subr.bf16.mxu0 %v1695
        %2745 = vmatpush2.bf16.msra.mxu0 %v1694
        %2746 = vmatprep.subr.bf16.mxu0 %v1693
        %2747 = vmatpush2.bf16.msra.mxu0 %v1692
        %2748 = vmatprep.subr.bf16.mxu0 %v1691
        %2749 = vmatpush2.bf16.msra.mxu0 %v1690
        %2750 = vmatprep.subr.bf16.mxu0 %v1689
        %2751 = vmatpush2.bf16.msra.mxu0 %v1688
        %2752 = vmatprep.subr.bf16.mxu0 %v1687
        %2753 = vmatpush2.bf16.msra.mxu0 %v1686
        %2754 = vmatprep.subr.bf16.mxu0 %v1685
        %2755 = vmatpush2.bf16.msra.mxu0 %v1684
        %2756 = vmatprep.subr.bf16.mxu0 %v1683
        %2757 = vmatpush2.bf16.msra.mxu0 %v1682
        %2758 = vmatprep.subr.bf16.mxu0 %v1681
        %2759 = vmatpush2.bf16.msra.mxu0 %v1680
        %2760 = vmatprep.mubr.bf16.mxu0 %v1456
        %2761 = vmatmul.mubr.bf16.gmra.mxu0 %v1450
        %v2762 = vpop.f32.mrf.mxu0
        %v2763 = vadd.f32 %v1513, %v2762
        %v2764 = vpop.f32.mrf.mxu0
        %v2765 = vadd.f32 %v1517, %v2764
        %v2766 = vpop.f32.mrf.mxu0
        %v2767 = vadd.f32 %v1513, %v2766
        %v2768 = vpop.f32.mrf.mxu0
        %v2769 = vadd.f32 %v1517, %v2768
        %2770 = vmatprep.mubr.bf16.mxu0 %v1457
        %2771 = vmatmul.mubr.bf16.gmra.mxu0 %v1451
        %v2772 = vpop.f32.mrf.mxu0
        %v2773 = vadd.f32 %v1513, %v2772
        %v2774 = vpop.f32.mrf.mxu0
        %v2775 = vadd.f32 %v1517, %v2774
        %v2776 = vpop.f32.mrf.mxu0
        %v2777 = vadd.f32 %v1513, %v2776
        %v2778 = vpop.f32.mrf.mxu0
        %v2779 = vadd.f32 %v1517, %v2778
        %2780 = vdwg.mxu0
        %2781 = vmatprep.subr.bf16.mxu0 %v1711
        %2782 = vmatpush1.bf16.msra.mxu0 %v1710
        %2783 = vmatprep.subr.bf16.mxu0 %v1709
        %2784 = vmatpush1.bf16.msra.mxu0 %v1708
        %2785 = vmatprep.subr.bf16.mxu0 %v1707
        %2786 = vmatpush1.bf16.msra.mxu0 %v1706
        %2787 = vmatprep.subr.bf16.mxu0 %v1705
        %2788 = vmatpush1.bf16.msra.mxu0 %v1704
        %2789 = vmatprep.subr.bf16.mxu0 %v1703
        %2790 = vmatpush1.bf16.msra.mxu0 %v1702
        %2791 = vmatprep.subr.bf16.mxu0 %v1701
        %2792 = vmatpush1.bf16.msra.mxu0 %v1700
        %2793 = vmatprep.subr.bf16.mxu0 %v1699
        %2794 = vmatpush1.bf16.msra.mxu0 %v1698
        %2795 = vmatprep.subr.bf16.mxu0 %v1697
        %2796 = vmatpush1.bf16.msra.mxu0 %v1696
        %2797 = vmatprep.subr.bf16.mxu0 0
        %2798 = vmatpush2.bf16.msra.mxu0 0
        %2799 = vmatprep.subr.bf16.mxu0 0
        %2800 = vmatpush2.bf16.msra.mxu0 0
        %2801 = vmatprep.subr.bf16.mxu0 0
        %2802 = vmatpush2.bf16.msra.mxu0 0
        %2803 = vmatprep.subr.bf16.mxu0 0
        %2804 = vmatpush2.bf16.msra.mxu0 0
        %2805 = vmatprep.subr.bf16.mxu0 0
        %2806 = vmatpush2.bf16.msra.mxu0 0
        %2807 = vmatprep.subr.bf16.mxu0 0
        %2808 = vmatpush2.bf16.msra.mxu0 0
        %2809 = vmatprep.subr.bf16.mxu0 0
        %2810 = vmatpush2.bf16.msra.mxu0 0
        %2811 = vmatprep.subr.bf16.mxu0 0
        %2812 = vmatpush2.bf16.msra.mxu0 0
        %2813 = vmatprep.mubr.bf16.mxu0 0
        %2814 = vmatmul.mubr.bf16.gmra.mxu0 0
        %v2815 = vpop.f32.mrf.mxu0
        %v2816 = vadd.f32 %v2763, %v2815
        %v2817 = vpop.f32.mrf.mxu0
        %v2818 = vadd.f32 %v2765, %v2817
        %v2819 = vpop.f32.mrf.mxu0
        %v2820 = vadd.f32 %v2767, %v2819
        %v2821 = vpop.f32.mrf.mxu0
        %v2822 = vadd.f32 %v2769, %v2821
        %2823 = vmatprep.mubr.bf16.mxu0 0
        %2824 = vmatmul.mubr.bf16.gmra.mxu0 0
        %v2825 = vpop.f32.mrf.mxu0
        %v2826 = vadd.f32 %v2773, %v2825
        %v2827 = vpop.f32.mrf.mxu0
        %v2828 = vadd.f32 %v2775, %v2827
        %v2829 = vpop.f32.mrf.mxu0
        %v2830 = vadd.f32 %v2777, %v2829
        %v2831 = vpop.f32.mrf.mxu0
        %v2832 = vadd.f32 %v2779, %v2831
        %2833 = vdwg.mxu0
        %v2834 = vmax.f32 %v2816, 0.0
        %v2835 = vmax.f32 %v2818, 0.0
        %v2836 = vmax.f32 %v2820, 0.0
        %v2837 = vmax.f32 %v2822, 0.0
        %v2838 = vmax.f32 %v2826, 0.0
        %v2839 = vmax.f32 %v2828, 0.0
        %v2840 = vmax.f32 %v2830, 0.0
        %v2841 = vmax.f32 %v2832, 0.0
        %v2842 = vmul.f32 %v2834, %v1878
        %v2843 = vmul.f32 %v2835, %v1882
        %v2844 = vmul.f32 %v2836, %v1878
        %v2845 = vmul.f32 %v2837, %v1882
        %v2846 = vmul.f32 %v2838, %v1878
        %v2847 = vmul.f32 %v2839, %v1882
        %v2848 = vmul.f32 %v2840, %v1878
        %v2849 = vmul.f32 %v2841, %v1882
        %v2850 = vadd.f32 %v2842, %v1897
        %v2851 = vadd.f32 %v2843, %v1901
        %v2852 = vadd.f32 %v2844, %v1897
        %v2853 = vadd.f32 %v2845, %v1901
        %v2854 = vadd.f32 %v2846, %v1897
        %v2855 = vadd.f32 %v2847, %v1901
        %v2856 = vadd.f32 %v2848, %v1897
        %v2857 = vadd.f32 %v2849, %v1901
        %v2858 = vmax.f32 %v2720, %v2850
        %v2859 = vmax.f32 %v2721, %v2851
        %v2860 = vmax.f32 %v2722, %v2852
        %v2861 = vmax.f32 %v2723, %v2853
        %v2862 = vmax.f32 %v2724, %v2854
        %v2863 = vmax.f32 %v2725, %v2855
        %v2864 = vmax.f32 %v2726, %v2856
        %v2865 = vmax.f32 %v2727, %v2857
        %v2866 = vpack.c.bf16 %v2860, %v2858
        %v2867 = vpack.c.bf16 %v2861, %v2859
        %v2868 = vpack.c.bf16 %v2864, %v2862
        %v2869 = vpack.c.bf16 %v2865, %v2863
        %v2870 = vld [vmem:[#allocation7] sm:$0xf]
        %v2871 = vld [vmem:[#allocation7 + $0x4] sm:$0xf]
        %v2872 = vld [vmem:[#allocation7 + $0x8] sm:$0xf]
        %v2873 = vld [vmem:[#allocation7 + $0xc] sm:$0xf]
        %v2874 = vld [vmem:[#allocation7 + $0x10] sm:$0xf]
        %v2875 = vld [vmem:[#allocation7 + $0x14] sm:$0xf]
        %v2876 = vld [vmem:[#allocation7 + $0x18] sm:$0xf]
        %v2877 = vld [vmem:[#allocation7 + $0x1c] sm:$0xf]
        %v2878 = vld [vmem:[#allocation7 + $0x20] sm:$0xf]
        %v2879 = vld [vmem:[#allocation7 + $0x24] sm:$0xf]
        %v2880 = vld [vmem:[#allocation7 + $0x28] sm:$0xf]
        %v2881 = vld [vmem:[#allocation7 + $0x2c] sm:$0xf]
        %v2882 = vld [vmem:[#allocation7 + $0x30] sm:$0xf]
        %v2883 = vld [vmem:[#allocation7 + $0x34] sm:$0xf]
        %v2884 = vld [vmem:[#allocation7 + $0x38] sm:$0xf]
        %v2885 = vld [vmem:[#allocation7 + $0x3c] sm:$0xf]
        %v2886 = vld [vmem:[#allocation7 + $0x40] sm:$0xf]
        %v2887 = vld [vmem:[#allocation7 + $0x44] sm:$0xf]
        %v2888 = vld [vmem:[#allocation7 + $0x48] sm:$0xf]
        %v2889 = vld [vmem:[#allocation7 + $0x4c] sm:$0xf]
        %v2890 = vld [vmem:[#allocation7 + $0x50] sm:$0xf]
        %v2891 = vld [vmem:[#allocation7 + $0x54] sm:$0xf]
        %v2892 = vld [vmem:[#allocation7 + $0x58] sm:$0xf]
        %v2893 = vld [vmem:[#allocation7 + $0x5c] sm:$0xf]
        %v2894 = vld [vmem:[#allocation7 + $0x60] sm:$0xf]
        %v2895 = vld [vmem:[#allocation7 + $0x64] sm:$0xf]
        %v2896 = vld [vmem:[#allocation7 + $0x68] sm:$0xf]
        %v2897 = vld [vmem:[#allocation7 + $0x6c] sm:$0xf]
        %v2898 = vld [vmem:[#allocation7 + $0x70] sm:$0xf]
        %v2899 = vld [vmem:[#allocation7 + $0x74] sm:$0xf]
        %v2900 = vld [vmem:[#allocation7 + $0x78] sm:$0xf]
        %v2901 = vld [vmem:[#allocation7 + $0x7c] sm:$0xf]
        %v2902 = vld [vmem:[#allocation7 + $0x80] sm:$0xf]
        %v2903 = vld [vmem:[#allocation7 + $0x84] sm:$0xf]
        %v2904 = vld [vmem:[#allocation7 + $0x88] sm:$0xf]
        %v2905 = vld [vmem:[#allocation7 + $0x8c] sm:$0xf]
        %v2906 = vld [vmem:[#allocation7 + $0x90] sm:$0xf]
        %v2907 = vld [vmem:[#allocation7 + $0x94] sm:$0xf]
        %v2908 = vld [vmem:[#allocation7 + $0x98] sm:$0xf]
        %v2909 = vld [vmem:[#allocation7 + $0x9c] sm:$0xf]
        %v2910 = vld [vmem:[#allocation7 + $0xa0] sm:$0xf]
        %v2911 = vld [vmem:[#allocation7 + $0xa4] sm:$0xf]
        %v2912 = vld [vmem:[#allocation7 + $0xa8] sm:$0xf]
        %v2913 = vld [vmem:[#allocation7 + $0xac] sm:$0xf]
        %v2914 = vld [vmem:[#allocation7 + $0xb0] sm:$0xf]
        %v2915 = vld [vmem:[#allocation7 + $0xb4] sm:$0xf]
        %v2916 = vld [vmem:[#allocation7 + $0xb8] sm:$0xf]
        %v2917 = vld [vmem:[#allocation7 + $0xbc] sm:$0xf]
        %v2918 = vld [vmem:[#allocation7 + $0xc0] sm:$0xf]
        %v2919 = vld [vmem:[#allocation7 + $0xc4] sm:$0xf]
        %v2920 = vld [vmem:[#allocation7 + $0xc8] sm:$0xf]
        %v2921 = vld [vmem:[#allocation7 + $0xcc] sm:$0xf]
        %v2922 = vld [vmem:[#allocation7 + $0xd0] sm:$0xf]
        %v2923 = vld [vmem:[#allocation7 + $0xd4] sm:$0xf]
        %v2924 = vld [vmem:[#allocation7 + $0xd8] sm:$0xf]
        %v2925 = vld [vmem:[#allocation7 + $0xdc] sm:$0xf]
        %v2926 = vld [vmem:[#allocation7 + $0xe0] sm:$0xf]
        %v2927 = vld [vmem:[#allocation7 + $0xe4] sm:$0xf]
        %v2928 = vld [vmem:[#allocation7 + $0xe8] sm:$0xf]
        %v2929 = vld [vmem:[#allocation7 + $0xec] sm:$0xf]
        %v2930 = vld [vmem:[#allocation7 + $0xf0] sm:$0xf]
        %v2931 = vld [vmem:[#allocation7 + $0xf4] sm:$0xf]
        %v2932 = vld [vmem:[#allocation7 + $0xf8] sm:$0xf]
        %v2933 = vld [vmem:[#allocation7 + $0xfc] sm:$0xf]
        %v2934 = vld [vmem:[#allocation7 + $0x100] sm:$0xf]
        %v2935 = vld [vmem:[#allocation7 + $0x104] sm:$0xf]
        %v2936 = vld [vmem:[#allocation7 + $0x108] sm:$0xf]
        %v2937 = vld [vmem:[#allocation7 + $0x10c] sm:$0xf]
        %v2938 = vld [vmem:[#allocation7 + $0x110] sm:$0xf]
        %v2939 = vld [vmem:[#allocation7 + $0x114] sm:$0xf]
        %v2940 = vld [vmem:[#allocation7 + $0x118] sm:$0xf]
        %v2941 = vld [vmem:[#allocation7 + $0x11c] sm:$0xf]
        %v2942 = vld [vmem:[#allocation7 + $0x120] sm:$0xf]
        %v2943 = vld [vmem:[#allocation7 + $0x124] sm:$0xf]
        %v2944 = vld [vmem:[#allocation7 + $0x128] sm:$0xf]
        %v2945 = vld [vmem:[#allocation7 + $0x12c] sm:$0xf]
        %v2946 = vld [vmem:[#allocation7 + $0x130] sm:$0xf]
        %v2947 = vld [vmem:[#allocation7 + $0x134] sm:$0xf]
        %v2948 = vld [vmem:[#allocation7 + $0x138] sm:$0xf]
        %v2949 = vld [vmem:[#allocation7 + $0x13c] sm:$0xf]
        %v2950 = vld [vmem:[#allocation7 + $0x140] sm:$0xf]
        %v2951 = vld [vmem:[#allocation7 + $0x144] sm:$0xf]
        %v2952 = vld [vmem:[#allocation7 + $0x148] sm:$0xf]
        %v2953 = vld [vmem:[#allocation7 + $0x14c] sm:$0xf]
        %v2954 = vld [vmem:[#allocation7 + $0x150] sm:$0xf]
        %v2955 = vld [vmem:[#allocation7 + $0x154] sm:$0xf]
        %v2956 = vld [vmem:[#allocation7 + $0x158] sm:$0xf]
        %v2957 = vld [vmem:[#allocation7 + $0x15c] sm:$0xf]
        %v2958 = vld [vmem:[#allocation7 + $0x160] sm:$0xf]
        %v2959 = vld [vmem:[#allocation7 + $0x164] sm:$0xf]
        %v2960 = vld [vmem:[#allocation7 + $0x168] sm:$0xf]
        %v2961 = vld [vmem:[#allocation7 + $0x16c] sm:$0xf]
        %v2962 = vld [vmem:[#allocation7 + $0x170] sm:$0xf]
        %v2963 = vld [vmem:[#allocation7 + $0x174] sm:$0xf]
        %v2964 = vld [vmem:[#allocation7 + $0x178] sm:$0xf]
        %v2965 = vld [vmem:[#allocation7 + $0x17c] sm:$0xf]
        %v2966 = vld [vmem:[#allocation7 + $0x180] sm:$0xf]
        %v2967 = vld [vmem:[#allocation7 + $0x184] sm:$0xf]
        %v2968 = vld [vmem:[#allocation7 + $0x188] sm:$0xf]
        %v2969 = vld [vmem:[#allocation7 + $0x18c] sm:$0xf]
        %v2970 = vld [vmem:[#allocation7 + $0x190] sm:$0xf]
        %v2971 = vld [vmem:[#allocation7 + $0x194] sm:$0xf]
        %v2972 = vld [vmem:[#allocation7 + $0x198] sm:$0xf]
        %v2973 = vld [vmem:[#allocation7 + $0x19c] sm:$0xf]
        %v2974 = vld [vmem:[#allocation7 + $0x1a0] sm:$0xf]
        %v2975 = vld [vmem:[#allocation7 + $0x1a4] sm:$0xf]
        %v2976 = vld [vmem:[#allocation7 + $0x1a8] sm:$0xf]
        %v2977 = vld [vmem:[#allocation7 + $0x1ac] sm:$0xf]
        %v2978 = vld [vmem:[#allocation7 + $0x1b0] sm:$0xf]
        %v2979 = vld [vmem:[#allocation7 + $0x1b4] sm:$0xf]
        %v2980 = vld [vmem:[#allocation7 + $0x1b8] sm:$0xf]
        %v2981 = vld [vmem:[#allocation7 + $0x1bc] sm:$0xf]
        %v2982 = vld [vmem:[#allocation7 + $0x1c0] sm:$0xf]
        %v2983 = vld [vmem:[#allocation7 + $0x1c4] sm:$0xf]
        %v2984 = vld [vmem:[#allocation7 + $0x1c8] sm:$0xf]
        %v2985 = vld [vmem:[#allocation7 + $0x1cc] sm:$0xf]
        %v2986 = vld [vmem:[#allocation7 + $0x1d0] sm:$0xf]
        %v2987 = vld [vmem:[#allocation7 + $0x1d4] sm:$0xf]
        %v2988 = vld [vmem:[#allocation7 + $0x1d8] sm:$0xf]
        %v2989 = vld [vmem:[#allocation7 + $0x1dc] sm:$0xf]
        %v2990 = vld [vmem:[#allocation7 + $0x1e0] sm:$0xf]
        %v2991 = vld [vmem:[#allocation7 + $0x1e4] sm:$0xf]
        %v2992 = vld [vmem:[#allocation7 + $0x1e8] sm:$0xf]
        %v2993 = vld [vmem:[#allocation7 + $0x1ec] sm:$0xf]
        %v2994 = vld [vmem:[#allocation7 + $0x1f0] sm:$0xf]
        %v2995 = vld [vmem:[#allocation7 + $0x1f4] sm:$0xf]
        %v2996 = vld [vmem:[#allocation7 + $0x1f8] sm:$0xf]
        %v2997 = vld [vmem:[#allocation7 + $0x1fc] sm:$0xf]
        %v2998 = vld [vmem:[%s10] sm:$0x1]
        %v3000 = vlaneseq
        %v3001 = vshrl.u32 %v3000, 7
        %v3002 = vsub.s32 0, %v3001
        %v3003 = vrot.slane %v2998, %v3002
        %v3133 = vunpack.c.l.b16 %v2870
        %v3134 = vunpack.c.l.b16 %v2871
        %v3135 = vunpack.c.l.b16 %v2872
        %v3136 = vunpack.c.l.b16 %v2873
        %v3137 = vunpack.c.l.b16 %v2874
        %v3138 = vunpack.c.l.b16 %v2875
        %v3139 = vunpack.c.l.b16 %v2876
        %v3140 = vunpack.c.l.b16 %v2877
        %v3141 = vunpack.c.l.b16 %v2878
        %v3142 = vunpack.c.l.b16 %v2879
        %v3143 = vunpack.c.l.b16 %v2880
        %v3144 = vunpack.c.l.b16 %v2881
        %v3145 = vunpack.c.l.b16 %v2882
        %v3146 = vunpack.c.l.b16 %v2883
        %v3147 = vunpack.c.l.b16 %v2884
        %v3148 = vunpack.c.l.b16 %v2885
        %v3149 = vunpack.c.l.b16 %v2886
        %v3150 = vunpack.c.l.b16 %v2887
        %v3151 = vunpack.c.l.b16 %v2888
        %v3152 = vunpack.c.l.b16 %v2889
        %v3153 = vunpack.c.l.b16 %v2890
        %v3154 = vunpack.c.l.b16 %v2891
        %v3155 = vunpack.c.l.b16 %v2892
        %v3156 = vunpack.c.l.b16 %v2893
        %v3157 = vunpack.c.l.b16 %v2894
        %v3158 = vunpack.c.l.b16 %v2895
        %v3159 = vunpack.c.l.b16 %v2896
        %v3160 = vunpack.c.l.b16 %v2897
        %v3161 = vunpack.c.l.b16 %v2898
        %v3162 = vunpack.c.l.b16 %v2899
        %v3163 = vunpack.c.l.b16 %v2900
        %v3164 = vunpack.c.l.b16 %v2901
        %v3165 = vunpack.c.l.b16 %v2902
        %v3166 = vunpack.c.l.b16 %v2903
        %v3167 = vunpack.c.l.b16 %v2904
        %v3168 = vunpack.c.l.b16 %v2905
        %v3169 = vunpack.c.l.b16 %v2906
        %v3170 = vunpack.c.l.b16 %v2907
        %v3171 = vunpack.c.l.b16 %v2908
        %v3172 = vunpack.c.l.b16 %v2909
        %v3173 = vunpack.c.l.b16 %v2910
        %v3174 = vunpack.c.l.b16 %v2911
        %v3175 = vunpack.c.l.b16 %v2912
        %v3176 = vunpack.c.l.b16 %v2913
        %v3177 = vunpack.c.l.b16 %v2914
        %v3178 = vunpack.c.l.b16 %v2915
        %v3179 = vunpack.c.l.b16 %v2916
        %v3180 = vunpack.c.l.b16 %v2917
        %v3181 = vunpack.c.l.b16 %v2918
        %v3182 = vunpack.c.l.b16 %v2919
        %v3183 = vunpack.c.l.b16 %v2920
        %v3184 = vunpack.c.l.b16 %v2921
        %v3185 = vunpack.c.l.b16 %v2922
        %v3186 = vunpack.c.l.b16 %v2923
        %v3187 = vunpack.c.l.b16 %v2924
        %v3188 = vunpack.c.l.b16 %v2925
        %v3189 = vunpack.c.l.b16 %v2926
        %v3190 = vunpack.c.l.b16 %v2927
        %v3191 = vunpack.c.l.b16 %v2928
        %v3192 = vunpack.c.l.b16 %v2929
        %v3193 = vunpack.c.l.b16 %v2930
        %v3194 = vunpack.c.l.b16 %v2931
        %v3195 = vunpack.c.l.b16 %v2932
        %v3196 = vunpack.c.l.b16 %v2933
        %v3197 = vunpack.c.l.b16 %v2934
        %v3198 = vunpack.c.l.b16 %v2935
        %v3199 = vunpack.c.l.b16 %v2936
        %v3200 = vunpack.c.l.b16 %v2937
        %v3201 = vunpack.c.l.b16 %v2938
        %v3202 = vunpack.c.l.b16 %v2939
        %v3203 = vunpack.c.l.b16 %v2940
        %v3204 = vunpack.c.l.b16 %v2941
        %v3205 = vunpack.c.l.b16 %v2942
        %v3206 = vunpack.c.l.b16 %v2943
        %v3207 = vunpack.c.l.b16 %v2944
        %v3208 = vunpack.c.l.b16 %v2945
        %v3209 = vunpack.c.l.b16 %v2946
        %v3210 = vunpack.c.l.b16 %v2947
        %v3211 = vunpack.c.l.b16 %v2948
        %v3212 = vunpack.c.l.b16 %v2949
        %v3213 = vunpack.c.l.b16 %v2950
        %v3214 = vunpack.c.l.b16 %v2951
        %v3215 = vunpack.c.l.b16 %v2952
        %v3216 = vunpack.c.l.b16 %v2953
        %v3217 = vunpack.c.l.b16 %v2954
        %v3218 = vunpack.c.l.b16 %v2955
        %v3219 = vunpack.c.l.b16 %v2956
        %v3220 = vunpack.c.l.b16 %v2957
        %v3221 = vunpack.c.l.b16 %v2958
        %v3222 = vunpack.c.l.b16 %v2959
        %v3223 = vunpack.c.l.b16 %v2960
        %v3224 = vunpack.c.l.b16 %v2961
        %v3225 = vunpack.c.l.b16 %v2962
        %v3226 = vunpack.c.l.b16 %v2963
        %v3227 = vunpack.c.l.b16 %v2964
        %v3228 = vunpack.c.l.b16 %v2965
        %v3229 = vunpack.c.l.b16 %v2966
        %v3230 = vunpack.c.l.b16 %v2967
        %v3231 = vunpack.c.l.b16 %v2968
        %v3232 = vunpack.c.l.b16 %v2969
        %v3233 = vunpack.c.l.b16 %v2970
        %v3234 = vunpack.c.l.b16 %v2971
        %v3235 = vunpack.c.l.b16 %v2972
        %v3236 = vunpack.c.l.b16 %v2973
        %v3237 = vunpack.c.l.b16 %v2974
        %v3238 = vunpack.c.l.b16 %v2975
        %v3239 = vunpack.c.l.b16 %v2976
        %v3240 = vunpack.c.l.b16 %v2977
        %v3241 = vunpack.c.l.b16 %v2978
        %v3242 = vunpack.c.l.b16 %v2979
        %v3243 = vunpack.c.l.b16 %v2980
        %v3244 = vunpack.c.l.b16 %v2981
        %v3245 = vunpack.c.l.b16 %v2982
        %v3246 = vunpack.c.l.b16 %v2983
        %v3247 = vunpack.c.l.b16 %v2984
        %v3248 = vunpack.c.l.b16 %v2985
        %v3249 = vunpack.c.l.b16 %v2986
        %v3250 = vunpack.c.l.b16 %v2987
        %v3251 = vunpack.c.l.b16 %v2988
        %v3252 = vunpack.c.l.b16 %v2989
        %v3253 = vunpack.c.l.b16 %v2990
        %v3254 = vunpack.c.l.b16 %v2991
        %v3255 = vunpack.c.l.b16 %v2992
        %v3256 = vunpack.c.l.b16 %v2993
        %v3257 = vunpack.c.l.b16 %v2994
        %v3258 = vunpack.c.l.b16 %v2995
        %v3259 = vunpack.c.l.b16 %v2996
        %v3260 = vunpack.c.l.b16 %v2997
        %v3261 = vpack.c.b16 %v3134, %v3133
        %v3262 = vpack.c.b16 %v3136, %v3135
        %v3263 = vpack.c.b16 %v3138, %v3137
        %v3264 = vpack.c.b16 %v3140, %v3139
        %v3265 = vpack.c.b16 %v3142, %v3141
        %v3266 = vpack.c.b16 %v3144, %v3143
        %v3267 = vpack.c.b16 %v3146, %v3145
        %v3268 = vpack.c.b16 %v3148, %v3147
        %v3269 = vpack.c.b16 %v3150, %v3149
        %v3270 = vpack.c.b16 %v3152, %v3151
        %v3271 = vpack.c.b16 %v3154, %v3153
        %v3272 = vpack.c.b16 %v3156, %v3155
        %v3273 = vpack.c.b16 %v3158, %v3157
        %v3274 = vpack.c.b16 %v3160, %v3159
        %v3275 = vpack.c.b16 %v3162, %v3161
        %v3276 = vpack.c.b16 %v3164, %v3163
        %v3277 = vpack.c.b16 %v3166, %v3165
        %v3278 = vpack.c.b16 %v3168, %v3167
        %v3279 = vpack.c.b16 %v3170, %v3169
        %v3280 = vpack.c.b16 %v3172, %v3171
        %v3281 = vpack.c.b16 %v3174, %v3173
        %v3282 = vpack.c.b16 %v3176, %v3175
        %v3283 = vpack.c.b16 %v3178, %v3177
        %v3284 = vpack.c.b16 %v3180, %v3179
        %v3285 = vpack.c.b16 %v3182, %v3181
        %v3286 = vpack.c.b16 %v3184, %v3183
        %v3287 = vpack.c.b16 %v3186, %v3185
        %v3288 = vpack.c.b16 %v3188, %v3187
        %v3289 = vpack.c.b16 %v3190, %v3189
        %v3290 = vpack.c.b16 %v3192, %v3191
        %v3291 = vpack.c.b16 %v3194, %v3193
        %v3292 = vpack.c.b16 %v3196, %v3195
        %v3293 = vpack.c.b16 %v3198, %v3197
        %v3294 = vpack.c.b16 %v3200, %v3199
        %v3295 = vpack.c.b16 %v3202, %v3201
        %v3296 = vpack.c.b16 %v3204, %v3203
        %v3297 = vpack.c.b16 %v3206, %v3205
        %v3298 = vpack.c.b16 %v3208, %v3207
        %v3299 = vpack.c.b16 %v3210, %v3209
        %v3300 = vpack.c.b16 %v3212, %v3211
        %v3301 = vpack.c.b16 %v3214, %v3213
        %v3302 = vpack.c.b16 %v3216, %v3215
        %v3303 = vpack.c.b16 %v3218, %v3217
        %v3304 = vpack.c.b16 %v3220, %v3219
        %v3305 = vpack.c.b16 %v3222, %v3221
        %v3306 = vpack.c.b16 %v3224, %v3223
        %v3307 = vpack.c.b16 %v3226, %v3225
        %v3308 = vpack.c.b16 %v3228, %v3227
        %v3309 = vpack.c.b16 %v3230, %v3229
        %v3310 = vpack.c.b16 %v3232, %v3231
        %v3311 = vpack.c.b16 %v3234, %v3233
        %v3312 = vpack.c.b16 %v3236, %v3235
        %v3313 = vpack.c.b16 %v3238, %v3237
        %v3314 = vpack.c.b16 %v3240, %v3239
        %v3315 = vpack.c.b16 %v3242, %v3241
        %v3316 = vpack.c.b16 %v3244, %v3243
        %v3317 = vpack.c.b16 %v3246, %v3245
        %v3318 = vpack.c.b16 %v3248, %v3247
        %v3319 = vpack.c.b16 %v3250, %v3249
        %v3320 = vpack.c.b16 %v3252, %v3251
        %v3321 = vpack.c.b16 %v3254, %v3253
        %v3322 = vpack.c.b16 %v3256, %v3255
        %v3323 = vpack.c.b16 %v3258, %v3257
        %v3324 = vpack.c.b16 %v3260, %v3259
        %3389 = vmatprep.subr.bf16.mxu0 0
        %3390 = vmatpush1.bf16.msra.mxu0 %v3268
        %3391 = vmatprep.subr.bf16.mxu0 0
        %3392 = vmatpush1.bf16.msra.mxu0 %v3267
        %3393 = vmatprep.subr.bf16.mxu0 0
        %3394 = vmatpush1.bf16.msra.mxu0 %v3266
        %3395 = vmatprep.subr.bf16.mxu0 0
        %3396 = vmatpush1.bf16.msra.mxu0 %v3265
        %3397 = vmatprep.subr.bf16.mxu0 0
        %3398 = vmatpush1.bf16.msra.mxu0 %v3264
        %3399 = vmatprep.subr.bf16.mxu0 0
        %3400 = vmatpush1.bf16.msra.mxu0 %v3263
        %3401 = vmatprep.subr.bf16.mxu0 0
        %3402 = vmatpush1.bf16.msra.mxu0 %v3262
        %3403 = vmatprep.subr.bf16.mxu0 0
        %3404 = vmatpush1.bf16.msra.mxu0 %v3261
        %3405 = vmatprep.subr.bf16.mxu0 0
        %3406 = vmatpush2.bf16.msra.mxu0 %v3276
        %3407 = vmatprep.subr.bf16.mxu0 0
        %3408 = vmatpush2.bf16.msra.mxu0 %v3275
        %3409 = vmatprep.subr.bf16.mxu0 0
        %3410 = vmatpush2.bf16.msra.mxu0 %v3274
        %3411 = vmatprep.subr.bf16.mxu0 0
        %3412 = vmatpush2.bf16.msra.mxu0 %v3273
        %3413 = vmatprep.subr.bf16.mxu0 0
        %3414 = vmatpush2.bf16.msra.mxu0 %v3272
        %3415 = vmatprep.subr.bf16.mxu0 0
        %3416 = vmatpush2.bf16.msra.mxu0 %v3271
        %3417 = vmatprep.subr.bf16.mxu0 0
        %3418 = vmatpush2.bf16.msra.mxu0 %v3270
        %3419 = vmatprep.subr.bf16.mxu0 0
        %3420 = vmatpush2.bf16.msra.mxu0 %v3269
        %3421 = vmatprep.mubr.bf16.mxu0 %v2051
        %3422 = vmatmul.mubr.bf16.gmra.mxu0 %v2050
        %v3423 = vpop.f32.mrf.mxu0
        %v3424 = vadd.f32 %v3003, %v3423
        %v3425 = vpop.f32.mrf.mxu0
        %v3426 = vpop.f32.mrf.mxu0
        %v3427 = vadd.f32 %v3003, %v3426
        %v3428 = vpop.f32.mrf.mxu0
        %3429 = vmatprep.mubr.bf16.mxu0 %v2053
        %3430 = vmatmul.mubr.bf16.gmra.mxu0 %v2052
        %v3431 = vpop.f32.mrf.mxu0
        %v3432 = vadd.f32 %v3003, %v3431
        %v3433 = vpop.f32.mrf.mxu0
        %v3434 = vpop.f32.mrf.mxu0
        %v3435 = vadd.f32 %v3003, %v3434
        %v3436 = vpop.f32.mrf.mxu0
        %3437 = vdwg.mxu0
        %3438 = vmatprep.subr.bf16.mxu0 0
        %3439 = vmatpush1.bf16.msra.mxu0 %v3284
        %3440 = vmatprep.subr.bf16.mxu0 0
        %3441 = vmatpush1.bf16.msra.mxu0 %v3283
        %3442 = vmatprep.subr.bf16.mxu0 0
        %3443 = vmatpush1.bf16.msra.mxu0 %v3282
        %3444 = vmatprep.subr.bf16.mxu0 0
        %3445 = vmatpush1.bf16.msra.mxu0 %v3281
        %3446 = vmatprep.subr.bf16.mxu0 0
        %3447 = vmatpush1.bf16.msra.mxu0 %v3280
        %3448 = vmatprep.subr.bf16.mxu0 0
        %3449 = vmatpush1.bf16.msra.mxu0 %v3279
        %3450 = vmatprep.subr.bf16.mxu0 0
        %3451 = vmatpush1.bf16.msra.mxu0 %v3278
        %3452 = vmatprep.subr.bf16.mxu0 0
        %3453 = vmatpush1.bf16.msra.mxu0 %v3277
        %3454 = vmatprep.subr.bf16.mxu0 0
        %3455 = vmatpush2.bf16.msra.mxu0 %v3292
        %3456 = vmatprep.subr.bf16.mxu0 0
        %3457 = vmatpush2.bf16.msra.mxu0 %v3291
        %3458 = vmatprep.subr.bf16.mxu0 0
        %3459 = vmatpush2.bf16.msra.mxu0 %v3290
        %3460 = vmatprep.subr.bf16.mxu0 0
        %3461 = vmatpush2.bf16.msra.mxu0 %v3289
        %3462 = vmatprep.subr.bf16.mxu0 0
        %3463 = vmatpush2.bf16.msra.mxu0 %v3288
        %3464 = vmatprep.subr.bf16.mxu0 0
        %3465 = vmatpush2.bf16.msra.mxu0 %v3287
        %3466 = vmatprep.subr.bf16.mxu0 0
        %3467 = vmatpush2.bf16.msra.mxu0 %v3286
        %3468 = vmatprep.subr.bf16.mxu0 0
        %3469 = vmatpush2.bf16.msra.mxu0 %v3285
        %3470 = vmatprep.mubr.bf16.mxu0 %v2323
        %3471 = vmatmul.mubr.bf16.gmra.mxu0 %v2322
        %v3472 = vpop.f32.mrf.mxu0
        %v3473 = vadd.f32 %v3424, %v3472
        %v3474 = vpop.f32.mrf.mxu0
        %v3475 = vpop.f32.mrf.mxu0
        %v3476 = vadd.f32 %v3427, %v3475
        %v3477 = vpop.f32.mrf.mxu0
        %3478 = vmatprep.mubr.bf16.mxu0 %v2325
        %3479 = vmatmul.mubr.bf16.gmra.mxu0 %v2324
        %v3480 = vpop.f32.mrf.mxu0
        %v3481 = vadd.f32 %v3432, %v3480
        %v3482 = vpop.f32.mrf.mxu0
        %v3483 = vpop.f32.mrf.mxu0
        %v3484 = vadd.f32 %v3435, %v3483
        %v3485 = vpop.f32.mrf.mxu0
        %3486 = vdwg.mxu0
        %3487 = vmatprep.subr.bf16.mxu0 0
        %3488 = vmatpush1.bf16.msra.mxu0 %v3300
        %3489 = vmatprep.subr.bf16.mxu0 0
        %3490 = vmatpush1.bf16.msra.mxu0 %v3299
        %3491 = vmatprep.subr.bf16.mxu0 0
        %3492 = vmatpush1.bf16.msra.mxu0 %v3298
        %3493 = vmatprep.subr.bf16.mxu0 0
        %3494 = vmatpush1.bf16.msra.mxu0 %v3297
        %3495 = vmatprep.subr.bf16.mxu0 0
        %3496 = vmatpush1.bf16.msra.mxu0 %v3296
        %3497 = vmatprep.subr.bf16.mxu0 0
        %3498 = vmatpush1.bf16.msra.mxu0 %v3295
        %3499 = vmatprep.subr.bf16.mxu0 0
        %3500 = vmatpush1.bf16.msra.mxu0 %v3294
        %3501 = vmatprep.subr.bf16.mxu0 0
        %3502 = vmatpush1.bf16.msra.mxu0 %v3293
        %3503 = vmatprep.subr.bf16.mxu0 0
        %3504 = vmatpush2.bf16.msra.mxu0 %v3308
        %3505 = vmatprep.subr.bf16.mxu0 0
        %3506 = vmatpush2.bf16.msra.mxu0 %v3307
        %3507 = vmatprep.subr.bf16.mxu0 0
        %3508 = vmatpush2.bf16.msra.mxu0 %v3306
        %3509 = vmatprep.subr.bf16.mxu0 0
        %3510 = vmatpush2.bf16.msra.mxu0 %v3305
        %3511 = vmatprep.subr.bf16.mxu0 0
        %3512 = vmatpush2.bf16.msra.mxu0 %v3304
        %3513 = vmatprep.subr.bf16.mxu0 0
        %3514 = vmatpush2.bf16.msra.mxu0 %v3303
        %3515 = vmatprep.subr.bf16.mxu0 0
        %3516 = vmatpush2.bf16.msra.mxu0 %v3302
        %3517 = vmatprep.subr.bf16.mxu0 0
        %3518 = vmatpush2.bf16.msra.mxu0 %v3301
        %3519 = vmatprep.mubr.bf16.mxu0 %v2595
        %3520 = vmatmul.mubr.bf16.gmra.mxu0 %v2594
        %v3521 = vpop.f32.mrf.mxu0
        %v3522 = vadd.f32 %v3473, %v3521
        %v3523 = vpop.f32.mrf.mxu0
        %v3524 = vpop.f32.mrf.mxu0
        %v3525 = vadd.f32 %v3476, %v3524
        %v3526 = vpop.f32.mrf.mxu0
        %3527 = vmatprep.mubr.bf16.mxu0 %v2597
        %3528 = vmatmul.mubr.bf16.gmra.mxu0 %v2596
        %v3529 = vpop.f32.mrf.mxu0
        %v3530 = vadd.f32 %v3481, %v3529
        %v3531 = vpop.f32.mrf.mxu0
        %v3532 = vpop.f32.mrf.mxu0
        %v3533 = vadd.f32 %v3484, %v3532
        %v3534 = vpop.f32.mrf.mxu0
        %3535 = vdwg.mxu0
        %3536 = vmatprep.subr.bf16.mxu0 0
        %3537 = vmatpush1.bf16.msra.mxu0 %v3316
        %3538 = vmatprep.subr.bf16.mxu0 0
        %3539 = vmatpush1.bf16.msra.mxu0 %v3315
        %3540 = vmatprep.subr.bf16.mxu0 0
        %3541 = vmatpush1.bf16.msra.mxu0 %v3314
        %3542 = vmatprep.subr.bf16.mxu0 0
        %3543 = vmatpush1.bf16.msra.mxu0 %v3313
        %3544 = vmatprep.subr.bf16.mxu0 0
        %3545 = vmatpush1.bf16.msra.mxu0 %v3312
        %3546 = vmatprep.subr.bf16.mxu0 0
        %3547 = vmatpush1.bf16.msra.mxu0 %v3311
        %3548 = vmatprep.subr.bf16.mxu0 0
        %3549 = vmatpush1.bf16.msra.mxu0 %v3310
        %3550 = vmatprep.subr.bf16.mxu0 0
        %3551 = vmatpush1.bf16.msra.mxu0 %v3309
        %3552 = vmatprep.subr.bf16.mxu0 0
        %3553 = vmatpush2.bf16.msra.mxu0 %v3324
        %3554 = vmatprep.subr.bf16.mxu0 0
        %3555 = vmatpush2.bf16.msra.mxu0 %v3323
        %3556 = vmatprep.subr.bf16.mxu0 0
        %3557 = vmatpush2.bf16.msra.mxu0 %v3322
        %3558 = vmatprep.subr.bf16.mxu0 0
        %3559 = vmatpush2.bf16.msra.mxu0 %v3321
        %3560 = vmatprep.subr.bf16.mxu0 0
        %3561 = vmatpush2.bf16.msra.mxu0 %v3320
        %3562 = vmatprep.subr.bf16.mxu0 0
        %3563 = vmatpush2.bf16.msra.mxu0 %v3319
        %3564 = vmatprep.subr.bf16.mxu0 0
        %3565 = vmatpush2.bf16.msra.mxu0 %v3318
        %3566 = vmatprep.subr.bf16.mxu0 0
        %3567 = vmatpush2.bf16.msra.mxu0 %v3317
        %3568 = vmatprep.mubr.bf16.mxu0 %v2867
        %3569 = vmatmul.mubr.bf16.gmra.mxu0 %v2866
        %v3570 = vpop.f32.mrf.mxu0
        %v3571 = vadd.f32 %v3522, %v3570
        %v3572 = vpop.f32.mrf.mxu0
        %v3573 = vpop.f32.mrf.mxu0
        %v3574 = vadd.f32 %v3525, %v3573
        %v3575 = vpop.f32.mrf.mxu0
        %3576 = vmatprep.mubr.bf16.mxu0 %v2869
        %3577 = vmatmul.mubr.bf16.gmra.mxu0 %v2868
        %v3578 = vpop.f32.mrf.mxu0
        %v3579 = vadd.f32 %v3530, %v3578
        %v3580 = vpop.f32.mrf.mxu0
        %v3581 = vpop.f32.mrf.mxu0
        %v3582 = vadd.f32 %v3533, %v3581
        %v3583 = vpop.f32.mrf.mxu0
        %3584 = vdwg.mxu0
        %v3585 = vand.u32 2147483647, %v3571
        %v3586 = vand.u32 2147483647, %v3574
        %v3587 = vand.u32 2147483647, %v3579
        %v3588 = vand.u32 2147483647, %v3582
        %v3589 = vsub.f32 0.0, %v3585
        %v3590 = vsub.f32 0.0, %v3586
        %v3591 = vsub.f32 0.0, %v3587
        %v3592 = vsub.f32 0.0, %v3588
        %v3593 = vmul.f32 %v3589, 1.442695
        %v3594 = vpow.pop %v3593
        %v3595 = vmul.f32 %v3590, 1.442695
        %v3596 = vpow.pop %v3595
        %v3597 = vmul.f32 %v3591, 1.442695
        %v3598 = vpow.pop %v3597
        %v3599 = vmul.f32 %v3592, 1.442695
        %v3600 = vpow.pop %v3599
        %v3601 = vadd.f32 %v3594, 1.0
        %v3602 = vadd.f32 %v3596, 1.0
        %v3603 = vadd.f32 %v3598, 1.0
        %v3604 = vadd.f32 %v3600, 1.0
        %v3605 = vrcp.pop %v3601
        %v3606 = vmul.f32 1.0, %v3605
        %v3607 = vrcp.pop %v3602
        %v3608 = vmul.f32 1.0, %v3607
        %v3609 = vrcp.pop %v3603
        %v3610 = vmul.f32 1.0, %v3609
        %v3611 = vrcp.pop %v3604
        %v3612 = vmul.f32 1.0, %v3611
        %vm3613 = vcmp.ge.f32.partialorder %v3571, 0.0
        %vm3614 = vcmp.ge.f32.partialorder %v3574, 0.0
        %vm3615 = vcmp.ge.f32.partialorder %v3579, 0.0
        %vm3616 = vcmp.ge.f32.partialorder %v3582, 0.0
        %v3617 = vsub.f32 1.0, %v3606
        %v3618 = vsub.f32 1.0, %v3608
        %v3619 = vsub.f32 1.0, %v3610
        %v3620 = vsub.f32 1.0, %v3612
        %v3621 = vsel %vm3613, %v3606, %v3617
        %v3622 = vsel %vm3614, %v3608, %v3618
        %v3623 = vsel %vm3615, %v3610, %v3619
        %v3624 = vsel %vm3616, %v3612, %v3620
        %3625 = vst [vmem:[%s424] sm:$0xff] %v3621
        %3626 = vst [vmem:[%s424 + $0x8] sm:$0xff] %v3622
        %3627 = vst [vmem:[%s424 + $0x10] sm:$0xff] %v3623
        %3628 = vst [vmem:[%s424 + $0x18] sm:$0xff] %v3624
        %s3629 = sand.u32 %s271, 1
        %s3630 = scalar_lea.sflag [#allocation4], %s3629
        %s3631 = sand.u32 %s271, 1
        %s3632 = smul.addr %s3631, 32
        %s3633 = scalar_lea.vmem [#allocation8], %s3632
        // Predicated region
        $region77: #{tpu_custom_call.1} parent=63 // pred_check
          %p3634 = pneg %p281
        $region78: #{tpu_custom_call.1} parent=63 // pred_check_branch
          %3636 = sbr.rel (%p3634) target = $region80
        $region79: #{tpu_custom_call.1} parent=63 // pred_region
          %s3637 = smul.u32 4, %s27
          %s3639 = ssub.s32 512, 512
          %3640 = vsyncadd %s3630, %s3639
          %s3641 = smul.addr %s3637, 128
          %s3642 = scalar_lea.hbm %s11, %s3641
          %s3643 = sshll.u32 %s3633, 4
          %s3644 = int_to_ptr.vmem [resolvable:$true] %s3643
          %3649 = dma.vmem_to_hbm [thread:$0]  %s3644, 512, %s3642, %s3630, 128, 128, 8
        $region80: #{tpu_custom_call.1} parent=63 // pred_fallthru
          _
      $region64: #{tpu_custom_call.1} parent=5 // pred_fallthru
        _
      %p3650 = scmp.le.s32.totalorder 2, %s22
      // Predicated region
      $region81: #{tpu_custom_call.1} parent=5 // pred_check
        %p3651 = pneg %p3650
      $region82: #{tpu_custom_call.1} parent=5 // pred_check_branch
        %3653 = sbr.rel (%p3651) target = $region84
      $region83: #{tpu_custom_call.1} parent=5 // pred_region
        %s3654 = ssub.s32 %s22, 2
        // Predicated region
        $region85: #{tpu_custom_call.1} parent=83 // pred_check
          %p3655 = pneg %p287
        $region86: #{tpu_custom_call.1} parent=83 // pred_check_branch
          %3657 = sbr.rel (%p3655) target = $region88
        $region87: #{tpu_custom_call.1} parent=83 // pred_region
          %s3658 = sand.u32 %s272, 1
          %s3659 = scalar_lea.sflag [#allocation4], %s3658
          %s3660 = sand.u32 %s272, 1
          %s3661 = smul.addr %s3660, 32
          %s3662 = scalar_lea.vmem [#allocation8], %s3661
          %3663 = dma.done %s3659, 512
        $region88: #{tpu_custom_call.1} parent=83 // pred_fallthru
          _
      $region84: #{tpu_custom_call.1} parent=5 // pred_fallthru
        _
    $region6: #{tpu_custom_call.1} parent=1 // loop_footer
      %s26 = sadd.s32 1, %s22
    $region7: #{tpu_custom_call.1} parent=1 // loop_footer_branch
      %21 = sbr.rel target = $region3
    $region8: #{tpu_custom_call.1} parent=1 // loop_exit
      _
    %3664 = vsyncpa [#allocation3], 1
    %s3665 = scalar_lea.sflag [#allocation3], 1
    %3666 = vsyncpa %s3665, 1
    %3667 = vsyncpa [#allocation6], 1
    %3668 = vsyncpa [#allocation4], 1
    %s3669 = scalar_lea.sflag [#allocation4], 1
    %3670 = vsyncpa %s3669, 1

</llo_original>
